<compile_context>
chip_gen: v7x
topology: tpu7x:2x2x1
jax: 0.10.0
libtpu: 0.0.40
codegen_flags: <defaults>
</compile_context>

<pallas_src>
import jax
import jax.numpy as jnp
from jax.experimental import pallas as pl
from jax.experimental.pallas import tpu as pltpu


def _round_up(x, m):
    return ((x + m - 1) // m) * m


def _tpu_vmem_capacity_bytes():
    """Per-core VMEM capacity, with a conservative (v7x) fallback."""
    try:
        return int(pltpu.get_tpu_info().vmem_capacity_bytes)
    except Exception:
        return 64 * 1024 * 1024


def _hybrid_mf_kernel(ue_ref, ie_ref, uf_ref, w1_ref, b1_ref,
                      wfu_ref, wff_ref, bf_ref, out_ref):
    # user_feature_mlp: Linear -> ReLU  (Dropout is identity at inference).
    feat = jnp.dot(uf_ref[...], w1_ref[...], preferred_element_type=jnp.float32)
    feat = jnp.maximum(feat + b1_ref[...], 0.0)

    # fusion_layer applied to concat([user_emb, user_feat_emb], dim=1),
    # expressed as the sum of two matmuls against the split fusion weight.
    fused = (jnp.dot(ue_ref[...], wfu_ref[...], preferred_element_type=jnp.float32)
             + jnp.dot(feat.astype(wff_ref.dtype), wff_ref[...],
                       preferred_element_type=jnp.float32)
             + bf_ref[...])

    # dot_product = sum(fused * item_emb, dim=1); stored lane-dense as a (1, tile_b)
    # row so the store is a full-width unmasked vst.  (XLU lane-reduce + transpose are
    # off the critical path at these sizes; see TODO above for the large-tile variant.)
    prod = fused * ie_ref[...].astype(jnp.float32)
    out_ref[...] = jnp.sum(prod, axis=1)[None, :]


def hybrid_mf_forward(user_ids, item_ids, user_features, params,
                      *, tile_b=None, compute_dtype=jnp.bfloat16):
    """Returns dot_product of shape (B,), float32."""
    B, F = user_features.shape
    D = params["user_embedding"].shape[1]
    itemsize = jnp.dtype(compute_dtype).itemsize

    # ---- chip-aware VMEM budget & batch-tile sizing ------------------------------
    vmem_cap = _tpu_vmem_capacity_bytes()
    # Leave ~16 MiB headroom for compiler temporaries; never below 32 MiB, never
    # above 100 MiB (v5e/v6e have 128 MiB physical, v7x has 64 MiB per core).
    vmem_limit = max(32 * 1024 * 1024,
                     min(vmem_cap - 16 * 1024 * 1024, 100 * 1024 * 1024))

    weight_bytes = (F * D + 2 * D * D) * itemsize + 2 * D * 4
    # Double-buffered activation tiles (+ f32 output row) per batch row.
    per_row = 2 * ((2 * D + F) * itemsize + 4)

    if tile_b is None:
        budget = int(vmem_limit * 0.6) - 2 * weight_bytes
        cap_rows = max(budget // per_row, 256)
        tile_b = int(min(4096, (cap_rows // 256) * 256))
        tile_b = min(tile_b, _round_up(B, 256))
    # Guard: lane-dense (1, tile_b) output block needs tile_b % 128 == 0 whenever the
    # grid has more than one step; 256-alignment also keeps v7x dual-TC splits even.
    tile_b = max(128, _round_up(int(tile_b), 128))

    Bp = _round_up(B, tile_b)
    n_tiles = Bp // tile_b

    # ---- glue: embedding gathers (data-dependent row lookups) in plain JAX --------
    # Cast is fused into the gather consumer by XLA; no separate pad/cast passes.
    user_emb = jnp.take(params["user_embedding"], user_ids, axis=0).astype(compute_dtype)
    item_emb = jnp.take(params["item_embedding"], item_ids, axis=0).astype(compute_dtype)
    uf = user_features.astype(compute_dtype)

    if Bp != B:  # batch padding only when needed (zero rows are inert; sliced off below)
        pad = ((0, Bp - B), (0, 0))
        user_emb = jnp.pad(user_emb, pad)
        item_emb = jnp.pad(item_emb, pad)
        uf = jnp.pad(uf, pad)

    # Weights pre-transposed to [in, out]; fusion weight split to fold the concat away.
    # Full-extent blocks -> no lane padding needed, DMA'd once and VMEM-resident.
    w1 = params["mlp_w"].T.astype(compute_dtype)          # (F, D)
    wf_t = params["fusion_w"].T                           # (2D, D)
    wfu = wf_t[:D, :].astype(compute_dtype)               # user-emb half   (D, D)
    wff = wf_t[D:, :].astype(compute_dtype)               # feature half    (D, D)
    b1 = params["mlp_b"].reshape(1, D).astype(jnp.float32)
    bf = params["fusion_b"].reshape(1, D).astype(jnp.float32)

    cost = pl.CostEstimate(
        flops=2 * Bp * D * (F + 2 * D) + 2 * Bp * D,
        transcendentals=0,
        bytes_accessed=(Bp * (2 * D + F) * itemsize          # activations
                        + (F * D + 2 * D * D) * itemsize     # weights
                        + 2 * D * 4                          # biases
                        + Bp * 4),                           # output
    )

    grid_spec = pltpu.PrefetchScalarGridSpec(
        num_scalar_prefetch=0,
        grid=(n_tiles,),
        in_specs=[
            pl.BlockSpec((tile_b, D), lambda i: (i, 0)),    # user_emb tile
            pl.BlockSpec((tile_b, D), lambda i: (i, 0)),    # item_emb tile
            pl.BlockSpec((tile_b, F), lambda i: (i, 0)),    # user_features tile
            pl.BlockSpec((F, D), lambda i: (0, 0)),         # mlp weight   (VMEM-resident)
            pl.BlockSpec((1, D), lambda i: (0, 0)),         # mlp bias     (VMEM-resident)
            pl.BlockSpec((D, D), lambda i: (0, 0)),         # fusion W (user half)
            pl.BlockSpec((D, D), lambda i: (0, 0)),         # fusion W (feature half)
            pl.BlockSpec((1, D), lambda i: (0, 0)),         # fusion bias
        ],
        out_specs=pl.BlockSpec((1, tile_b), lambda i: (0, i)),   # lane-dense output row
    )

    out = pl.pallas_call(
        _hybrid_mf_kernel,
        out_shape=jax.ShapeDtypeStruct((1, Bp), jnp.float32),
        grid_spec=grid_spec,
        compiler_params=pltpu.CompilerParams(
            dimension_semantics=("parallel",),   # megacore / v7x dual-TC sharding
            vmem_limit_bytes=int(vmem_limit),    # per-generation VMEM budget
        ),
        cost_estimate=cost,
    )(user_emb, item_emb, uf, w1, b1, wfu, wff, bf)

    return out[0, :B]


def init_params(key, num_users, num_items, user_feature_dim, embedding_dim):
    ks = jax.random.split(key, 6)
    s = 0.1
    return {
        "user_embedding": s * jax.random.normal(ks[0], (num_users, embedding_dim), jnp.float32),
        "item_embedding": s * jax.random.normal(ks[1], (num_items, embedding_dim), jnp.float32),
        "mlp_w":    s * jax.random.normal(ks[2], (embedding_dim, user_feature_dim), jnp.float32),
        "mlp_b":    s * jax.random.normal(ks[3], (embedding_dim,), jnp.float32),
        "fusion_w": s * jax.random.normal(ks[4], (embedding_dim, 2 * embedding_dim), jnp.float32),
        "fusion_b": s * jax.random.normal(ks[5], (embedding_dim,), jnp.float32),
    }


def reference_forward(user_ids, item_ids, user_features, params):
    """Pure-JAX reference matching the PyTorch forward (eval mode)."""
    ue = params["user_embedding"][user_ids]
    ie = params["item_embedding"][item_ids]
    feat = jnp.maximum(user_features @ params["mlp_w"].T + params["mlp_b"], 0.0)
    fused = jnp.concatenate([ue, feat], axis=1) @ params["fusion_w"].T + params["fusion_b"]
    return jnp.sum(fused * ie, axis=1)


if __name__ == "__main__":
    # small, module-consistent shapes
    NUM_USERS, NUM_ITEMS = 32, 64
    USER_FEATURE_DIM = 16
    EMBEDDING_DIM = 32

    key = jax.random.PRNGKey(0)
    k_params, k_uid, k_iid, k_feat = jax.random.split(key, 4)
    params = init_params(k_params, NUM_USERS, NUM_ITEMS, USER_FEATURE_DIM, EMBEDDING_DIM)

    # --- check 1: f32 path, single-tile grid, tight tolerance ---------------------
    B1 = 8
    uid1 = jax.random.randint(k_uid, (B1,), 0, NUM_USERS, dtype=jnp.int32)
    iid1 = jax.random.randint(k_iid, (B1,), 0, NUM_ITEMS, dtype=jnp.int32)
    feat1 = jax.random.normal(k_feat, (B1, USER_FEATURE_DIM), jnp.float32)

    fwd_f32 = jax.jit(lambda u, i, f, p: hybrid_mf_forward(u, i, f, p,
                                                           compute_dtype=jnp.float32))
    out1 = jax.block_until_ready(fwd_f32(uid1, iid1, feat1, params))
    ref1 = reference_forward(uid1, iid1, feat1, params)
    assert out1.shape == (B1,)
    assert jnp.allclose(out1, ref1, atol=1e-4, rtol=1e-4), (out1, ref1)

    # --- check 2: default bf16 path, multi-tile grid + batch padding, loose tol ---
    B2 = 300
    k2 = jax.random.split(jax.random.PRNGKey(1), 3)
    uid2 = jax.random.randint(k2[0], (B2,), 0, NUM_USERS, dtype=jnp.int32)
    iid2 = jax.random.randint(k2[1], (B2,), 0, NUM_ITEMS, dtype=jnp.int32)
    feat2 = jax.random.normal(k2[2], (B2, USER_FEATURE_DIM), jnp.float32)

    fwd_bf16 = jax.jit(lambda u, i, f, p: hybrid_mf_forward(u, i, f, p, tile_b=128))
    out2 = jax.block_until_ready(fwd_bf16(uid2, iid2, feat2, params))
    ref2 = reference_forward(uid2, iid2, feat2, params)
    assert out2.shape == (B2,)
    assert jnp.allclose(out2, ref2, atol=2e-2, rtol=5e-2), (
        float(jnp.max(jnp.abs(out2 - ref2))))

    print("KERNEL_OK")
</pallas_src>

<mosaic_0001>
module attributes {stable_mosaic.version = 11 : i64} {
  func.func @_hybrid_mf_kernel(%arg0: i32, %arg1: memref<256x32xf32, #tpu.memory_space<vmem>>, %arg2: memref<256x32xf32, #tpu.memory_space<vmem>>, %arg3: memref<256x16xf32, #tpu.memory_space<vmem>>, %arg4: memref<16x32xf32, #tpu.memory_space<vmem>>, %arg5: memref<1x32xf32, #tpu.memory_space<vmem>>, %arg6: memref<32x32xf32, #tpu.memory_space<vmem>>, %arg7: memref<32x32xf32, #tpu.memory_space<vmem>>, %arg8: memref<1x32xf32, #tpu.memory_space<vmem>>, %arg9: memref<1x256xf32, #tpu.memory_space<vmem>>) attributes {dimension_semantics = [#tpu.dimension_semantics<parallel>], iteration_bounds = array<i64: 1>, scalar_prefetch = 0 : i64, scratch_operands = 0 : i64, tpu.core_type = #tpu.core_type<tc>, window_params = [{transform_indices = @transform_0, window_bounds = array<i64: 256, 32>}, {transform_indices = @transform_1, window_bounds = array<i64: 256, 32>}, {transform_indices = @transform_2, window_bounds = array<i64: 256, 16>}, {pipeline_mode = #tpu.pipeline_mode<synchronous>, transform_indices = @transform_3, window_bounds = array<i64: 16, 32>}, {pipeline_mode = #tpu.pipeline_mode<synchronous>, transform_indices = @transform_4, window_bounds = array<i64: 1, 32>}, {pipeline_mode = #tpu.pipeline_mode<synchronous>, transform_indices = @transform_5, window_bounds = array<i64: 32, 32>}, {pipeline_mode = #tpu.pipeline_mode<synchronous>, transform_indices = @transform_6, window_bounds = array<i64: 32, 32>}, {pipeline_mode = #tpu.pipeline_mode<synchronous>, transform_indices = @transform_7, window_bounds = array<i64: 1, 32>}, {transform_indices = @transform_8, window_bounds = array<i64: 1, 256>}]} {
    %c0 = arith.constant 0 : index
    %c0_0 = arith.constant 0 : index
    %0 = vector.load %arg3[%c0, %c0_0] : memref<256x16xf32, #tpu.memory_space<vmem>>, vector<256x16xf32>
    %c0_1 = arith.constant 0 : index
    %c0_2 = arith.constant 0 : index
    %1 = vector.load %arg4[%c0_1, %c0_2] : memref<16x32xf32, #tpu.memory_space<vmem>>, vector<16x32xf32>
    %cst = arith.constant dense<0.000000e+00> : vector<256x32xf32>
    %2 = tpu.matmul %0, %1, %cst {dimension_numbers = #tpu.dot_dimension_numbers<[1], [0], [0], [1], [0, 0, 1, 1], [], []>} : vector<256x16xf32>, vector<16x32xf32>, vector<256x32xf32> -> vector<256x32xf32>
    %c0_3 = arith.constant 0 : index
    %c0_4 = arith.constant 0 : index
    %3 = vector.load %arg5[%c0_3, %c0_4] : memref<1x32xf32, #tpu.memory_space<vmem>>, vector<1x32xf32>
    %4 = vector.broadcast %3 : vector<1x32xf32> to vector<256x32xf32>
    %5 = arith.addf %2, %4 : vector<256x32xf32>
    %cst_5 = arith.constant 0.000000e+00 : f32
    %6 = vector.broadcast %cst_5 : f32 to vector<256x32xf32>
    %7 = arith.maximumf %5, %6 : vector<256x32xf32>
    %c0_6 = arith.constant 0 : index
    %c0_7 = arith.constant 0 : index
    %8 = vector.load %arg1[%c0_6, %c0_7] : memref<256x32xf32, #tpu.memory_space<vmem>>, vector<256x32xf32>
    %c0_8 = arith.constant 0 : index
    %c0_9 = arith.constant 0 : index
    %9 = vector.load %arg6[%c0_8, %c0_9] : memref<32x32xf32, #tpu.memory_space<vmem>>, vector<32x32xf32>
    %cst_10 = arith.constant dense<0.000000e+00> : vector<256x32xf32>
    %10 = tpu.matmul %8, %9, %cst_10 {dimension_numbers = #tpu.dot_dimension_numbers<[1], [0], [0], [1], [0, 0, 1, 1], [], []>} : vector<256x32xf32>, vector<32x32xf32>, vector<256x32xf32> -> vector<256x32xf32>
    %c0_11 = arith.constant 0 : index
    %c0_12 = arith.constant 0 : index
    %11 = vector.load %arg7[%c0_11, %c0_12] : memref<32x32xf32, #tpu.memory_space<vmem>>, vector<32x32xf32>
    %cst_13 = arith.constant dense<0.000000e+00> : vector<256x32xf32>
    %12 = tpu.matmul %7, %11, %cst_13 {dimension_numbers = #tpu.dot_dimension_numbers<[1], [0], [0], [1], [0, 0, 1, 1], [], []>} : vector<256x32xf32>, vector<32x32xf32>, vector<256x32xf32> -> vector<256x32xf32>
    %13 = arith.addf %10, %12 : vector<256x32xf32>
    %c0_14 = arith.constant 0 : index
    %c0_15 = arith.constant 0 : index
    %14 = vector.load %arg8[%c0_14, %c0_15] : memref<1x32xf32, #tpu.memory_space<vmem>>, vector<1x32xf32>
    %15 = vector.broadcast %14 : vector<1x32xf32> to vector<256x32xf32>
    %16 = arith.addf %13, %15 : vector<256x32xf32>
    %c0_16 = arith.constant 0 : index
    %c0_17 = arith.constant 0 : index
    %17 = vector.load %arg2[%c0_16, %c0_17] : memref<256x32xf32, #tpu.memory_space<vmem>>, vector<256x32xf32>
    %18 = arith.mulf %16, %17 : vector<256x32xf32>
    %cst_18 = arith.constant dense<0.000000e+00> : vector<256xf32>
    %19 = vector.multi_reduction <add>, %18, %cst_18 [1] : vector<256x32xf32> to vector<256xf32>
    %20 = vector.shape_cast %19 : vector<256xf32> to vector<1x256xf32>
    %c0_19 = arith.constant 0 : index
    %c0_20 = arith.constant 0 : index
    %21 = vector.load %arg9[%c0_19, %c0_20] : memref<1x256xf32, #tpu.memory_space<vmem>>, vector<1x256xf32>
    tpu.vector_store %arg9[%c0_19, %c0_20], %20 {strides = array<i32>} : memref<1x256xf32, #tpu.memory_space<vmem>>, vector<1x256xf32>,
    return
  }
  func.func @transform_0(%arg0: i32) -> (i32, i32) {
    %c0_i32 = arith.constant 0 : i32
    %c0_i32_0 = arith.constant 0 : i32
    return %arg0, %c0_i32 : i32, i32
  }
  func.func @transform_1(%arg0: i32) -> (i32, i32) {
    %c0_i32 = arith.constant 0 : i32
    %c0_i32_0 = arith.constant 0 : i32
    return %arg0, %c0_i32 : i32, i32
  }
  func.func @transform_2(%arg0: i32) -> (i32, i32) {
    %c0_i32 = arith.constant 0 : i32
    %c0_i32_0 = arith.constant 0 : i32
    return %arg0, %c0_i32 : i32, i32
  }
  func.func @transform_3(%arg0: i32) -> (i32, i32) {
    %c0_i32 = arith.constant 0 : i32
    %c0_i32_0 = arith.constant 0 : i32
    %c0_i32_1 = arith.constant 0 : i32
    return %c0_i32, %c0_i32_0 : i32, i32
  }
  func.func @transform_4(%arg0: i32) -> (i32, i32) {
    %c0_i32 = arith.constant 0 : i32
    %c0_i32_0 = arith.constant 0 : i32
    %c0_i32_1 = arith.constant 0 : i32
    return %c0_i32, %c0_i32_0 : i32, i32
  }
  func.func @transform_5(%arg0: i32) -> (i32, i32) {
    %c0_i32 = arith.constant 0 : i32
    %c0_i32_0 = arith.constant 0 : i32
    %c0_i32_1 = arith.constant 0 : i32
    return %c0_i32, %c0_i32_0 : i32, i32
  }
  func.func @transform_6(%arg0: i32) -> (i32, i32) {
    %c0_i32 = arith.constant 0 : i32
    %c0_i32_0 = arith.constant 0 : i32
    %c0_i32_1 = arith.constant 0 : i32
    return %c0_i32, %c0_i32_0 : i32, i32
  }
  func.func @transform_7(%arg0: i32) -> (i32, i32) {
    %c0_i32 = arith.constant 0 : i32
    %c0_i32_0 = arith.constant 0 : i32
    %c0_i32_1 = arith.constant 0 : i32
    return %c0_i32, %c0_i32_0 : i32, i32
  }
  func.func @transform_8(%arg0: i32) -> (i32, i32) {
    %c0_i32 = arith.constant 0 : i32
    %c0_i32_0 = arith.constant 0 : i32
    return %c0_i32, %arg0 : i32, i32
  }
}

</mosaic_0001>

<llo_original>
// kernel: _lambda_.1
$region0: #{_lambda_.1}
  #allocation0 [shape = 'u32[]', space=smem, size = 0x4, offset = 0x4, fixed_abs, tag = 'smem constant byte address 0x4 - core index']
  #allocation1 [shape = 'u32[144,128]{1,0:T(1,128)}', space=vmem, size = 0x12000, scoped, tag = 'internal scratch']
  %s0 = inlined_call_operand.vmem [shape: f32[256,32], index: 0, kind: input, shape index: {}]
  %s1 = inlined_call_operand.vmem [shape: f32[256,32], index: 1, kind: input, shape index: {}]
  %s2 = inlined_call_operand.vmem [shape: f32[256,16], index: 2, kind: input, shape index: {}]
  %s3 = inlined_call_operand.vmem [shape: f32[16,32], index: 3, kind: input, shape index: {}]
  %s4 = inlined_call_operand.vmem [shape: f32[1,32], index: 4, kind: input, shape index: {}]
  %s5 = inlined_call_operand.vmem [shape: f32[32,32], index: 5, kind: input, shape index: {}]
  %s6 = inlined_call_operand.vmem [shape: f32[32,32], index: 6, kind: input, shape index: {}]
  %s7 = inlined_call_operand.vmem [shape: f32[1,32], index: 7, kind: input, shape index: {}]
  %s8 = inlined_call_operand.vmem [shape: f32[1,256], index: 8, kind: output, shape index: {}]
  %s9 = sld [smem:[#allocation0]]
  $region42: #{_lambda_.1} parent=0
    _
  %s11 = ssub.s32 1, %s9
  %s12 = scalar_select 0, %s11, %s9
  // Predicated region
  $region2: #{_lambda_.1} parent=0 // pred_check
    _
  $region3: #{_lambda_.1} parent=0 // pred_check_branch
    %14 = sbr.rel (0) target = $region5
  $region4: #{_lambda_.1} parent=0 // pred_region
    _
  $region5: #{_lambda_.1} parent=0 // pred_fallthru
    _
  // Predicated region
  $region6: #{_lambda_.1} parent=0 // pred_check
    _
  $region7: #{_lambda_.1} parent=0 // pred_check_branch
    %16 = sbr.rel (0) target = $region9
  $region8: #{_lambda_.1} parent=0 // pred_region
    _
  $region9: #{_lambda_.1} parent=0 // pred_fallthru
    _
  // Predicated region
  $region10: #{_lambda_.1} parent=0 // pred_check
    _
  $region11: #{_lambda_.1} parent=0 // pred_check_branch
    %18 = sbr.rel (0) target = $region13
  $region12: #{_lambda_.1} parent=0 // pred_region
    _
  $region13: #{_lambda_.1} parent=0 // pred_fallthru
    _
  // Predicated region
  $region14: #{_lambda_.1} parent=0 // pred_check
    _
  $region15: #{_lambda_.1} parent=0 // pred_check_branch
    %20 = sbr.rel (0) target = $region17
  $region16: #{_lambda_.1} parent=0 // pred_region
    _
  $region17: #{_lambda_.1} parent=0 // pred_fallthru
    _
  // Predicated region
  $region18: #{_lambda_.1} parent=0 // pred_check
    _
  $region19: #{_lambda_.1} parent=0 // pred_check_branch
    %22 = sbr.rel (0) target = $region21
  $region20: #{_lambda_.1} parent=0 // pred_region
    _
  $region21: #{_lambda_.1} parent=0 // pred_fallthru
    _
  // Predicated region
  $region22: #{_lambda_.1} parent=0 // pred_check
    _
  $region23: #{_lambda_.1} parent=0 // pred_check_branch
    %24 = sbr.rel (0) target = $region25
  $region24: #{_lambda_.1} parent=0 // pred_region
    _
  $region25: #{_lambda_.1} parent=0 // pred_fallthru
    _
  // Predicated region
  $region26: #{_lambda_.1} parent=0 // pred_check
    _
  $region27: #{_lambda_.1} parent=0 // pred_check_branch
    %26 = sbr.rel (0) target = $region29
  $region28: #{_lambda_.1} parent=0 // pred_region
    _
  $region29: #{_lambda_.1} parent=0 // pred_fallthru
    _
  // Predicated region
  $region30: #{_lambda_.1} parent=0 // pred_check
    _
  $region31: #{_lambda_.1} parent=0 // pred_check_branch
    %28 = sbr.rel (0) target = $region33
  $region32: #{_lambda_.1} parent=0 // pred_region
    _
  $region33: #{_lambda_.1} parent=0 // pred_fallthru
    _
  %v29 = vld [vmem:[%s2] sm:$0xff]
  %v30 = vld [vmem:[%s2 + $0x8] sm:$0xff]
  %v31 = vld [vmem:[%s2 + $0x10] sm:$0xff]
  %v32 = vld [vmem:[%s2 + $0x18] sm:$0xff]
  %v33 = vld [vmem:[%s2 + $0x20] sm:$0xff]
  %v34 = vld [vmem:[%s2 + $0x28] sm:$0xff]
  %v35 = vld [vmem:[%s2 + $0x30] sm:$0xff]
  %v36 = vld [vmem:[%s2 + $0x38] sm:$0xff]
  %v37 = vld [vmem:[%s2 + $0x40] sm:$0xff]
  %v38 = vld [vmem:[%s2 + $0x48] sm:$0xff]
  %v39 = vld [vmem:[%s2 + $0x50] sm:$0xff]
  %v40 = vld [vmem:[%s2 + $0x58] sm:$0xff]
  %v41 = vld [vmem:[%s2 + $0x60] sm:$0xff]
  %v42 = vld [vmem:[%s2 + $0x68] sm:$0xff]
  %v43 = vld [vmem:[%s2 + $0x70] sm:$0xff]
  %v44 = vld [vmem:[%s2 + $0x78] sm:$0xff]
  %v45 = vld [vmem:[%s2 + $0x80] sm:$0xff]
  %v46 = vld [vmem:[%s2 + $0x88] sm:$0xff]
  %v47 = vld [vmem:[%s2 + $0x90] sm:$0xff]
  %v48 = vld [vmem:[%s2 + $0x98] sm:$0xff]
  %v49 = vld [vmem:[%s2 + $0xa0] sm:$0xff]
  %v50 = vld [vmem:[%s2 + $0xa8] sm:$0xff]
  %v51 = vld [vmem:[%s2 + $0xb0] sm:$0xff]
  %v52 = vld [vmem:[%s2 + $0xb8] sm:$0xff]
  %v53 = vld [vmem:[%s2 + $0xc0] sm:$0xff]
  %v54 = vld [vmem:[%s2 + $0xc8] sm:$0xff]
  %v55 = vld [vmem:[%s2 + $0xd0] sm:$0xff]
  %v56 = vld [vmem:[%s2 + $0xd8] sm:$0xff]
  %v57 = vld [vmem:[%s2 + $0xe0] sm:$0xff]
  %v58 = vld [vmem:[%s2 + $0xe8] sm:$0xff]
  %v59 = vld [vmem:[%s2 + $0xf0] sm:$0xff]
  %v60 = vld [vmem:[%s2 + $0xf8] sm:$0xff]
  %v61 = vld [vmem:[%s3] sm:$0xff]
  %v62 = vld [vmem:[%s3 + $0x8] sm:$0xff]
  %v63 = vld [vmem:[%s4] sm:$0x1]
  %v65 = vlaneseq
  %v66 = vshrl.u32 %v65, 7
  %v67 = vsub.s32 0, %v66
  %v68 = vrot.slane %v63, %v67
  %vm70 = vcmask 130048
  %v72 = vsel %vm70, %v29, 0
  %v75 = vsel %vm70, %v30, 0
  %v78 = vsel %vm70, %v31, 0
  %v81 = vsel %vm70, %v32, 0
  %v84 = vsel %vm70, %v33, 0
  %v87 = vsel %vm70, %v34, 0
  %v90 = vsel %vm70, %v35, 0
  %v93 = vsel %vm70, %v36, 0
  %v96 = vsel %vm70, %v37, 0
  %v99 = vsel %vm70, %v38, 0
  %v102 = vsel %vm70, %v39, 0
  %v105 = vsel %vm70, %v40, 0
  %v108 = vsel %vm70, %v41, 0
  %v111 = vsel %vm70, %v42, 0
  %v114 = vsel %vm70, %v43, 0
  %v117 = vsel %vm70, %v44, 0
  %v120 = vsel %vm70, %v45, 0
  %v123 = vsel %vm70, %v46, 0
  %v126 = vsel %vm70, %v47, 0
  %v129 = vsel %vm70, %v48, 0
  %v132 = vsel %vm70, %v49, 0
  %v135 = vsel %vm70, %v50, 0
  %v138 = vsel %vm70, %v51, 0
  %v141 = vsel %vm70, %v52, 0
  %v144 = vsel %vm70, %v53, 0
  %v147 = vsel %vm70, %v54, 0
  %v150 = vsel %vm70, %v55, 0
  %v153 = vsel %vm70, %v56, 0
  %v156 = vsel %vm70, %v57, 0
  %v159 = vsel %vm70, %v58, 0
  %v162 = vsel %vm70, %v59, 0
  %v165 = vsel %vm70, %v60, 0
  %167 = vmatprep.subr.mxu0 0.0
  %168 = vmatpush1.msra.mxu0 %v61
  %169 = vmatprep.subr.mxu0 0.0
  %170 = vmatpush1.msra.mxu0 %v62
  %171 = vmatprep.subr.mxu0 0.0
  %172 = vmatpush1.msra.mxu0 0.0
  %173 = vmatprep.subr.mxu0 0.0
  %174 = vmatpush1.msra.mxu0 0.0
  %175 = vmatprep.subr.mxu0 0.0
  %176 = vmatpush1.msra.mxu0 0.0
  %177 = vmatprep.subr.mxu0 0.0
  %178 = vmatpush1.msra.mxu0 0.0
  %179 = vmatprep.subr.mxu0 0.0
  %180 = vmatpush1.msra.mxu0 0.0
  %181 = vmatprep.subr.mxu0 0.0
  %182 = vmatpush1.msra.mxu0 0.0
  %183 = vmatprep.subr.mxu0 0.0
  %184 = vmatpush1.msra.mxu0 0.0
  %185 = vmatprep.subr.mxu0 0.0
  %186 = vmatpush1.msra.mxu0 0.0
  %187 = vmatprep.subr.mxu0 0.0
  %188 = vmatpush1.msra.mxu0 0.0
  %189 = vmatprep.subr.mxu0 0.0
  %190 = vmatpush1.msra.mxu0 0.0
  %191 = vmatprep.subr.mxu0 0.0
  %192 = vmatpush1.msra.mxu0 0.0
  %193 = vmatprep.subr.mxu0 0.0
  %194 = vmatpush1.msra.mxu0 0.0
  %195 = vmatprep.subr.mxu0 0.0
  %196 = vmatpush1.msra.mxu0 0.0
  %197 = vmatprep.subr.mxu0 0.0
  %198 = vmatpush1.msra.mxu0 0.0
  %199 = vmatprep.subr.mxu0 0.0
  %200 = vmatpush1.msra.mxu0 0.0
  %201 = vmatprep.subr.mxu0 0.0
  %202 = vmatpush1.msra.mxu0 0.0
  %203 = vmatprep.subr.mxu0 0.0
  %204 = vmatpush1.msra.mxu0 0.0
  %205 = vmatprep.subr.mxu0 0.0
  %206 = vmatpush1.msra.mxu0 0.0
  %207 = vmatprep.subr.mxu0 0.0
  %208 = vmatpush1.msra.mxu0 0.0
  %209 = vmatprep.subr.mxu0 0.0
  %210 = vmatpush1.msra.mxu0 0.0
  %211 = vmatprep.subr.mxu0 0.0
  %212 = vmatpush1.msra.mxu0 0.0
  %213 = vmatprep.subr.mxu0 0.0
  %214 = vmatpush1.msra.mxu0 0.0
  %215 = vmatprep.subr.mxu0 0.0
  %216 = vmatpush1.msra.mxu0 0.0
  %217 = vmatprep.subr.mxu0 0.0
  %218 = vmatpush1.msra.mxu0 0.0
  %219 = vmatprep.subr.mxu0 0.0
  %220 = vmatpush1.msra.mxu0 0.0
  %221 = vmatprep.subr.mxu0 0.0
  %222 = vmatpush1.msra.mxu0 0.0
  %223 = vmatprep.subr.mxu0 0.0
  %224 = vmatpush1.msra.mxu0 0.0
  %225 = vmatprep.subr.mxu0 0.0
  %226 = vmatpush1.msra.mxu0 0.0
  %227 = vmatprep.subr.mxu0 0.0
  %228 = vmatpush1.msra.mxu0 0.0
  %229 = vmatprep.subr.mxu0 0.0
  %230 = vmatpush1.msra.mxu0 0.0
  %231 = vmatprep.mubr.f32.mxu0 0.0
  %232 = vmatmul.mubr.f32.gmra.mrb[0].mxu0 %v72
  %v233 = vpop.f32.mrb[0].mxu0
  %v234 = vadd.f32 %v68, %v233
  %v235 = vpop.f32.mrb[0].mxu0
  %236 = vmatprep.mubr.f32.mxu0 0.0
  %237 = vmatmul.mubr.f32.gmra.mrb[0].mxu0 %v75
  %v238 = vpop.f32.mrb[0].mxu0
  %v239 = vadd.f32 %v68, %v238
  %v240 = vpop.f32.mrb[0].mxu0
  %241 = vmatprep.mubr.f32.mxu0 0.0
  %242 = vmatmul.mubr.f32.gmra.mrb[0].mxu0 %v78
  %v243 = vpop.f32.mrb[0].mxu0
  %v244 = vadd.f32 %v68, %v243
  %v245 = vpop.f32.mrb[0].mxu0
  %246 = vmatprep.mubr.f32.mxu0 0.0
  %247 = vmatmul.mubr.f32.gmra.mrb[0].mxu0 %v81
  %v248 = vpop.f32.mrb[0].mxu0
  %v249 = vadd.f32 %v68, %v248
  %v250 = vpop.f32.mrb[0].mxu0
  %251 = vmatprep.mubr.f32.mxu0 0.0
  %252 = vmatmul.mubr.f32.gmra.mrb[0].mxu0 %v84
  %v253 = vpop.f32.mrb[0].mxu0
  %v254 = vadd.f32 %v68, %v253
  %v255 = vpop.f32.mrb[0].mxu0
  %256 = vmatprep.mubr.f32.mxu0 0.0
  %257 = vmatmul.mubr.f32.gmra.mrb[0].mxu0 %v87
  %v258 = vpop.f32.mrb[0].mxu0
  %v259 = vadd.f32 %v68, %v258
  %v260 = vpop.f32.mrb[0].mxu0
  %261 = vmatprep.mubr.f32.mxu0 0.0
  %262 = vmatmul.mubr.f32.gmra.mrb[0].mxu0 %v90
  %v263 = vpop.f32.mrb[0].mxu0
  %v264 = vadd.f32 %v68, %v263
  %v265 = vpop.f32.mrb[0].mxu0
  %266 = vmatprep.mubr.f32.mxu0 0.0
  %267 = vmatmul.mubr.f32.gmra.mrb[0].mxu0 %v93
  %v268 = vpop.f32.mrb[0].mxu0
  %v269 = vadd.f32 %v68, %v268
  %v270 = vpop.f32.mrb[0].mxu0
  %271 = vmatprep.mubr.f32.mxu0 0.0
  %272 = vmatmul.mubr.f32.gmra.mrb[0].mxu0 %v96
  %v273 = vpop.f32.mrb[0].mxu0
  %v274 = vadd.f32 %v68, %v273
  %v275 = vpop.f32.mrb[0].mxu0
  %276 = vmatprep.mubr.f32.mxu0 0.0
  %277 = vmatmul.mubr.f32.gmra.mrb[0].mxu0 %v99
  %v278 = vpop.f32.mrb[0].mxu0
  %v279 = vadd.f32 %v68, %v278
  %v280 = vpop.f32.mrb[0].mxu0
  %281 = vmatprep.mubr.f32.mxu0 0.0
  %282 = vmatmul.mubr.f32.gmra.mrb[0].mxu0 %v102
  %v283 = vpop.f32.mrb[0].mxu0
  %v284 = vadd.f32 %v68, %v283
  %v285 = vpop.f32.mrb[0].mxu0
  %286 = vmatprep.mubr.f32.mxu0 0.0
  %287 = vmatmul.mubr.f32.gmra.mrb[0].mxu0 %v105
  %v288 = vpop.f32.mrb[0].mxu0
  %v289 = vadd.f32 %v68, %v288
  %v290 = vpop.f32.mrb[0].mxu0
  %291 = vmatprep.mubr.f32.mxu0 0.0
  %292 = vmatmul.mubr.f32.gmra.mrb[0].mxu0 %v108
  %v293 = vpop.f32.mrb[0].mxu0
  %v294 = vadd.f32 %v68, %v293
  %v295 = vpop.f32.mrb[0].mxu0
  %296 = vmatprep.mubr.f32.mxu0 0.0
  %297 = vmatmul.mubr.f32.gmra.mrb[0].mxu0 %v111
  %v298 = vpop.f32.mrb[0].mxu0
  %v299 = vadd.f32 %v68, %v298
  %v300 = vpop.f32.mrb[0].mxu0
  %301 = vmatprep.mubr.f32.mxu0 0.0
  %302 = vmatmul.mubr.f32.gmra.mrb[0].mxu0 %v114
  %v303 = vpop.f32.mrb[0].mxu0
  %v304 = vadd.f32 %v68, %v303
  %v305 = vpop.f32.mrb[0].mxu0
  %306 = vmatprep.mubr.f32.mxu0 0.0
  %307 = vmatmul.mubr.f32.gmra.mrb[0].mxu0 %v117
  %v308 = vpop.f32.mrb[0].mxu0
  %v309 = vadd.f32 %v68, %v308
  %v310 = vpop.f32.mrb[0].mxu0
  %311 = vmatprep.mubr.f32.mxu0 0.0
  %312 = vmatmul.mubr.f32.gmra.mrb[0].mxu0 %v120
  %v313 = vpop.f32.mrb[0].mxu0
  %v314 = vadd.f32 %v68, %v313
  %v315 = vpop.f32.mrb[0].mxu0
  %316 = vmatprep.mubr.f32.mxu0 0.0
  %317 = vmatmul.mubr.f32.gmra.mrb[0].mxu0 %v123
  %v318 = vpop.f32.mrb[0].mxu0
  %v319 = vadd.f32 %v68, %v318
  %v320 = vpop.f32.mrb[0].mxu0
  %321 = vmatprep.mubr.f32.mxu0 0.0
  %322 = vmatmul.mubr.f32.gmra.mrb[0].mxu0 %v126
  %v323 = vpop.f32.mrb[0].mxu0
  %v324 = vadd.f32 %v68, %v323
  %v325 = vpop.f32.mrb[0].mxu0
  %326 = vmatprep.mubr.f32.mxu0 0.0
  %327 = vmatmul.mubr.f32.gmra.mrb[0].mxu0 %v129
  %v328 = vpop.f32.mrb[0].mxu0
  %v329 = vadd.f32 %v68, %v328
  %v330 = vpop.f32.mrb[0].mxu0
  %331 = vmatprep.mubr.f32.mxu0 0.0
  %332 = vmatmul.mubr.f32.gmra.mrb[0].mxu0 %v132
  %v333 = vpop.f32.mrb[0].mxu0
  %v334 = vadd.f32 %v68, %v333
  %v335 = vpop.f32.mrb[0].mxu0
  %336 = vmatprep.mubr.f32.mxu0 0.0
  %337 = vmatmul.mubr.f32.gmra.mrb[0].mxu0 %v135
  %v338 = vpop.f32.mrb[0].mxu0
  %v339 = vadd.f32 %v68, %v338
  %v340 = vpop.f32.mrb[0].mxu0
  %341 = vmatprep.mubr.f32.mxu0 0.0
  %342 = vmatmul.mubr.f32.gmra.mrb[0].mxu0 %v138
  %v343 = vpop.f32.mrb[0].mxu0
  %v344 = vadd.f32 %v68, %v343
  %v345 = vpop.f32.mrb[0].mxu0
  %346 = vmatprep.mubr.f32.mxu0 0.0
  %347 = vmatmul.mubr.f32.gmra.mrb[0].mxu0 %v141
  %v348 = vpop.f32.mrb[0].mxu0
  %v349 = vadd.f32 %v68, %v348
  %v350 = vpop.f32.mrb[0].mxu0
  %351 = vmatprep.mubr.f32.mxu0 0.0
  %352 = vmatmul.mubr.f32.gmra.mrb[0].mxu0 %v144
  %v353 = vpop.f32.mrb[0].mxu0
  %v354 = vadd.f32 %v68, %v353
  %v355 = vpop.f32.mrb[0].mxu0
  %356 = vmatprep.mubr.f32.mxu0 0.0
  %357 = vmatmul.mubr.f32.gmra.mrb[0].mxu0 %v147
  %v358 = vpop.f32.mrb[0].mxu0
  %v359 = vadd.f32 %v68, %v358
  %v360 = vpop.f32.mrb[0].mxu0
  %361 = vmatprep.mubr.f32.mxu0 0.0
  %362 = vmatmul.mubr.f32.gmra.mrb[0].mxu0 %v150
  %v363 = vpop.f32.mrb[0].mxu0
  %v364 = vadd.f32 %v68, %v363
  %v365 = vpop.f32.mrb[0].mxu0
  %366 = vmatprep.mubr.f32.mxu0 0.0
  %367 = vmatmul.mubr.f32.gmra.mrb[0].mxu0 %v153
  %v368 = vpop.f32.mrb[0].mxu0
  %v369 = vadd.f32 %v68, %v368
  %v370 = vpop.f32.mrb[0].mxu0
  %371 = vmatprep.mubr.f32.mxu0 0.0
  %372 = vmatmul.mubr.f32.gmra.mrb[0].mxu0 %v156
  %v373 = vpop.f32.mrb[0].mxu0
  %v374 = vadd.f32 %v68, %v373
  %v375 = vpop.f32.mrb[0].mxu0
  %376 = vmatprep.mubr.f32.mxu0 0.0
  %377 = vmatmul.mubr.f32.gmra.mrb[0].mxu0 %v159
  %v378 = vpop.f32.mrb[0].mxu0
  %v379 = vadd.f32 %v68, %v378
  %v380 = vpop.f32.mrb[0].mxu0
  %381 = vmatprep.mubr.f32.mxu0 0.0
  %382 = vmatmul.mubr.f32.gmra.mrb[0].mxu0 %v162
  %v383 = vpop.f32.mrb[0].mxu0
  %v384 = vadd.f32 %v68, %v383
  %v385 = vpop.f32.mrb[0].mxu0
  %386 = vmatprep.mubr.f32.mxu0 0.0
  %387 = vmatmul.mubr.f32.gmra.mrb[0].mxu0 %v165
  %v388 = vpop.f32.mrb[0].mxu0
  %v389 = vadd.f32 %v68, %v388
  %v390 = vpop.f32.mrb[0].mxu0
  %391 = vdwg.mxu0
  %v392 = vmax.f32 %v234, 0.0
  %v393 = vmax.f32 %v239, 0.0
  %v394 = vmax.f32 %v244, 0.0
  %v395 = vmax.f32 %v249, 0.0
  %v396 = vmax.f32 %v254, 0.0
  %v397 = vmax.f32 %v259, 0.0
  %v398 = vmax.f32 %v264, 0.0
  %v399 = vmax.f32 %v269, 0.0
  %v400 = vmax.f32 %v274, 0.0
  %v401 = vmax.f32 %v279, 0.0
  %v402 = vmax.f32 %v284, 0.0
  %v403 = vmax.f32 %v289, 0.0
  %v404 = vmax.f32 %v294, 0.0
  %v405 = vmax.f32 %v299, 0.0
  %v406 = vmax.f32 %v304, 0.0
  %v407 = vmax.f32 %v309, 0.0
  %v408 = vmax.f32 %v314, 0.0
  %v409 = vmax.f32 %v319, 0.0
  %v410 = vmax.f32 %v324, 0.0
  %v411 = vmax.f32 %v329, 0.0
  %v412 = vmax.f32 %v334, 0.0
  %v413 = vmax.f32 %v339, 0.0
  %v414 = vmax.f32 %v344, 0.0
  %v415 = vmax.f32 %v349, 0.0
  %v416 = vmax.f32 %v354, 0.0
  %v417 = vmax.f32 %v359, 0.0
  %v418 = vmax.f32 %v364, 0.0
  %v419 = vmax.f32 %v369, 0.0
  %v420 = vmax.f32 %v374, 0.0
  %v421 = vmax.f32 %v379, 0.0
  %v422 = vmax.f32 %v384, 0.0
  %v423 = vmax.f32 %v389, 0.0
  %v424 = vld [vmem:[%s0] sm:$0xff]
  %v425 = vld [vmem:[%s0 + $0x8] sm:$0xff]
  %v426 = vld [vmem:[%s0 + $0x10] sm:$0xff]
  %v427 = vld [vmem:[%s0 + $0x18] sm:$0xff]
  %v428 = vld [vmem:[%s0 + $0x20] sm:$0xff]
  %v429 = vld [vmem:[%s0 + $0x28] sm:$0xff]
  %v430 = vld [vmem:[%s0 + $0x30] sm:$0xff]
  %v431 = vld [vmem:[%s0 + $0x38] sm:$0xff]
  %v432 = vld [vmem:[%s0 + $0x40] sm:$0xff]
  %v433 = vld [vmem:[%s0 + $0x48] sm:$0xff]
  %v434 = vld [vmem:[%s0 + $0x50] sm:$0xff]
  %v435 = vld [vmem:[%s0 + $0x58] sm:$0xff]
  %v436 = vld [vmem:[%s0 + $0x60] sm:$0xff]
  %v437 = vld [vmem:[%s0 + $0x68] sm:$0xff]
  %v438 = vld [vmem:[%s0 + $0x70] sm:$0xff]
  %v439 = vld [vmem:[%s0 + $0x78] sm:$0xff]
  %v440 = vld [vmem:[%s0 + $0x80] sm:$0xff]
  %v441 = vld [vmem:[%s0 + $0x88] sm:$0xff]
  %v442 = vld [vmem:[%s0 + $0x90] sm:$0xff]
  %v443 = vld [vmem:[%s0 + $0x98] sm:$0xff]
  %v444 = vld [vmem:[%s0 + $0xa0] sm:$0xff]
  %v445 = vld [vmem:[%s0 + $0xa8] sm:$0xff]
  %v446 = vld [vmem:[%s0 + $0xb0] sm:$0xff]
  %v447 = vld [vmem:[%s0 + $0xb8] sm:$0xff]
  %v448 = vld [vmem:[%s0 + $0xc0] sm:$0xff]
  %v449 = vld [vmem:[%s0 + $0xc8] sm:$0xff]
  %v450 = vld [vmem:[%s0 + $0xd0] sm:$0xff]
  %v451 = vld [vmem:[%s0 + $0xd8] sm:$0xff]
  %v452 = vld [vmem:[%s0 + $0xe0] sm:$0xff]
  %v453 = vld [vmem:[%s0 + $0xe8] sm:$0xff]
  %v454 = vld [vmem:[%s0 + $0xf0] sm:$0xff]
  %v455 = vld [vmem:[%s0 + $0xf8] sm:$0xff]
  %v456 = vld [vmem:[%s5] sm:$0xff]
  %v457 = vld [vmem:[%s5 + $0x8] sm:$0xff]
  %v458 = vld [vmem:[%s5 + $0x10] sm:$0xff]
  %v459 = vld [vmem:[%s5 + $0x18] sm:$0xff]
  %v460 = vld [vmem:[%s6] sm:$0xff]
  %v461 = vld [vmem:[%s6 + $0x8] sm:$0xff]
  %v462 = vld [vmem:[%s6 + $0x10] sm:$0xff]
  %v463 = vld [vmem:[%s6 + $0x18] sm:$0xff]
  %vm464 = vcmask 261120
  %v466 = vsel %vm464, %v392, 0
  %v469 = vsel %vm464, %v393, 0
  %v472 = vsel %vm464, %v394, 0
  %v475 = vsel %vm464, %v395, 0
  %v478 = vsel %vm464, %v396, 0
  %v481 = vsel %vm464, %v397, 0
  %v484 = vsel %vm464, %v398, 0
  %v487 = vsel %vm464, %v399, 0
  %v490 = vsel %vm464, %v400, 0
  %v493 = vsel %vm464, %v401, 0
  %v496 = vsel %vm464, %v402, 0
  %v499 = vsel %vm464, %v403, 0
  %v502 = vsel %vm464, %v404, 0
  %v505 = vsel %vm464, %v405, 0
  %v508 = vsel %vm464, %v406, 0
  %v511 = vsel %vm464, %v407, 0
  %v514 = vsel %vm464, %v408, 0
  %v517 = vsel %vm464, %v409, 0
  %v520 = vsel %vm464, %v410, 0
  %v523 = vsel %vm464, %v411, 0
  %v526 = vsel %vm464, %v412, 0
  %v529 = vsel %vm464, %v413, 0
  %v532 = vsel %vm464, %v414, 0
  %v535 = vsel %vm464, %v415, 0
  %v538 = vsel %vm464, %v416, 0
  %v541 = vsel %vm464, %v417, 0
  %v544 = vsel %vm464, %v418, 0
  %v547 = vsel %vm464, %v419, 0
  %v550 = vsel %vm464, %v420, 0
  %v553 = vsel %vm464, %v421, 0
  %v556 = vsel %vm464, %v422, 0
  %v559 = vsel %vm464, %v423, 0
  %561 = vmatprep.subr.mxu0 0.0
  %562 = vmatpush1.msra.mxu0 %v460
  %563 = vmatprep.subr.mxu0 0.0
  %564 = vmatpush1.msra.mxu0 %v461
  %565 = vmatprep.subr.mxu0 0.0
  %566 = vmatpush1.msra.mxu0 %v462
  %567 = vmatprep.subr.mxu0 0.0
  %568 = vmatpush1.msra.mxu0 %v463
  %569 = vmatprep.subr.mxu0 0.0
  %570 = vmatpush1.msra.mxu0 0.0
  %571 = vmatprep.subr.mxu0 0.0
  %572 = vmatpush1.msra.mxu0 0.0
  %573 = vmatprep.subr.mxu0 0.0
  %574 = vmatpush1.msra.mxu0 0.0
  %575 = vmatprep.subr.mxu0 0.0
  %576 = vmatpush1.msra.mxu0 0.0
  %577 = vmatprep.subr.mxu0 0.0
  %578 = vmatpush1.msra.mxu0 0.0
  %579 = vmatprep.subr.mxu0 0.0
  %580 = vmatpush1.msra.mxu0 0.0
  %581 = vmatprep.subr.mxu0 0.0
  %582 = vmatpush1.msra.mxu0 0.0
  %583 = vmatprep.subr.mxu0 0.0
  %584 = vmatpush1.msra.mxu0 0.0
  %585 = vmatprep.subr.mxu0 0.0
  %586 = vmatpush1.msra.mxu0 0.0
  %587 = vmatprep.subr.mxu0 0.0
  %588 = vmatpush1.msra.mxu0 0.0
  %589 = vmatprep.subr.mxu0 0.0
  %590 = vmatpush1.msra.mxu0 0.0
  %591 = vmatprep.subr.mxu0 0.0
  %592 = vmatpush1.msra.mxu0 0.0
  %593 = vmatprep.subr.mxu0 0.0
  %594 = vmatpush1.msra.mxu0 0.0
  %595 = vmatprep.subr.mxu0 0.0
  %596 = vmatpush1.msra.mxu0 0.0
  %597 = vmatprep.subr.mxu0 0.0
  %598 = vmatpush1.msra.mxu0 0.0
  %599 = vmatprep.subr.mxu0 0.0
  %600 = vmatpush1.msra.mxu0 0.0
  %601 = vmatprep.subr.mxu0 0.0
  %602 = vmatpush1.msra.mxu0 0.0
  %603 = vmatprep.subr.mxu0 0.0
  %604 = vmatpush1.msra.mxu0 0.0
  %605 = vmatprep.subr.mxu0 0.0
  %606 = vmatpush1.msra.mxu0 0.0
  %607 = vmatprep.subr.mxu0 0.0
  %608 = vmatpush1.msra.mxu0 0.0
  %609 = vmatprep.subr.mxu0 0.0
  %610 = vmatpush1.msra.mxu0 0.0
  %611 = vmatprep.subr.mxu0 0.0
  %612 = vmatpush1.msra.mxu0 0.0
  %613 = vmatprep.subr.mxu0 0.0
  %614 = vmatpush1.msra.mxu0 0.0
  %615 = vmatprep.subr.mxu0 0.0
  %616 = vmatpush1.msra.mxu0 0.0
  %617 = vmatprep.subr.mxu0 0.0
  %618 = vmatpush1.msra.mxu0 0.0
  %619 = vmatprep.subr.mxu0 0.0
  %620 = vmatpush1.msra.mxu0 0.0
  %621 = vmatprep.subr.mxu0 0.0
  %622 = vmatpush1.msra.mxu0 0.0
  %623 = vmatprep.subr.mxu0 0.0
  %624 = vmatpush1.msra.mxu0 0.0
  %625 = vmatprep.mubr.f32.mxu0 0.0
  %626 = vmatmul.mubr.f32.gmra.mrb[0].mxu0 %v466
  %v627 = vpop.f32.mrb[0].mxu0
  %v628 = vadd.f32 0.0, %v627
  %v629 = vpop.f32.mrb[0].mxu0
  %630 = vmatprep.mubr.f32.mxu0 0.0
  %631 = vmatmul.mubr.f32.gmra.mrb[0].mxu0 %v469
  %v632 = vpop.f32.mrb[0].mxu0
  %v633 = vadd.f32 0.0, %v632
  %v634 = vpop.f32.mrb[0].mxu0
  %635 = vmatprep.mubr.f32.mxu0 0.0
  %636 = vmatmul.mubr.f32.gmra.mrb[0].mxu0 %v472
  %v637 = vpop.f32.mrb[0].mxu0
  %v638 = vadd.f32 0.0, %v637
  %v639 = vpop.f32.mrb[0].mxu0
  %640 = vmatprep.mubr.f32.mxu0 0.0
  %641 = vmatmul.mubr.f32.gmra.mrb[0].mxu0 %v475
  %v642 = vpop.f32.mrb[0].mxu0
  %v643 = vadd.f32 0.0, %v642
  %v644 = vpop.f32.mrb[0].mxu0
  %645 = vmatprep.mubr.f32.mxu0 0.0
  %646 = vmatmul.mubr.f32.gmra.mrb[0].mxu0 %v478
  %v647 = vpop.f32.mrb[0].mxu0
  %v648 = vadd.f32 0.0, %v647
  %v649 = vpop.f32.mrb[0].mxu0
  %650 = vmatprep.mubr.f32.mxu0 0.0
  %651 = vmatmul.mubr.f32.gmra.mrb[0].mxu0 %v481
  %v652 = vpop.f32.mrb[0].mxu0
  %v653 = vadd.f32 0.0, %v652
  %v654 = vpop.f32.mrb[0].mxu0
  %655 = vmatprep.mubr.f32.mxu0 0.0
  %656 = vmatmul.mubr.f32.gmra.mrb[0].mxu0 %v484
  %v657 = vpop.f32.mrb[0].mxu0
  %v658 = vadd.f32 0.0, %v657
  %v659 = vpop.f32.mrb[0].mxu0
  %660 = vmatprep.mubr.f32.mxu0 0.0
  %661 = vmatmul.mubr.f32.gmra.mrb[0].mxu0 %v487
  %v662 = vpop.f32.mrb[0].mxu0
  %v663 = vadd.f32 0.0, %v662
  %v664 = vpop.f32.mrb[0].mxu0
  %665 = vmatprep.mubr.f32.mxu0 0.0
  %666 = vmatmul.mubr.f32.gmra.mrb[0].mxu0 %v490
  %v667 = vpop.f32.mrb[0].mxu0
  %v668 = vadd.f32 0.0, %v667
  %v669 = vpop.f32.mrb[0].mxu0
  %670 = vmatprep.mubr.f32.mxu0 0.0
  %671 = vmatmul.mubr.f32.gmra.mrb[0].mxu0 %v493
  %v672 = vpop.f32.mrb[0].mxu0
  %v673 = vadd.f32 0.0, %v672
  %v674 = vpop.f32.mrb[0].mxu0
  %675 = vmatprep.mubr.f32.mxu0 0.0
  %676 = vmatmul.mubr.f32.gmra.mrb[0].mxu0 %v496
  %v677 = vpop.f32.mrb[0].mxu0
  %v678 = vadd.f32 0.0, %v677
  %v679 = vpop.f32.mrb[0].mxu0
  %680 = vmatprep.mubr.f32.mxu0 0.0
  %681 = vmatmul.mubr.f32.gmra.mrb[0].mxu0 %v499
  %v682 = vpop.f32.mrb[0].mxu0
  %v683 = vadd.f32 0.0, %v682
  %v684 = vpop.f32.mrb[0].mxu0
  %685 = vmatprep.mubr.f32.mxu0 0.0
  %686 = vmatmul.mubr.f32.gmra.mrb[0].mxu0 %v502
  %v687 = vpop.f32.mrb[0].mxu0
  %v688 = vadd.f32 0.0, %v687
  %v689 = vpop.f32.mrb[0].mxu0
  %690 = vmatprep.mubr.f32.mxu0 0.0
  %691 = vmatmul.mubr.f32.gmra.mrb[0].mxu0 %v505
  %v692 = vpop.f32.mrb[0].mxu0
  %v693 = vadd.f32 0.0, %v692
  %v694 = vpop.f32.mrb[0].mxu0
  %695 = vmatprep.mubr.f32.mxu0 0.0
  %696 = vmatmul.mubr.f32.gmra.mrb[0].mxu0 %v508
  %v697 = vpop.f32.mrb[0].mxu0
  %v698 = vadd.f32 0.0, %v697
  %v699 = vpop.f32.mrb[0].mxu0
  %700 = vmatprep.mubr.f32.mxu0 0.0
  %701 = vmatmul.mubr.f32.gmra.mrb[0].mxu0 %v511
  %v702 = vpop.f32.mrb[0].mxu0
  %v703 = vadd.f32 0.0, %v702
  %v704 = vpop.f32.mrb[0].mxu0
  %705 = vmatprep.mubr.f32.mxu0 0.0
  %706 = vmatmul.mubr.f32.gmra.mrb[0].mxu0 %v514
  %v707 = vpop.f32.mrb[0].mxu0
  %v708 = vadd.f32 0.0, %v707
  %v709 = vpop.f32.mrb[0].mxu0
  %710 = vmatprep.mubr.f32.mxu0 0.0
  %711 = vmatmul.mubr.f32.gmra.mrb[0].mxu0 %v517
  %v712 = vpop.f32.mrb[0].mxu0
  %v713 = vadd.f32 0.0, %v712
  %v714 = vpop.f32.mrb[0].mxu0
  %715 = vmatprep.mubr.f32.mxu0 0.0
  %716 = vmatmul.mubr.f32.gmra.mrb[0].mxu0 %v520
  %v717 = vpop.f32.mrb[0].mxu0
  %v718 = vadd.f32 0.0, %v717
  %v719 = vpop.f32.mrb[0].mxu0
  %720 = vmatprep.mubr.f32.mxu0 0.0
  %721 = vmatmul.mubr.f32.gmra.mrb[0].mxu0 %v523
  %v722 = vpop.f32.mrb[0].mxu0
  %v723 = vadd.f32 0.0, %v722
  %v724 = vpop.f32.mrb[0].mxu0
  %725 = vmatprep.mubr.f32.mxu0 0.0
  %726 = vmatmul.mubr.f32.gmra.mrb[0].mxu0 %v526
  %v727 = vpop.f32.mrb[0].mxu0
  %v728 = vadd.f32 0.0, %v727
  %v729 = vpop.f32.mrb[0].mxu0
  %730 = vmatprep.mubr.f32.mxu0 0.0
  %731 = vmatmul.mubr.f32.gmra.mrb[0].mxu0 %v529
  %v732 = vpop.f32.mrb[0].mxu0
  %v733 = vadd.f32 0.0, %v732
  %v734 = vpop.f32.mrb[0].mxu0
  %735 = vmatprep.mubr.f32.mxu0 0.0
  %736 = vmatmul.mubr.f32.gmra.mrb[0].mxu0 %v532
  %v737 = vpop.f32.mrb[0].mxu0
  %v738 = vadd.f32 0.0, %v737
  %v739 = vpop.f32.mrb[0].mxu0
  %740 = vmatprep.mubr.f32.mxu0 0.0
  %741 = vmatmul.mubr.f32.gmra.mrb[0].mxu0 %v535
  %v742 = vpop.f32.mrb[0].mxu0
  %v743 = vadd.f32 0.0, %v742
  %v744 = vpop.f32.mrb[0].mxu0
  %745 = vmatprep.mubr.f32.mxu0 0.0
  %746 = vmatmul.mubr.f32.gmra.mrb[0].mxu0 %v538
  %v747 = vpop.f32.mrb[0].mxu0
  %v748 = vadd.f32 0.0, %v747
  %v749 = vpop.f32.mrb[0].mxu0
  %750 = vmatprep.mubr.f32.mxu0 0.0
  %751 = vmatmul.mubr.f32.gmra.mrb[0].mxu0 %v541
  %v752 = vpop.f32.mrb[0].mxu0
  %v753 = vadd.f32 0.0, %v752
  %v754 = vpop.f32.mrb[0].mxu0
  %755 = vmatprep.mubr.f32.mxu0 0.0
  %756 = vmatmul.mubr.f32.gmra.mrb[0].mxu0 %v544
  %v757 = vpop.f32.mrb[0].mxu0
  %v758 = vadd.f32 0.0, %v757
  %v759 = vpop.f32.mrb[0].mxu0
  %760 = vmatprep.mubr.f32.mxu0 0.0
  %761 = vmatmul.mubr.f32.gmra.mrb[0].mxu0 %v547
  %v762 = vpop.f32.mrb[0].mxu0
  %v763 = vadd.f32 0.0, %v762
  %v764 = vpop.f32.mrb[0].mxu0
  %765 = vmatprep.mubr.f32.mxu0 0.0
  %766 = vmatmul.mubr.f32.gmra.mrb[0].mxu0 %v550
  %v767 = vpop.f32.mrb[0].mxu0
  %v768 = vadd.f32 0.0, %v767
  %v769 = vpop.f32.mrb[0].mxu0
  %770 = vmatprep.mubr.f32.mxu0 0.0
  %771 = vmatmul.mubr.f32.gmra.mrb[0].mxu0 %v553
  %v772 = vpop.f32.mrb[0].mxu0
  %v773 = vadd.f32 0.0, %v772
  %v774 = vpop.f32.mrb[0].mxu0
  %775 = vmatprep.mubr.f32.mxu0 0.0
  %776 = vmatmul.mubr.f32.gmra.mrb[0].mxu0 %v556
  %v777 = vpop.f32.mrb[0].mxu0
  %v778 = vadd.f32 0.0, %v777
  %v779 = vpop.f32.mrb[0].mxu0
  %780 = vmatprep.mubr.f32.mxu0 0.0
  %781 = vmatmul.mubr.f32.gmra.mrb[0].mxu0 %v559
  %v782 = vpop.f32.mrb[0].mxu0
  %v783 = vadd.f32 0.0, %v782
  %v784 = vpop.f32.mrb[0].mxu0
  %785 = vdwg.mxu0
  %v787 = vsel %vm464, %v424, 0
  %v790 = vsel %vm464, %v425, 0
  %v793 = vsel %vm464, %v426, 0
  %v796 = vsel %vm464, %v427, 0
  %v799 = vsel %vm464, %v428, 0
  %v802 = vsel %vm464, %v429, 0
  %v805 = vsel %vm464, %v430, 0
  %v808 = vsel %vm464, %v431, 0
  %v811 = vsel %vm464, %v432, 0
  %v814 = vsel %vm464, %v433, 0
  %v817 = vsel %vm464, %v434, 0
  %v820 = vsel %vm464, %v435, 0
  %v823 = vsel %vm464, %v436, 0
  %v826 = vsel %vm464, %v437, 0
  %v829 = vsel %vm464, %v438, 0
  %v832 = vsel %vm464, %v439, 0
  %v835 = vsel %vm464, %v440, 0
  %v838 = vsel %vm464, %v441, 0
  %v841 = vsel %vm464, %v442, 0
  %v844 = vsel %vm464, %v443, 0
  %v847 = vsel %vm464, %v444, 0
  %v850 = vsel %vm464, %v445, 0
  %v853 = vsel %vm464, %v446, 0
  %v856 = vsel %vm464, %v447, 0
  %v859 = vsel %vm464, %v448, 0
  %v862 = vsel %vm464, %v449, 0
  %v865 = vsel %vm464, %v450, 0
  %v868 = vsel %vm464, %v451, 0
  %v871 = vsel %vm464, %v452, 0
  %v874 = vsel %vm464, %v453, 0
  %v877 = vsel %vm464, %v454, 0
  %v880 = vsel %vm464, %v455, 0
  %882 = vmatprep.subr.mxu0 0.0
  %883 = vmatpush1.msra.mxu0 %v456
  %884 = vmatprep.subr.mxu0 0.0
  %885 = vmatpush1.msra.mxu0 %v457
  %886 = vmatprep.subr.mxu0 0.0
  %887 = vmatpush1.msra.mxu0 %v458
  %888 = vmatprep.subr.mxu0 0.0
  %889 = vmatpush1.msra.mxu0 %v459
  %890 = vmatprep.subr.mxu0 0.0
  %891 = vmatpush1.msra.mxu0 0.0
  %892 = vmatprep.subr.mxu0 0.0
  %893 = vmatpush1.msra.mxu0 0.0
  %894 = vmatprep.subr.mxu0 0.0
  %895 = vmatpush1.msra.mxu0 0.0
  %896 = vmatprep.subr.mxu0 0.0
  %897 = vmatpush1.msra.mxu0 0.0
  %898 = vmatprep.subr.mxu0 0.0
  %899 = vmatpush1.msra.mxu0 0.0
  %900 = vmatprep.subr.mxu0 0.0
  %901 = vmatpush1.msra.mxu0 0.0
  %902 = vmatprep.subr.mxu0 0.0
  %903 = vmatpush1.msra.mxu0 0.0
  %904 = vmatprep.subr.mxu0 0.0
  %905 = vmatpush1.msra.mxu0 0.0
  %906 = vmatprep.subr.mxu0 0.0
  %907 = vmatpush1.msra.mxu0 0.0
  %908 = vmatprep.subr.mxu0 0.0
  %909 = vmatpush1.msra.mxu0 0.0
  %910 = vmatprep.subr.mxu0 0.0
  %911 = vmatpush1.msra.mxu0 0.0
  %912 = vmatprep.subr.mxu0 0.0
  %913 = vmatpush1.msra.mxu0 0.0
  %914 = vmatprep.subr.mxu0 0.0
  %915 = vmatpush1.msra.mxu0 0.0
  %916 = vmatprep.subr.mxu0 0.0
  %917 = vmatpush1.msra.mxu0 0.0
  %918 = vmatprep.subr.mxu0 0.0
  %919 = vmatpush1.msra.mxu0 0.0
  %920 = vmatprep.subr.mxu0 0.0
  %921 = vmatpush1.msra.mxu0 0.0
  %922 = vmatprep.subr.mxu0 0.0
  %923 = vmatpush1.msra.mxu0 0.0
  %924 = vmatprep.subr.mxu0 0.0
  %925 = vmatpush1.msra.mxu0 0.0
  %926 = vmatprep.subr.mxu0 0.0
  %927 = vmatpush1.msra.mxu0 0.0
  %928 = vmatprep.subr.mxu0 0.0
  %929 = vmatpush1.msra.mxu0 0.0
  %930 = vmatprep.subr.mxu0 0.0
  %931 = vmatpush1.msra.mxu0 0.0
  %932 = vmatprep.subr.mxu0 0.0
  %933 = vmatpush1.msra.mxu0 0.0
  %934 = vmatprep.subr.mxu0 0.0
  %935 = vmatpush1.msra.mxu0 0.0
  %936 = vmatprep.subr.mxu0 0.0
  %937 = vmatpush1.msra.mxu0 0.0
  %938 = vmatprep.subr.mxu0 0.0
  %939 = vmatpush1.msra.mxu0 0.0
  %940 = vmatprep.subr.mxu0 0.0
  %941 = vmatpush1.msra.mxu0 0.0
  %942 = vmatprep.subr.mxu0 0.0
  %943 = vmatpush1.msra.mxu0 0.0
  %944 = vmatprep.subr.mxu0 0.0
  %945 = vmatpush1.msra.mxu0 0.0
  %946 = vmatprep.mubr.f32.mxu0 0.0
  %947 = vmatmul.mubr.f32.gmra.mrb[0].mxu0 %v787
  %v948 = vpop.f32.mrb[0].mxu0
  %v949 = vadd.f32 %v628, %v948
  %v950 = vpop.f32.mrb[0].mxu0
  %951 = vmatprep.mubr.f32.mxu0 0.0
  %952 = vmatmul.mubr.f32.gmra.mrb[0].mxu0 %v790
  %v953 = vpop.f32.mrb[0].mxu0
  %v954 = vadd.f32 %v633, %v953
  %v955 = vpop.f32.mrb[0].mxu0
  %956 = vmatprep.mubr.f32.mxu0 0.0
  %957 = vmatmul.mubr.f32.gmra.mrb[0].mxu0 %v793
  %v958 = vpop.f32.mrb[0].mxu0
  %v959 = vadd.f32 %v638, %v958
  %v960 = vpop.f32.mrb[0].mxu0
  %961 = vmatprep.mubr.f32.mxu0 0.0
  %962 = vmatmul.mubr.f32.gmra.mrb[0].mxu0 %v796
  %v963 = vpop.f32.mrb[0].mxu0
  %v964 = vadd.f32 %v643, %v963
  %v965 = vpop.f32.mrb[0].mxu0
  %966 = vmatprep.mubr.f32.mxu0 0.0
  %967 = vmatmul.mubr.f32.gmra.mrb[0].mxu0 %v799
  %v968 = vpop.f32.mrb[0].mxu0
  %v969 = vadd.f32 %v648, %v968
  %v970 = vpop.f32.mrb[0].mxu0
  %971 = vmatprep.mubr.f32.mxu0 0.0
  %972 = vmatmul.mubr.f32.gmra.mrb[0].mxu0 %v802
  %v973 = vpop.f32.mrb[0].mxu0
  %v974 = vadd.f32 %v653, %v973
  %v975 = vpop.f32.mrb[0].mxu0
  %976 = vmatprep.mubr.f32.mxu0 0.0
  %977 = vmatmul.mubr.f32.gmra.mrb[0].mxu0 %v805
  %v978 = vpop.f32.mrb[0].mxu0
  %v979 = vadd.f32 %v658, %v978
  %v980 = vpop.f32.mrb[0].mxu0
  %981 = vmatprep.mubr.f32.mxu0 0.0
  %982 = vmatmul.mubr.f32.gmra.mrb[0].mxu0 %v808
  %v983 = vpop.f32.mrb[0].mxu0
  %v984 = vadd.f32 %v663, %v983
  %v985 = vpop.f32.mrb[0].mxu0
  %986 = vmatprep.mubr.f32.mxu0 0.0
  %987 = vmatmul.mubr.f32.gmra.mrb[0].mxu0 %v811
  %v988 = vpop.f32.mrb[0].mxu0
  %v989 = vadd.f32 %v668, %v988
  %v990 = vpop.f32.mrb[0].mxu0
  %991 = vmatprep.mubr.f32.mxu0 0.0
  %992 = vmatmul.mubr.f32.gmra.mrb[0].mxu0 %v814
  %v993 = vpop.f32.mrb[0].mxu0
  %v994 = vadd.f32 %v673, %v993
  %v995 = vpop.f32.mrb[0].mxu0
  %996 = vmatprep.mubr.f32.mxu0 0.0
  %997 = vmatmul.mubr.f32.gmra.mrb[0].mxu0 %v817
  %v998 = vpop.f32.mrb[0].mxu0
  %v999 = vadd.f32 %v678, %v998
  %v1000 = vpop.f32.mrb[0].mxu0
  %1001 = vmatprep.mubr.f32.mxu0 0.0
  %1002 = vmatmul.mubr.f32.gmra.mrb[0].mxu0 %v820
  %v1003 = vpop.f32.mrb[0].mxu0
  %v1004 = vadd.f32 %v683, %v1003
  %v1005 = vpop.f32.mrb[0].mxu0
  %1006 = vmatprep.mubr.f32.mxu0 0.0
  %1007 = vmatmul.mubr.f32.gmra.mrb[0].mxu0 %v823
  %v1008 = vpop.f32.mrb[0].mxu0
  %v1009 = vadd.f32 %v688, %v1008
  %v1010 = vpop.f32.mrb[0].mxu0
  %1011 = vmatprep.mubr.f32.mxu0 0.0
  %1012 = vmatmul.mubr.f32.gmra.mrb[0].mxu0 %v826
  %v1013 = vpop.f32.mrb[0].mxu0
  %v1014 = vadd.f32 %v693, %v1013
  %v1015 = vpop.f32.mrb[0].mxu0
  %1016 = vmatprep.mubr.f32.mxu0 0.0
  %1017 = vmatmul.mubr.f32.gmra.mrb[0].mxu0 %v829
  %v1018 = vpop.f32.mrb[0].mxu0
  %v1019 = vadd.f32 %v698, %v1018
  %v1020 = vpop.f32.mrb[0].mxu0
  %1021 = vmatprep.mubr.f32.mxu0 0.0
  %1022 = vmatmul.mubr.f32.gmra.mrb[0].mxu0 %v832
  %v1023 = vpop.f32.mrb[0].mxu0
  %v1024 = vadd.f32 %v703, %v1023
  %v1025 = vpop.f32.mrb[0].mxu0
  %1026 = vmatprep.mubr.f32.mxu0 0.0
  %1027 = vmatmul.mubr.f32.gmra.mrb[0].mxu0 %v835
  %v1028 = vpop.f32.mrb[0].mxu0
  %v1029 = vadd.f32 %v708, %v1028
  %v1030 = vpop.f32.mrb[0].mxu0
  %1031 = vmatprep.mubr.f32.mxu0 0.0
  %1032 = vmatmul.mubr.f32.gmra.mrb[0].mxu0 %v838
  %v1033 = vpop.f32.mrb[0].mxu0
  %v1034 = vadd.f32 %v713, %v1033
  %v1035 = vpop.f32.mrb[0].mxu0
  %1036 = vmatprep.mubr.f32.mxu0 0.0
  %1037 = vmatmul.mubr.f32.gmra.mrb[0].mxu0 %v841
  %v1038 = vpop.f32.mrb[0].mxu0
  %v1039 = vadd.f32 %v718, %v1038
  %v1040 = vpop.f32.mrb[0].mxu0
  %1041 = vmatprep.mubr.f32.mxu0 0.0
  %1042 = vmatmul.mubr.f32.gmra.mrb[0].mxu0 %v844
  %v1043 = vpop.f32.mrb[0].mxu0
  %v1044 = vadd.f32 %v723, %v1043
  %v1045 = vpop.f32.mrb[0].mxu0
  %1046 = vmatprep.mubr.f32.mxu0 0.0
  %1047 = vmatmul.mubr.f32.gmra.mrb[0].mxu0 %v847
  %v1048 = vpop.f32.mrb[0].mxu0
  %v1049 = vadd.f32 %v728, %v1048
  %v1050 = vpop.f32.mrb[0].mxu0
  %1051 = vmatprep.mubr.f32.mxu0 0.0
  %1052 = vmatmul.mubr.f32.gmra.mrb[0].mxu0 %v850
  %v1053 = vpop.f32.mrb[0].mxu0
  %v1054 = vadd.f32 %v733, %v1053
  %v1055 = vpop.f32.mrb[0].mxu0
  %1056 = vmatprep.mubr.f32.mxu0 0.0
  %1057 = vmatmul.mubr.f32.gmra.mrb[0].mxu0 %v853
  %v1058 = vpop.f32.mrb[0].mxu0
  %v1059 = vadd.f32 %v738, %v1058
  %v1060 = vpop.f32.mrb[0].mxu0
  %1061 = vmatprep.mubr.f32.mxu0 0.0
  %1062 = vmatmul.mubr.f32.gmra.mrb[0].mxu0 %v856
  %v1063 = vpop.f32.mrb[0].mxu0
  %v1064 = vadd.f32 %v743, %v1063
  %v1065 = vpop.f32.mrb[0].mxu0
  %1066 = vmatprep.mubr.f32.mxu0 0.0
  %1067 = vmatmul.mubr.f32.gmra.mrb[0].mxu0 %v859
  %v1068 = vpop.f32.mrb[0].mxu0
  %v1069 = vadd.f32 %v748, %v1068
  %v1070 = vpop.f32.mrb[0].mxu0
  %1071 = vmatprep.mubr.f32.mxu0 0.0
  %1072 = vmatmul.mubr.f32.gmra.mrb[0].mxu0 %v862
  %v1073 = vpop.f32.mrb[0].mxu0
  %v1074 = vadd.f32 %v753, %v1073
  %v1075 = vpop.f32.mrb[0].mxu0
  %1076 = vmatprep.mubr.f32.mxu0 0.0
  %1077 = vmatmul.mubr.f32.gmra.mrb[0].mxu0 %v865
  %v1078 = vpop.f32.mrb[0].mxu0
  %v1079 = vadd.f32 %v758, %v1078
  %v1080 = vpop.f32.mrb[0].mxu0
  %1081 = vmatprep.mubr.f32.mxu0 0.0
  %1082 = vmatmul.mubr.f32.gmra.mrb[0].mxu0 %v868
  %v1083 = vpop.f32.mrb[0].mxu0
  %v1084 = vadd.f32 %v763, %v1083
  %v1085 = vpop.f32.mrb[0].mxu0
  %1086 = vmatprep.mubr.f32.mxu0 0.0
  %1087 = vmatmul.mubr.f32.gmra.mrb[0].mxu0 %v871
  %v1088 = vpop.f32.mrb[0].mxu0
  %v1089 = vadd.f32 %v768, %v1088
  %v1090 = vpop.f32.mrb[0].mxu0
  %1091 = vmatprep.mubr.f32.mxu0 0.0
  %1092 = vmatmul.mubr.f32.gmra.mrb[0].mxu0 %v874
  %v1093 = vpop.f32.mrb[0].mxu0
  %v1094 = vadd.f32 %v773, %v1093
  %v1095 = vpop.f32.mrb[0].mxu0
  %1096 = vmatprep.mubr.f32.mxu0 0.0
  %1097 = vmatmul.mubr.f32.gmra.mrb[0].mxu0 %v877
  %v1098 = vpop.f32.mrb[0].mxu0
  %v1099 = vadd.f32 %v778, %v1098
  %v1100 = vpop.f32.mrb[0].mxu0
  %1101 = vmatprep.mubr.f32.mxu0 0.0
  %1102 = vmatmul.mubr.f32.gmra.mrb[0].mxu0 %v880
  %v1103 = vpop.f32.mrb[0].mxu0
  %v1104 = vadd.f32 %v783, %v1103
  %v1105 = vpop.f32.mrb[0].mxu0
  %1106 = vdwg.mxu0
  %v1107 = vld [vmem:[%s7] sm:$0x1]
  %v1109 = vlaneseq
  %v1110 = vshrl.u32 %v1109, 7
  %v1111 = vsub.s32 0, %v1110
  %v1112 = vrot.slane %v1107, %v1111
  %v1114 = vadd.f32 %v949, %v1112
  %v1115 = vadd.f32 %v954, %v1112
  %v1116 = vadd.f32 %v959, %v1112
  %v1117 = vadd.f32 %v964, %v1112
  %v1118 = vadd.f32 %v969, %v1112
  %v1119 = vadd.f32 %v974, %v1112
  %v1120 = vadd.f32 %v979, %v1112
  %v1121 = vadd.f32 %v984, %v1112
  %v1122 = vadd.f32 %v989, %v1112
  %v1123 = vadd.f32 %v994, %v1112
  %v1124 = vadd.f32 %v999, %v1112
  %v1125 = vadd.f32 %v1004, %v1112
  %v1126 = vadd.f32 %v1009, %v1112
  %v1127 = vadd.f32 %v1014, %v1112
  %v1128 = vadd.f32 %v1019, %v1112
  %v1129 = vadd.f32 %v1024, %v1112
  %v1130 = vadd.f32 %v1029, %v1112
  %v1131 = vadd.f32 %v1034, %v1112
  %v1132 = vadd.f32 %v1039, %v1112
  %v1133 = vadd.f32 %v1044, %v1112
  %v1134 = vadd.f32 %v1049, %v1112
  %v1135 = vadd.f32 %v1054, %v1112
  %v1136 = vadd.f32 %v1059, %v1112
  %v1137 = vadd.f32 %v1064, %v1112
  %v1138 = vadd.f32 %v1069, %v1112
  %v1139 = vadd.f32 %v1074, %v1112
  %v1140 = vadd.f32 %v1079, %v1112
  %v1141 = vadd.f32 %v1084, %v1112
  %v1142 = vadd.f32 %v1089, %v1112
  %v1143 = vadd.f32 %v1094, %v1112
  %v1144 = vadd.f32 %v1099, %v1112
  %v1145 = vadd.f32 %v1104, %v1112
  %v1146 = vld [vmem:[%s1] sm:$0xff]
  %v1147 = vld [vmem:[%s1 + $0x8] sm:$0xff]
  %v1148 = vld [vmem:[%s1 + $0x10] sm:$0xff]
  %v1149 = vld [vmem:[%s1 + $0x18] sm:$0xff]
  %v1150 = vld [vmem:[%s1 + $0x20] sm:$0xff]
  %v1151 = vld [vmem:[%s1 + $0x28] sm:$0xff]
  %v1152 = vld [vmem:[%s1 + $0x30] sm:$0xff]
  %v1153 = vld [vmem:[%s1 + $0x38] sm:$0xff]
  %v1154 = vld [vmem:[%s1 + $0x40] sm:$0xff]
  %v1155 = vld [vmem:[%s1 + $0x48] sm:$0xff]
  %v1156 = vld [vmem:[%s1 + $0x50] sm:$0xff]
  %v1157 = vld [vmem:[%s1 + $0x58] sm:$0xff]
  %v1158 = vld [vmem:[%s1 + $0x60] sm:$0xff]
  %v1159 = vld [vmem:[%s1 + $0x68] sm:$0xff]
  %v1160 = vld [vmem:[%s1 + $0x70] sm:$0xff]
  %v1161 = vld [vmem:[%s1 + $0x78] sm:$0xff]
  %v1162 = vld [vmem:[%s1 + $0x80] sm:$0xff]
  %v1163 = vld [vmem:[%s1 + $0x88] sm:$0xff]
  %v1164 = vld [vmem:[%s1 + $0x90] sm:$0xff]
  %v1165 = vld [vmem:[%s1 + $0x98] sm:$0xff]
  %v1166 = vld [vmem:[%s1 + $0xa0] sm:$0xff]
  %v1167 = vld [vmem:[%s1 + $0xa8] sm:$0xff]
  %v1168 = vld [vmem:[%s1 + $0xb0] sm:$0xff]
  %v1169 = vld [vmem:[%s1 + $0xb8] sm:$0xff]
  %v1170 = vld [vmem:[%s1 + $0xc0] sm:$0xff]
  %v1171 = vld [vmem:[%s1 + $0xc8] sm:$0xff]
  %v1172 = vld [vmem:[%s1 + $0xd0] sm:$0xff]
  %v1173 = vld [vmem:[%s1 + $0xd8] sm:$0xff]
  %v1174 = vld [vmem:[%s1 + $0xe0] sm:$0xff]
  %v1175 = vld [vmem:[%s1 + $0xe8] sm:$0xff]
  %v1176 = vld [vmem:[%s1 + $0xf0] sm:$0xff]
  %v1177 = vld [vmem:[%s1 + $0xf8] sm:$0xff]
  %v1178 = vmul.f32 %v1114, %v1146
  %v1179 = vmul.f32 %v1115, %v1147
  %v1180 = vmul.f32 %v1116, %v1148
  %v1181 = vmul.f32 %v1117, %v1149
  %v1182 = vmul.f32 %v1118, %v1150
  %v1183 = vmul.f32 %v1119, %v1151
  %v1184 = vmul.f32 %v1120, %v1152
  %v1185 = vmul.f32 %v1121, %v1153
  %v1186 = vmul.f32 %v1122, %v1154
  %v1187 = vmul.f32 %v1123, %v1155
  %v1188 = vmul.f32 %v1124, %v1156
  %v1189 = vmul.f32 %v1125, %v1157
  %v1190 = vmul.f32 %v1126, %v1158
  %v1191 = vmul.f32 %v1127, %v1159
  %v1192 = vmul.f32 %v1128, %v1160
  %v1193 = vmul.f32 %v1129, %v1161
  %v1194 = vmul.f32 %v1130, %v1162
  %v1195 = vmul.f32 %v1131, %v1163
  %v1196 = vmul.f32 %v1132, %v1164
  %v1197 = vmul.f32 %v1133, %v1165
  %v1198 = vmul.f32 %v1134, %v1166
  %v1199 = vmul.f32 %v1135, %v1167
  %v1200 = vmul.f32 %v1136, %v1168
  %v1201 = vmul.f32 %v1137, %v1169
  %v1202 = vmul.f32 %v1138, %v1170
  %v1203 = vmul.f32 %v1139, %v1171
  %v1204 = vmul.f32 %v1140, %v1172
  %v1205 = vmul.f32 %v1141, %v1173
  %v1206 = vmul.f32 %v1142, %v1174
  %v1207 = vmul.f32 %v1143, %v1175
  %v1208 = vmul.f32 %v1144, %v1176
  %v1209 = vmul.f32 %v1145, %v1177
  %v1210 = vsel %vm464, %v1178, 0.0
  %1211 = vadd.xlane.f32.xlu0 %v1210
  %v1212 = vpop.xlane.xlu0 %1211
  %v1213 = vsel %vm464, %v1179, 0.0
  %1214 = vadd.xlane.f32.xlu0 %v1213
  %v1215 = vpop.xlane.xlu0 %1214
  %v1216 = vsel %vm464, %v1180, 0.0
  %1217 = vadd.xlane.f32.xlu0 %v1216
  %v1218 = vpop.xlane.xlu0 %1217
  %v1219 = vsel %vm464, %v1181, 0.0
  %1220 = vadd.xlane.f32.xlu0 %v1219
  %v1221 = vpop.xlane.xlu0 %1220
  %v1222 = vsel %vm464, %v1182, 0.0
  %1223 = vadd.xlane.f32.xlu0 %v1222
  %v1224 = vpop.xlane.xlu0 %1223
  %v1225 = vsel %vm464, %v1183, 0.0
  %1226 = vadd.xlane.f32.xlu0 %v1225
  %v1227 = vpop.xlane.xlu0 %1226
  %v1228 = vsel %vm464, %v1184, 0.0
  %1229 = vadd.xlane.f32.xlu0 %v1228
  %v1230 = vpop.xlane.xlu0 %1229
  %v1231 = vsel %vm464, %v1185, 0.0
  %1232 = vadd.xlane.f32.xlu0 %v1231
  %v1233 = vpop.xlane.xlu0 %1232
  %v1234 = vsel %vm464, %v1186, 0.0
  %1235 = vadd.xlane.f32.xlu0 %v1234
  %v1236 = vpop.xlane.xlu0 %1235
  %v1237 = vsel %vm464, %v1187, 0.0
  %1238 = vadd.xlane.f32.xlu0 %v1237
  %v1239 = vpop.xlane.xlu0 %1238
  %v1240 = vsel %vm464, %v1188, 0.0
  %1241 = vadd.xlane.f32.xlu0 %v1240
  %v1242 = vpop.xlane.xlu0 %1241
  %v1243 = vsel %vm464, %v1189, 0.0
  %1244 = vadd.xlane.f32.xlu0 %v1243
  %v1245 = vpop.xlane.xlu0 %1244
  %v1246 = vsel %vm464, %v1190, 0.0
  %1247 = vadd.xlane.f32.xlu0 %v1246
  %v1248 = vpop.xlane.xlu0 %1247
  %v1249 = vsel %vm464, %v1191, 0.0
  %1250 = vadd.xlane.f32.xlu0 %v1249
  %v1251 = vpop.xlane.xlu0 %1250
  %v1252 = vsel %vm464, %v1192, 0.0
  %1253 = vadd.xlane.f32.xlu0 %v1252
  %v1254 = vpop.xlane.xlu0 %1253
  %v1255 = vsel %vm464, %v1193, 0.0
  %1256 = vadd.xlane.f32.xlu0 %v1255
  %v1257 = vpop.xlane.xlu0 %1256
  %v1258 = vsel %vm464, %v1194, 0.0
  %1259 = vadd.xlane.f32.xlu0 %v1258
  %v1260 = vpop.xlane.xlu0 %1259
  %v1261 = vsel %vm464, %v1195, 0.0
  %1262 = vadd.xlane.f32.xlu0 %v1261
  %v1263 = vpop.xlane.xlu0 %1262
  %v1264 = vsel %vm464, %v1196, 0.0
  %1265 = vadd.xlane.f32.xlu0 %v1264
  %v1266 = vpop.xlane.xlu0 %1265
  %v1267 = vsel %vm464, %v1197, 0.0
  %1268 = vadd.xlane.f32.xlu0 %v1267
  %v1269 = vpop.xlane.xlu0 %1268
  %v1270 = vsel %vm464, %v1198, 0.0
  %1271 = vadd.xlane.f32.xlu0 %v1270
  %v1272 = vpop.xlane.xlu0 %1271
  %v1273 = vsel %vm464, %v1199, 0.0
  %1274 = vadd.xlane.f32.xlu0 %v1273
  %v1275 = vpop.xlane.xlu0 %1274
  %v1276 = vsel %vm464, %v1200, 0.0
  %1277 = vadd.xlane.f32.xlu0 %v1276
  %v1278 = vpop.xlane.xlu0 %1277
  %v1279 = vsel %vm464, %v1201, 0.0
  %1280 = vadd.xlane.f32.xlu0 %v1279
  %v1281 = vpop.xlane.xlu0 %1280
  %v1282 = vsel %vm464, %v1202, 0.0
  %1283 = vadd.xlane.f32.xlu0 %v1282
  %v1284 = vpop.xlane.xlu0 %1283
  %v1285 = vsel %vm464, %v1203, 0.0
  %1286 = vadd.xlane.f32.xlu0 %v1285
  %v1287 = vpop.xlane.xlu0 %1286
  %v1288 = vsel %vm464, %v1204, 0.0
  %1289 = vadd.xlane.f32.xlu0 %v1288
  %v1290 = vpop.xlane.xlu0 %1289
  %v1291 = vsel %vm464, %v1205, 0.0
  %1292 = vadd.xlane.f32.xlu0 %v1291
  %v1293 = vpop.xlane.xlu0 %1292
  %v1294 = vsel %vm464, %v1206, 0.0
  %1295 = vadd.xlane.f32.xlu0 %v1294
  %v1296 = vpop.xlane.xlu0 %1295
  %v1297 = vsel %vm464, %v1207, 0.0
  %1298 = vadd.xlane.f32.xlu0 %v1297
  %v1299 = vpop.xlane.xlu0 %1298
  %v1300 = vsel %vm464, %v1208, 0.0
  %1301 = vadd.xlane.f32.xlu0 %v1300
  %v1302 = vpop.xlane.xlu0 %1301
  %v1303 = vsel %vm464, %v1209, 0.0
  %1304 = vadd.xlane.f32.xlu0 %v1303
  %v1305 = vpop.xlane.xlu0 %1304
  %v1338 = vlaneseq
  %v1339 = vshrl.u32 %v1338, 7
  %v1340 = vsub.s32 0, %v1339
  %v1341 = vrot.slane %v1212, %v1340
  %v1342 = vlaneseq
  %v1343 = vshrl.u32 %v1342, 7
  %v1344 = vsub.s32 1, %v1343
  %v1345 = vrot.slane %v1212, %v1344
  %v1346 = vlaneseq
  %v1347 = vshrl.u32 %v1346, 7
  %v1348 = vsub.s32 2, %v1347
  %v1349 = vrot.slane %v1212, %v1348
  %v1350 = vlaneseq
  %v1351 = vshrl.u32 %v1350, 7
  %v1352 = vsub.s32 3, %v1351
  %v1353 = vrot.slane %v1212, %v1352
  %v1354 = vlaneseq
  %v1355 = vshrl.u32 %v1354, 7
  %v1356 = vsub.s32 4, %v1355
  %v1357 = vrot.slane %v1212, %v1356
  %v1358 = vlaneseq
  %v1359 = vshrl.u32 %v1358, 7
  %v1360 = vsub.s32 5, %v1359
  %v1361 = vrot.slane %v1212, %v1360
  %v1362 = vlaneseq
  %v1363 = vshrl.u32 %v1362, 7
  %v1364 = vsub.s32 6, %v1363
  %v1365 = vrot.slane %v1212, %v1364
  %v1366 = vlaneseq
  %v1367 = vshrl.u32 %v1366, 7
  %v1368 = vsub.s32 7, %v1367
  %v1369 = vrot.slane %v1212, %v1368
  %v1370 = vlaneseq
  %v1371 = vshrl.u32 %v1370, 7
  %v1372 = vsub.s32 0, %v1371
  %v1373 = vrot.slane %v1215, %v1372
  %v1374 = vlaneseq
  %v1375 = vshrl.u32 %v1374, 7
  %v1376 = vsub.s32 1, %v1375
  %v1377 = vrot.slane %v1215, %v1376
  %v1378 = vlaneseq
  %v1379 = vshrl.u32 %v1378, 7
  %v1380 = vsub.s32 2, %v1379
  %v1381 = vrot.slane %v1215, %v1380
  %v1382 = vlaneseq
  %v1383 = vshrl.u32 %v1382, 7
  %v1384 = vsub.s32 3, %v1383
  %v1385 = vrot.slane %v1215, %v1384
  %v1386 = vlaneseq
  %v1387 = vshrl.u32 %v1386, 7
  %v1388 = vsub.s32 4, %v1387
  %v1389 = vrot.slane %v1215, %v1388
  %v1390 = vlaneseq
  %v1391 = vshrl.u32 %v1390, 7
  %v1392 = vsub.s32 5, %v1391
  %v1393 = vrot.slane %v1215, %v1392
  %v1394 = vlaneseq
  %v1395 = vshrl.u32 %v1394, 7
  %v1396 = vsub.s32 6, %v1395
  %v1397 = vrot.slane %v1215, %v1396
  %v1398 = vlaneseq
  %v1399 = vshrl.u32 %v1398, 7
  %v1400 = vsub.s32 7, %v1399
  %v1401 = vrot.slane %v1215, %v1400
  %v1402 = vlaneseq
  %v1403 = vshrl.u32 %v1402, 7
  %v1404 = vsub.s32 0, %v1403
  %v1405 = vrot.slane %v1218, %v1404
  %v1406 = vlaneseq
  %v1407 = vshrl.u32 %v1406, 7
  %v1408 = vsub.s32 1, %v1407
  %v1409 = vrot.slane %v1218, %v1408
  %v1410 = vlaneseq
  %v1411 = vshrl.u32 %v1410, 7
  %v1412 = vsub.s32 2, %v1411
  %v1413 = vrot.slane %v1218, %v1412
  %v1414 = vlaneseq
  %v1415 = vshrl.u32 %v1414, 7
  %v1416 = vsub.s32 3, %v1415
  %v1417 = vrot.slane %v1218, %v1416
  %v1418 = vlaneseq
  %v1419 = vshrl.u32 %v1418, 7
  %v1420 = vsub.s32 4, %v1419
  %v1421 = vrot.slane %v1218, %v1420
  %v1422 = vlaneseq
  %v1423 = vshrl.u32 %v1422, 7
  %v1424 = vsub.s32 5, %v1423
  %v1425 = vrot.slane %v1218, %v1424
  %v1426 = vlaneseq
  %v1427 = vshrl.u32 %v1426, 7
  %v1428 = vsub.s32 6, %v1427
  %v1429 = vrot.slane %v1218, %v1428
  %v1430 = vlaneseq
  %v1431 = vshrl.u32 %v1430, 7
  %v1432 = vsub.s32 7, %v1431
  %v1433 = vrot.slane %v1218, %v1432
  %v1434 = vlaneseq
  %v1435 = vshrl.u32 %v1434, 7
  %v1436 = vsub.s32 0, %v1435
  %v1437 = vrot.slane %v1221, %v1436
  %v1438 = vlaneseq
  %v1439 = vshrl.u32 %v1438, 7
  %v1440 = vsub.s32 1, %v1439
  %v1441 = vrot.slane %v1221, %v1440
  %v1442 = vlaneseq
  %v1443 = vshrl.u32 %v1442, 7
  %v1444 = vsub.s32 2, %v1443
  %v1445 = vrot.slane %v1221, %v1444
  %v1446 = vlaneseq
  %v1447 = vshrl.u32 %v1446, 7
  %v1448 = vsub.s32 3, %v1447
  %v1449 = vrot.slane %v1221, %v1448
  %v1450 = vlaneseq
  %v1451 = vshrl.u32 %v1450, 7
  %v1452 = vsub.s32 4, %v1451
  %v1453 = vrot.slane %v1221, %v1452
  %v1454 = vlaneseq
  %v1455 = vshrl.u32 %v1454, 7
  %v1456 = vsub.s32 5, %v1455
  %v1457 = vrot.slane %v1221, %v1456
  %v1458 = vlaneseq
  %v1459 = vshrl.u32 %v1458, 7
  %v1460 = vsub.s32 6, %v1459
  %v1461 = vrot.slane %v1221, %v1460
  %v1462 = vlaneseq
  %v1463 = vshrl.u32 %v1462, 7
  %v1464 = vsub.s32 7, %v1463
  %v1465 = vrot.slane %v1221, %v1464
  %v1466 = vlaneseq
  %v1467 = vshrl.u32 %v1466, 7
  %v1468 = vsub.s32 0, %v1467
  %v1469 = vrot.slane %v1224, %v1468
  %v1470 = vlaneseq
  %v1471 = vshrl.u32 %v1470, 7
  %v1472 = vsub.s32 1, %v1471
  %v1473 = vrot.slane %v1224, %v1472
  %v1474 = vlaneseq
  %v1475 = vshrl.u32 %v1474, 7
  %v1476 = vsub.s32 2, %v1475
  %v1477 = vrot.slane %v1224, %v1476
  %v1478 = vlaneseq
  %v1479 = vshrl.u32 %v1478, 7
  %v1480 = vsub.s32 3, %v1479
  %v1481 = vrot.slane %v1224, %v1480
  %v1482 = vlaneseq
  %v1483 = vshrl.u32 %v1482, 7
  %v1484 = vsub.s32 4, %v1483
  %v1485 = vrot.slane %v1224, %v1484
  %v1486 = vlaneseq
  %v1487 = vshrl.u32 %v1486, 7
  %v1488 = vsub.s32 5, %v1487
  %v1489 = vrot.slane %v1224, %v1488
  %v1490 = vlaneseq
  %v1491 = vshrl.u32 %v1490, 7
  %v1492 = vsub.s32 6, %v1491
  %v1493 = vrot.slane %v1224, %v1492
  %v1494 = vlaneseq
  %v1495 = vshrl.u32 %v1494, 7
  %v1496 = vsub.s32 7, %v1495
  %v1497 = vrot.slane %v1224, %v1496
  %v1498 = vlaneseq
  %v1499 = vshrl.u32 %v1498, 7
  %v1500 = vsub.s32 0, %v1499
  %v1501 = vrot.slane %v1227, %v1500
  %v1502 = vlaneseq
  %v1503 = vshrl.u32 %v1502, 7
  %v1504 = vsub.s32 1, %v1503
  %v1505 = vrot.slane %v1227, %v1504
  %v1506 = vlaneseq
  %v1507 = vshrl.u32 %v1506, 7
  %v1508 = vsub.s32 2, %v1507
  %v1509 = vrot.slane %v1227, %v1508
  %v1510 = vlaneseq
  %v1511 = vshrl.u32 %v1510, 7
  %v1512 = vsub.s32 3, %v1511
  %v1513 = vrot.slane %v1227, %v1512
  %v1514 = vlaneseq
  %v1515 = vshrl.u32 %v1514, 7
  %v1516 = vsub.s32 4, %v1515
  %v1517 = vrot.slane %v1227, %v1516
  %v1518 = vlaneseq
  %v1519 = vshrl.u32 %v1518, 7
  %v1520 = vsub.s32 5, %v1519
  %v1521 = vrot.slane %v1227, %v1520
  %v1522 = vlaneseq
  %v1523 = vshrl.u32 %v1522, 7
  %v1524 = vsub.s32 6, %v1523
  %v1525 = vrot.slane %v1227, %v1524
  %v1526 = vlaneseq
  %v1527 = vshrl.u32 %v1526, 7
  %v1528 = vsub.s32 7, %v1527
  %v1529 = vrot.slane %v1227, %v1528
  %v1530 = vlaneseq
  %v1531 = vshrl.u32 %v1530, 7
  %v1532 = vsub.s32 0, %v1531
  %v1533 = vrot.slane %v1230, %v1532
  %v1534 = vlaneseq
  %v1535 = vshrl.u32 %v1534, 7
  %v1536 = vsub.s32 1, %v1535
  %v1537 = vrot.slane %v1230, %v1536
  %v1538 = vlaneseq
  %v1539 = vshrl.u32 %v1538, 7
  %v1540 = vsub.s32 2, %v1539
  %v1541 = vrot.slane %v1230, %v1540
  %v1542 = vlaneseq
  %v1543 = vshrl.u32 %v1542, 7
  %v1544 = vsub.s32 3, %v1543
  %v1545 = vrot.slane %v1230, %v1544
  %v1546 = vlaneseq
  %v1547 = vshrl.u32 %v1546, 7
  %v1548 = vsub.s32 4, %v1547
  %v1549 = vrot.slane %v1230, %v1548
  %v1550 = vlaneseq
  %v1551 = vshrl.u32 %v1550, 7
  %v1552 = vsub.s32 5, %v1551
  %v1553 = vrot.slane %v1230, %v1552
  %v1554 = vlaneseq
  %v1555 = vshrl.u32 %v1554, 7
  %v1556 = vsub.s32 6, %v1555
  %v1557 = vrot.slane %v1230, %v1556
  %v1558 = vlaneseq
  %v1559 = vshrl.u32 %v1558, 7
  %v1560 = vsub.s32 7, %v1559
  %v1561 = vrot.slane %v1230, %v1560
  %v1562 = vlaneseq
  %v1563 = vshrl.u32 %v1562, 7
  %v1564 = vsub.s32 0, %v1563
  %v1565 = vrot.slane %v1233, %v1564
  %v1566 = vlaneseq
  %v1567 = vshrl.u32 %v1566, 7
  %v1568 = vsub.s32 1, %v1567
  %v1569 = vrot.slane %v1233, %v1568
  %v1570 = vlaneseq
  %v1571 = vshrl.u32 %v1570, 7
  %v1572 = vsub.s32 2, %v1571
  %v1573 = vrot.slane %v1233, %v1572
  %v1574 = vlaneseq
  %v1575 = vshrl.u32 %v1574, 7
  %v1576 = vsub.s32 3, %v1575
  %v1577 = vrot.slane %v1233, %v1576
  %v1578 = vlaneseq
  %v1579 = vshrl.u32 %v1578, 7
  %v1580 = vsub.s32 4, %v1579
  %v1581 = vrot.slane %v1233, %v1580
  %v1582 = vlaneseq
  %v1583 = vshrl.u32 %v1582, 7
  %v1584 = vsub.s32 5, %v1583
  %v1585 = vrot.slane %v1233, %v1584
  %v1586 = vlaneseq
  %v1587 = vshrl.u32 %v1586, 7
  %v1588 = vsub.s32 6, %v1587
  %v1589 = vrot.slane %v1233, %v1588
  %v1590 = vlaneseq
  %v1591 = vshrl.u32 %v1590, 7
  %v1592 = vsub.s32 7, %v1591
  %v1593 = vrot.slane %v1233, %v1592
  %v1594 = vlaneseq
  %v1595 = vshrl.u32 %v1594, 7
  %v1596 = vsub.s32 0, %v1595
  %v1597 = vrot.slane %v1236, %v1596
  %v1598 = vlaneseq
  %v1599 = vshrl.u32 %v1598, 7
  %v1600 = vsub.s32 1, %v1599
  %v1601 = vrot.slane %v1236, %v1600
  %v1602 = vlaneseq
  %v1603 = vshrl.u32 %v1602, 7
  %v1604 = vsub.s32 2, %v1603
  %v1605 = vrot.slane %v1236, %v1604
  %v1606 = vlaneseq
  %v1607 = vshrl.u32 %v1606, 7
  %v1608 = vsub.s32 3, %v1607
  %v1609 = vrot.slane %v1236, %v1608
  %v1610 = vlaneseq
  %v1611 = vshrl.u32 %v1610, 7
  %v1612 = vsub.s32 4, %v1611
  %v1613 = vrot.slane %v1236, %v1612
  %v1614 = vlaneseq
  %v1615 = vshrl.u32 %v1614, 7
  %v1616 = vsub.s32 5, %v1615
  %v1617 = vrot.slane %v1236, %v1616
  %v1618 = vlaneseq
  %v1619 = vshrl.u32 %v1618, 7
  %v1620 = vsub.s32 6, %v1619
  %v1621 = vrot.slane %v1236, %v1620
  %v1622 = vlaneseq
  %v1623 = vshrl.u32 %v1622, 7
  %v1624 = vsub.s32 7, %v1623
  %v1625 = vrot.slane %v1236, %v1624
  %v1626 = vlaneseq
  %v1627 = vshrl.u32 %v1626, 7
  %v1628 = vsub.s32 0, %v1627
  %v1629 = vrot.slane %v1239, %v1628
  %v1630 = vlaneseq
  %v1631 = vshrl.u32 %v1630, 7
  %v1632 = vsub.s32 1, %v1631
  %v1633 = vrot.slane %v1239, %v1632
  %v1634 = vlaneseq
  %v1635 = vshrl.u32 %v1634, 7
  %v1636 = vsub.s32 2, %v1635
  %v1637 = vrot.slane %v1239, %v1636
  %v1638 = vlaneseq
  %v1639 = vshrl.u32 %v1638, 7
  %v1640 = vsub.s32 3, %v1639
  %v1641 = vrot.slane %v1239, %v1640
  %v1642 = vlaneseq
  %v1643 = vshrl.u32 %v1642, 7
  %v1644 = vsub.s32 4, %v1643
  %v1645 = vrot.slane %v1239, %v1644
  %v1646 = vlaneseq
  %v1647 = vshrl.u32 %v1646, 7
  %v1648 = vsub.s32 5, %v1647
  %v1649 = vrot.slane %v1239, %v1648
  %v1650 = vlaneseq
  %v1651 = vshrl.u32 %v1650, 7
  %v1652 = vsub.s32 6, %v1651
  %v1653 = vrot.slane %v1239, %v1652
  %v1654 = vlaneseq
  %v1655 = vshrl.u32 %v1654, 7
  %v1656 = vsub.s32 7, %v1655
  %v1657 = vrot.slane %v1239, %v1656
  %v1658 = vlaneseq
  %v1659 = vshrl.u32 %v1658, 7
  %v1660 = vsub.s32 0, %v1659
  %v1661 = vrot.slane %v1242, %v1660
  %v1662 = vlaneseq
  %v1663 = vshrl.u32 %v1662, 7
  %v1664 = vsub.s32 1, %v1663
  %v1665 = vrot.slane %v1242, %v1664
  %v1666 = vlaneseq
  %v1667 = vshrl.u32 %v1666, 7
  %v1668 = vsub.s32 2, %v1667
  %v1669 = vrot.slane %v1242, %v1668
  %v1670 = vlaneseq
  %v1671 = vshrl.u32 %v1670, 7
  %v1672 = vsub.s32 3, %v1671
  %v1673 = vrot.slane %v1242, %v1672
  %v1674 = vlaneseq
  %v1675 = vshrl.u32 %v1674, 7
  %v1676 = vsub.s32 4, %v1675
  %v1677 = vrot.slane %v1242, %v1676
  %v1678 = vlaneseq
  %v1679 = vshrl.u32 %v1678, 7
  %v1680 = vsub.s32 5, %v1679
  %v1681 = vrot.slane %v1242, %v1680
  %v1682 = vlaneseq
  %v1683 = vshrl.u32 %v1682, 7
  %v1684 = vsub.s32 6, %v1683
  %v1685 = vrot.slane %v1242, %v1684
  %v1686 = vlaneseq
  %v1687 = vshrl.u32 %v1686, 7
  %v1688 = vsub.s32 7, %v1687
  %v1689 = vrot.slane %v1242, %v1688
  %v1690 = vlaneseq
  %v1691 = vshrl.u32 %v1690, 7
  %v1692 = vsub.s32 0, %v1691
  %v1693 = vrot.slane %v1245, %v1692
  %v1694 = vlaneseq
  %v1695 = vshrl.u32 %v1694, 7
  %v1696 = vsub.s32 1, %v1695
  %v1697 = vrot.slane %v1245, %v1696
  %v1698 = vlaneseq
  %v1699 = vshrl.u32 %v1698, 7
  %v1700 = vsub.s32 2, %v1699
  %v1701 = vrot.slane %v1245, %v1700
  %v1702 = vlaneseq
  %v1703 = vshrl.u32 %v1702, 7
  %v1704 = vsub.s32 3, %v1703
  %v1705 = vrot.slane %v1245, %v1704
  %v1706 = vlaneseq
  %v1707 = vshrl.u32 %v1706, 7
  %v1708 = vsub.s32 4, %v1707
  %v1709 = vrot.slane %v1245, %v1708
  %v1710 = vlaneseq
  %v1711 = vshrl.u32 %v1710, 7
  %v1712 = vsub.s32 5, %v1711
  %v1713 = vrot.slane %v1245, %v1712
  %v1714 = vlaneseq
  %v1715 = vshrl.u32 %v1714, 7
  %v1716 = vsub.s32 6, %v1715
  %v1717 = vrot.slane %v1245, %v1716
  %v1718 = vlaneseq
  %v1719 = vshrl.u32 %v1718, 7
  %v1720 = vsub.s32 7, %v1719
  %v1721 = vrot.slane %v1245, %v1720
  %v1722 = vlaneseq
  %v1723 = vshrl.u32 %v1722, 7
  %v1724 = vsub.s32 0, %v1723
  %v1725 = vrot.slane %v1248, %v1724
  %v1726 = vlaneseq
  %v1727 = vshrl.u32 %v1726, 7
  %v1728 = vsub.s32 1, %v1727
  %v1729 = vrot.slane %v1248, %v1728
  %v1730 = vlaneseq
  %v1731 = vshrl.u32 %v1730, 7
  %v1732 = vsub.s32 2, %v1731
  %v1733 = vrot.slane %v1248, %v1732
  %v1734 = vlaneseq
  %v1735 = vshrl.u32 %v1734, 7
  %v1736 = vsub.s32 3, %v1735
  %v1737 = vrot.slane %v1248, %v1736
  %v1738 = vlaneseq
  %v1739 = vshrl.u32 %v1738, 7
  %v1740 = vsub.s32 4, %v1739
  %v1741 = vrot.slane %v1248, %v1740
  %v1742 = vlaneseq
  %v1743 = vshrl.u32 %v1742, 7
  %v1744 = vsub.s32 5, %v1743
  %v1745 = vrot.slane %v1248, %v1744
  %v1746 = vlaneseq
  %v1747 = vshrl.u32 %v1746, 7
  %v1748 = vsub.s32 6, %v1747
  %v1749 = vrot.slane %v1248, %v1748
  %v1750 = vlaneseq
  %v1751 = vshrl.u32 %v1750, 7
  %v1752 = vsub.s32 7, %v1751
  %v1753 = vrot.slane %v1248, %v1752
  %v1754 = vlaneseq
  %v1755 = vshrl.u32 %v1754, 7
  %v1756 = vsub.s32 0, %v1755
  %v1757 = vrot.slane %v1251, %v1756
  %v1758 = vlaneseq
  %v1759 = vshrl.u32 %v1758, 7
  %v1760 = vsub.s32 1, %v1759
  %v1761 = vrot.slane %v1251, %v1760
  %v1762 = vlaneseq
  %v1763 = vshrl.u32 %v1762, 7
  %v1764 = vsub.s32 2, %v1763
  %v1765 = vrot.slane %v1251, %v1764
  %v1766 = vlaneseq
  %v1767 = vshrl.u32 %v1766, 7
  %v1768 = vsub.s32 3, %v1767
  %v1769 = vrot.slane %v1251, %v1768
  %v1770 = vlaneseq
  %v1771 = vshrl.u32 %v1770, 7
  %v1772 = vsub.s32 4, %v1771
  %v1773 = vrot.slane %v1251, %v1772
  %v1774 = vlaneseq
  %v1775 = vshrl.u32 %v1774, 7
  %v1776 = vsub.s32 5, %v1775
  %v1777 = vrot.slane %v1251, %v1776
  %v1778 = vlaneseq
  %v1779 = vshrl.u32 %v1778, 7
  %v1780 = vsub.s32 6, %v1779
  %v1781 = vrot.slane %v1251, %v1780
  %v1782 = vlaneseq
  %v1783 = vshrl.u32 %v1782, 7
  %v1784 = vsub.s32 7, %v1783
  %v1785 = vrot.slane %v1251, %v1784
  %v1786 = vlaneseq
  %v1787 = vshrl.u32 %v1786, 7
  %v1788 = vsub.s32 0, %v1787
  %v1789 = vrot.slane %v1254, %v1788
  %v1790 = vlaneseq
  %v1791 = vshrl.u32 %v1790, 7
  %v1792 = vsub.s32 1, %v1791
  %v1793 = vrot.slane %v1254, %v1792
  %v1794 = vlaneseq
  %v1795 = vshrl.u32 %v1794, 7
  %v1796 = vsub.s32 2, %v1795
  %v1797 = vrot.slane %v1254, %v1796
  %v1798 = vlaneseq
  %v1799 = vshrl.u32 %v1798, 7
  %v1800 = vsub.s32 3, %v1799
  %v1801 = vrot.slane %v1254, %v1800
  %v1802 = vlaneseq
  %v1803 = vshrl.u32 %v1802, 7
  %v1804 = vsub.s32 4, %v1803
  %v1805 = vrot.slane %v1254, %v1804
  %v1806 = vlaneseq
  %v1807 = vshrl.u32 %v1806, 7
  %v1808 = vsub.s32 5, %v1807
  %v1809 = vrot.slane %v1254, %v1808
  %v1810 = vlaneseq
  %v1811 = vshrl.u32 %v1810, 7
  %v1812 = vsub.s32 6, %v1811
  %v1813 = vrot.slane %v1254, %v1812
  %v1814 = vlaneseq
  %v1815 = vshrl.u32 %v1814, 7
  %v1816 = vsub.s32 7, %v1815
  %v1817 = vrot.slane %v1254, %v1816
  %v1818 = vlaneseq
  %v1819 = vshrl.u32 %v1818, 7
  %v1820 = vsub.s32 0, %v1819
  %v1821 = vrot.slane %v1257, %v1820
  %v1822 = vlaneseq
  %v1823 = vshrl.u32 %v1822, 7
  %v1824 = vsub.s32 1, %v1823
  %v1825 = vrot.slane %v1257, %v1824
  %v1826 = vlaneseq
  %v1827 = vshrl.u32 %v1826, 7
  %v1828 = vsub.s32 2, %v1827
  %v1829 = vrot.slane %v1257, %v1828
  %v1830 = vlaneseq
  %v1831 = vshrl.u32 %v1830, 7
  %v1832 = vsub.s32 3, %v1831
  %v1833 = vrot.slane %v1257, %v1832
  %v1834 = vlaneseq
  %v1835 = vshrl.u32 %v1834, 7
  %v1836 = vsub.s32 4, %v1835
  %v1837 = vrot.slane %v1257, %v1836
  %v1838 = vlaneseq
  %v1839 = vshrl.u32 %v1838, 7
  %v1840 = vsub.s32 5, %v1839
  %v1841 = vrot.slane %v1257, %v1840
  %v1842 = vlaneseq
  %v1843 = vshrl.u32 %v1842, 7
  %v1844 = vsub.s32 6, %v1843
  %v1845 = vrot.slane %v1257, %v1844
  %v1846 = vlaneseq
  %v1847 = vshrl.u32 %v1846, 7
  %v1848 = vsub.s32 7, %v1847
  %v1849 = vrot.slane %v1257, %v1848
  %v1850 = vlaneseq
  %v1851 = vshrl.u32 %v1850, 7
  %v1852 = vsub.s32 0, %v1851
  %v1853 = vrot.slane %v1260, %v1852
  %v1854 = vlaneseq
  %v1855 = vshrl.u32 %v1854, 7
  %v1856 = vsub.s32 1, %v1855
  %v1857 = vrot.slane %v1260, %v1856
  %v1858 = vlaneseq
  %v1859 = vshrl.u32 %v1858, 7
  %v1860 = vsub.s32 2, %v1859
  %v1861 = vrot.slane %v1260, %v1860
  %v1862 = vlaneseq
  %v1863 = vshrl.u32 %v1862, 7
  %v1864 = vsub.s32 3, %v1863
  %v1865 = vrot.slane %v1260, %v1864
  %v1866 = vlaneseq
  %v1867 = vshrl.u32 %v1866, 7
  %v1868 = vsub.s32 4, %v1867
  %v1869 = vrot.slane %v1260, %v1868
  %v1870 = vlaneseq
  %v1871 = vshrl.u32 %v1870, 7
  %v1872 = vsub.s32 5, %v1871
  %v1873 = vrot.slane %v1260, %v1872
  %v1874 = vlaneseq
  %v1875 = vshrl.u32 %v1874, 7
  %v1876 = vsub.s32 6, %v1875
  %v1877 = vrot.slane %v1260, %v1876
  %v1878 = vlaneseq
  %v1879 = vshrl.u32 %v1878, 7
  %v1880 = vsub.s32 7, %v1879
  %v1881 = vrot.slane %v1260, %v1880
  %v1882 = vlaneseq
  %v1883 = vshrl.u32 %v1882, 7
  %v1884 = vsub.s32 0, %v1883
  %v1885 = vrot.slane %v1263, %v1884
  %v1886 = vlaneseq
  %v1887 = vshrl.u32 %v1886, 7
  %v1888 = vsub.s32 1, %v1887
  %v1889 = vrot.slane %v1263, %v1888
  %v1890 = vlaneseq
  %v1891 = vshrl.u32 %v1890, 7
  %v1892 = vsub.s32 2, %v1891
  %v1893 = vrot.slane %v1263, %v1892
  %v1894 = vlaneseq
  %v1895 = vshrl.u32 %v1894, 7
  %v1896 = vsub.s32 3, %v1895
  %v1897 = vrot.slane %v1263, %v1896
  %v1898 = vlaneseq
  %v1899 = vshrl.u32 %v1898, 7
  %v1900 = vsub.s32 4, %v1899
  %v1901 = vrot.slane %v1263, %v1900
  %v1902 = vlaneseq
  %v1903 = vshrl.u32 %v1902, 7
  %v1904 = vsub.s32 5, %v1903
  %v1905 = vrot.slane %v1263, %v1904
  %v1906 = vlaneseq
  %v1907 = vshrl.u32 %v1906, 7
  %v1908 = vsub.s32 6, %v1907
  %v1909 = vrot.slane %v1263, %v1908
  %v1910 = vlaneseq
  %v1911 = vshrl.u32 %v1910, 7
  %v1912 = vsub.s32 7, %v1911
  %v1913 = vrot.slane %v1263, %v1912
  %v1914 = vlaneseq
  %v1915 = vshrl.u32 %v1914, 7
  %v1916 = vsub.s32 0, %v1915
  %v1917 = vrot.slane %v1266, %v1916
  %v1918 = vlaneseq
  %v1919 = vshrl.u32 %v1918, 7
  %v1920 = vsub.s32 1, %v1919
  %v1921 = vrot.slane %v1266, %v1920
  %v1922 = vlaneseq
  %v1923 = vshrl.u32 %v1922, 7
  %v1924 = vsub.s32 2, %v1923
  %v1925 = vrot.slane %v1266, %v1924
  %v1926 = vlaneseq
  %v1927 = vshrl.u32 %v1926, 7
  %v1928 = vsub.s32 3, %v1927
  %v1929 = vrot.slane %v1266, %v1928
  %v1930 = vlaneseq
  %v1931 = vshrl.u32 %v1930, 7
  %v1932 = vsub.s32 4, %v1931
  %v1933 = vrot.slane %v1266, %v1932
  %v1934 = vlaneseq
  %v1935 = vshrl.u32 %v1934, 7
  %v1936 = vsub.s32 5, %v1935
  %v1937 = vrot.slane %v1266, %v1936
  %v1938 = vlaneseq
  %v1939 = vshrl.u32 %v1938, 7
  %v1940 = vsub.s32 6, %v1939
  %v1941 = vrot.slane %v1266, %v1940
  %v1942 = vlaneseq
  %v1943 = vshrl.u32 %v1942, 7
  %v1944 = vsub.s32 7, %v1943
  %v1945 = vrot.slane %v1266, %v1944
  %v1946 = vlaneseq
  %v1947 = vshrl.u32 %v1946, 7
  %v1948 = vsub.s32 0, %v1947
  %v1949 = vrot.slane %v1269, %v1948
  %v1950 = vlaneseq
  %v1951 = vshrl.u32 %v1950, 7
  %v1952 = vsub.s32 1, %v1951
  %v1953 = vrot.slane %v1269, %v1952
  %v1954 = vlaneseq
  %v1955 = vshrl.u32 %v1954, 7
  %v1956 = vsub.s32 2, %v1955
  %v1957 = vrot.slane %v1269, %v1956
  %v1958 = vlaneseq
  %v1959 = vshrl.u32 %v1958, 7
  %v1960 = vsub.s32 3, %v1959
  %v1961 = vrot.slane %v1269, %v1960
  %v1962 = vlaneseq
  %v1963 = vshrl.u32 %v1962, 7
  %v1964 = vsub.s32 4, %v1963
  %v1965 = vrot.slane %v1269, %v1964
  %v1966 = vlaneseq
  %v1967 = vshrl.u32 %v1966, 7
  %v1968 = vsub.s32 5, %v1967
  %v1969 = vrot.slane %v1269, %v1968
  %v1970 = vlaneseq
  %v1971 = vshrl.u32 %v1970, 7
  %v1972 = vsub.s32 6, %v1971
  %v1973 = vrot.slane %v1269, %v1972
  %v1974 = vlaneseq
  %v1975 = vshrl.u32 %v1974, 7
  %v1976 = vsub.s32 7, %v1975
  %v1977 = vrot.slane %v1269, %v1976
  %v1978 = vlaneseq
  %v1979 = vshrl.u32 %v1978, 7
  %v1980 = vsub.s32 0, %v1979
  %v1981 = vrot.slane %v1272, %v1980
  %v1982 = vlaneseq
  %v1983 = vshrl.u32 %v1982, 7
  %v1984 = vsub.s32 1, %v1983
  %v1985 = vrot.slane %v1272, %v1984
  %v1986 = vlaneseq
  %v1987 = vshrl.u32 %v1986, 7
  %v1988 = vsub.s32 2, %v1987
  %v1989 = vrot.slane %v1272, %v1988
  %v1990 = vlaneseq
  %v1991 = vshrl.u32 %v1990, 7
  %v1992 = vsub.s32 3, %v1991
  %v1993 = vrot.slane %v1272, %v1992
  %v1994 = vlaneseq
  %v1995 = vshrl.u32 %v1994, 7
  %v1996 = vsub.s32 4, %v1995
  %v1997 = vrot.slane %v1272, %v1996
  %v1998 = vlaneseq
  %v1999 = vshrl.u32 %v1998, 7
  %v2000 = vsub.s32 5, %v1999
  %v2001 = vrot.slane %v1272, %v2000
  %v2002 = vlaneseq
  %v2003 = vshrl.u32 %v2002, 7
  %v2004 = vsub.s32 6, %v2003
  %v2005 = vrot.slane %v1272, %v2004
  %v2006 = vlaneseq
  %v2007 = vshrl.u32 %v2006, 7
  %v2008 = vsub.s32 7, %v2007
  %v2009 = vrot.slane %v1272, %v2008
  %v2010 = vlaneseq
  %v2011 = vshrl.u32 %v2010, 7
  %v2012 = vsub.s32 0, %v2011
  %v2013 = vrot.slane %v1275, %v2012
  %v2014 = vlaneseq
  %v2015 = vshrl.u32 %v2014, 7
  %v2016 = vsub.s32 1, %v2015
  %v2017 = vrot.slane %v1275, %v2016
  %v2018 = vlaneseq
  %v2019 = vshrl.u32 %v2018, 7
  %v2020 = vsub.s32 2, %v2019
  %v2021 = vrot.slane %v1275, %v2020
  %v2022 = vlaneseq
  %v2023 = vshrl.u32 %v2022, 7
  %v2024 = vsub.s32 3, %v2023
  %v2025 = vrot.slane %v1275, %v2024
  %v2026 = vlaneseq
  %v2027 = vshrl.u32 %v2026, 7
  %v2028 = vsub.s32 4, %v2027
  %v2029 = vrot.slane %v1275, %v2028
  %v2030 = vlaneseq
  %v2031 = vshrl.u32 %v2030, 7
  %v2032 = vsub.s32 5, %v2031
  %v2033 = vrot.slane %v1275, %v2032
  %v2034 = vlaneseq
  %v2035 = vshrl.u32 %v2034, 7
  %v2036 = vsub.s32 6, %v2035
  %v2037 = vrot.slane %v1275, %v2036
  %v2038 = vlaneseq
  %v2039 = vshrl.u32 %v2038, 7
  %v2040 = vsub.s32 7, %v2039
  %v2041 = vrot.slane %v1275, %v2040
  %v2042 = vlaneseq
  %v2043 = vshrl.u32 %v2042, 7
  %v2044 = vsub.s32 0, %v2043
  %v2045 = vrot.slane %v1278, %v2044
  %v2046 = vlaneseq
  %v2047 = vshrl.u32 %v2046, 7
  %v2048 = vsub.s32 1, %v2047
  %v2049 = vrot.slane %v1278, %v2048
  %v2050 = vlaneseq
  %v2051 = vshrl.u32 %v2050, 7
  %v2052 = vsub.s32 2, %v2051
  %v2053 = vrot.slane %v1278, %v2052
  %v2054 = vlaneseq
  %v2055 = vshrl.u32 %v2054, 7
  %v2056 = vsub.s32 3, %v2055
  %v2057 = vrot.slane %v1278, %v2056
  %v2058 = vlaneseq
  %v2059 = vshrl.u32 %v2058, 7
  %v2060 = vsub.s32 4, %v2059
  %v2061 = vrot.slane %v1278, %v2060
  %v2062 = vlaneseq
  %v2063 = vshrl.u32 %v2062, 7
  %v2064 = vsub.s32 5, %v2063
  %v2065 = vrot.slane %v1278, %v2064
  %v2066 = vlaneseq
  %v2067 = vshrl.u32 %v2066, 7
  %v2068 = vsub.s32 6, %v2067
  %v2069 = vrot.slane %v1278, %v2068
  %v2070 = vlaneseq
  %v2071 = vshrl.u32 %v2070, 7
  %v2072 = vsub.s32 7, %v2071
  %v2073 = vrot.slane %v1278, %v2072
  %v2074 = vlaneseq
  %v2075 = vshrl.u32 %v2074, 7
  %v2076 = vsub.s32 0, %v2075
  %v2077 = vrot.slane %v1281, %v2076
  %v2078 = vlaneseq
  %v2079 = vshrl.u32 %v2078, 7
  %v2080 = vsub.s32 1, %v2079
  %v2081 = vrot.slane %v1281, %v2080
  %v2082 = vlaneseq
  %v2083 = vshrl.u32 %v2082, 7
  %v2084 = vsub.s32 2, %v2083
  %v2085 = vrot.slane %v1281, %v2084
  %v2086 = vlaneseq
  %v2087 = vshrl.u32 %v2086, 7
  %v2088 = vsub.s32 3, %v2087
  %v2089 = vrot.slane %v1281, %v2088
  %v2090 = vlaneseq
  %v2091 = vshrl.u32 %v2090, 7
  %v2092 = vsub.s32 4, %v2091
  %v2093 = vrot.slane %v1281, %v2092
  %v2094 = vlaneseq
  %v2095 = vshrl.u32 %v2094, 7
  %v2096 = vsub.s32 5, %v2095
  %v2097 = vrot.slane %v1281, %v2096
  %v2098 = vlaneseq
  %v2099 = vshrl.u32 %v2098, 7
  %v2100 = vsub.s32 6, %v2099
  %v2101 = vrot.slane %v1281, %v2100
  %v2102 = vlaneseq
  %v2103 = vshrl.u32 %v2102, 7
  %v2104 = vsub.s32 7, %v2103
  %v2105 = vrot.slane %v1281, %v2104
  %v2106 = vlaneseq
  %v2107 = vshrl.u32 %v2106, 7
  %v2108 = vsub.s32 0, %v2107
  %v2109 = vrot.slane %v1284, %v2108
  %v2110 = vlaneseq
  %v2111 = vshrl.u32 %v2110, 7
  %v2112 = vsub.s32 1, %v2111
  %v2113 = vrot.slane %v1284, %v2112
  %v2114 = vlaneseq
  %v2115 = vshrl.u32 %v2114, 7
  %v2116 = vsub.s32 2, %v2115
  %v2117 = vrot.slane %v1284, %v2116
  %v2118 = vlaneseq
  %v2119 = vshrl.u32 %v2118, 7
  %v2120 = vsub.s32 3, %v2119
  %v2121 = vrot.slane %v1284, %v2120
  %v2122 = vlaneseq
  %v2123 = vshrl.u32 %v2122, 7
  %v2124 = vsub.s32 4, %v2123
  %v2125 = vrot.slane %v1284, %v2124
  %v2126 = vlaneseq
  %v2127 = vshrl.u32 %v2126, 7
  %v2128 = vsub.s32 5, %v2127
  %v2129 = vrot.slane %v1284, %v2128
  %v2130 = vlaneseq
  %v2131 = vshrl.u32 %v2130, 7
  %v2132 = vsub.s32 6, %v2131
  %v2133 = vrot.slane %v1284, %v2132
  %v2134 = vlaneseq
  %v2135 = vshrl.u32 %v2134, 7
  %v2136 = vsub.s32 7, %v2135
  %v2137 = vrot.slane %v1284, %v2136
  %v2138 = vlaneseq
  %v2139 = vshrl.u32 %v2138, 7
  %v2140 = vsub.s32 0, %v2139
  %v2141 = vrot.slane %v1287, %v2140
  %v2142 = vlaneseq
  %v2143 = vshrl.u32 %v2142, 7
  %v2144 = vsub.s32 1, %v2143
  %v2145 = vrot.slane %v1287, %v2144
  %v2146 = vlaneseq
  %v2147 = vshrl.u32 %v2146, 7
  %v2148 = vsub.s32 2, %v2147
  %v2149 = vrot.slane %v1287, %v2148
  %v2150 = vlaneseq
  %v2151 = vshrl.u32 %v2150, 7
  %v2152 = vsub.s32 3, %v2151
  %v2153 = vrot.slane %v1287, %v2152
  %v2154 = vlaneseq
  %v2155 = vshrl.u32 %v2154, 7
  %v2156 = vsub.s32 4, %v2155
  %v2157 = vrot.slane %v1287, %v2156
  %v2158 = vlaneseq
  %v2159 = vshrl.u32 %v2158, 7
  %v2160 = vsub.s32 5, %v2159
  %v2161 = vrot.slane %v1287, %v2160
  %v2162 = vlaneseq
  %v2163 = vshrl.u32 %v2162, 7
  %v2164 = vsub.s32 6, %v2163
  %v2165 = vrot.slane %v1287, %v2164
  %v2166 = vlaneseq
  %v2167 = vshrl.u32 %v2166, 7
  %v2168 = vsub.s32 7, %v2167
  %v2169 = vrot.slane %v1287, %v2168
  %v2170 = vlaneseq
  %v2171 = vshrl.u32 %v2170, 7
  %v2172 = vsub.s32 0, %v2171
  %v2173 = vrot.slane %v1290, %v2172
  %v2174 = vlaneseq
  %v2175 = vshrl.u32 %v2174, 7
  %v2176 = vsub.s32 1, %v2175
  %v2177 = vrot.slane %v1290, %v2176
  %v2178 = vlaneseq
  %v2179 = vshrl.u32 %v2178, 7
  %v2180 = vsub.s32 2, %v2179
  %v2181 = vrot.slane %v1290, %v2180
  %v2182 = vlaneseq
  %v2183 = vshrl.u32 %v2182, 7
  %v2184 = vsub.s32 3, %v2183
  %v2185 = vrot.slane %v1290, %v2184
  %v2186 = vlaneseq
  %v2187 = vshrl.u32 %v2186, 7
  %v2188 = vsub.s32 4, %v2187
  %v2189 = vrot.slane %v1290, %v2188
  %v2190 = vlaneseq
  %v2191 = vshrl.u32 %v2190, 7
  %v2192 = vsub.s32 5, %v2191
  %v2193 = vrot.slane %v1290, %v2192
  %v2194 = vlaneseq
  %v2195 = vshrl.u32 %v2194, 7
  %v2196 = vsub.s32 6, %v2195
  %v2197 = vrot.slane %v1290, %v2196
  %v2198 = vlaneseq
  %v2199 = vshrl.u32 %v2198, 7
  %v2200 = vsub.s32 7, %v2199
  %v2201 = vrot.slane %v1290, %v2200
  %v2202 = vlaneseq
  %v2203 = vshrl.u32 %v2202, 7
  %v2204 = vsub.s32 0, %v2203
  %v2205 = vrot.slane %v1293, %v2204
  %v2206 = vlaneseq
  %v2207 = vshrl.u32 %v2206, 7
  %v2208 = vsub.s32 1, %v2207
  %v2209 = vrot.slane %v1293, %v2208
  %v2210 = vlaneseq
  %v2211 = vshrl.u32 %v2210, 7
  %v2212 = vsub.s32 2, %v2211
  %v2213 = vrot.slane %v1293, %v2212
  %v2214 = vlaneseq
  %v2215 = vshrl.u32 %v2214, 7
  %v2216 = vsub.s32 3, %v2215
  %v2217 = vrot.slane %v1293, %v2216
  %v2218 = vlaneseq
  %v2219 = vshrl.u32 %v2218, 7
  %v2220 = vsub.s32 4, %v2219
  %v2221 = vrot.slane %v1293, %v2220
  %v2222 = vlaneseq
  %v2223 = vshrl.u32 %v2222, 7
  %v2224 = vsub.s32 5, %v2223
  %v2225 = vrot.slane %v1293, %v2224
  %v2226 = vlaneseq
  %v2227 = vshrl.u32 %v2226, 7
  %v2228 = vsub.s32 6, %v2227
  %v2229 = vrot.slane %v1293, %v2228
  %v2230 = vlaneseq
  %v2231 = vshrl.u32 %v2230, 7
  %v2232 = vsub.s32 7, %v2231
  %v2233 = vrot.slane %v1293, %v2232
  %v2234 = vlaneseq
  %v2235 = vshrl.u32 %v2234, 7
  %v2236 = vsub.s32 0, %v2235
  %v2237 = vrot.slane %v1296, %v2236
  %v2238 = vlaneseq
  %v2239 = vshrl.u32 %v2238, 7
  %v2240 = vsub.s32 1, %v2239
  %v2241 = vrot.slane %v1296, %v2240
  %v2242 = vlaneseq
  %v2243 = vshrl.u32 %v2242, 7
  %v2244 = vsub.s32 2, %v2243
  %v2245 = vrot.slane %v1296, %v2244
  %v2246 = vlaneseq
  %v2247 = vshrl.u32 %v2246, 7
  %v2248 = vsub.s32 3, %v2247
  %v2249 = vrot.slane %v1296, %v2248
  %v2250 = vlaneseq
  %v2251 = vshrl.u32 %v2250, 7
  %v2252 = vsub.s32 4, %v2251
  %v2253 = vrot.slane %v1296, %v2252
  %v2254 = vlaneseq
  %v2255 = vshrl.u32 %v2254, 7
  %v2256 = vsub.s32 5, %v2255
  %v2257 = vrot.slane %v1296, %v2256
  %v2258 = vlaneseq
  %v2259 = vshrl.u32 %v2258, 7
  %v2260 = vsub.s32 6, %v2259
  %v2261 = vrot.slane %v1296, %v2260
  %v2262 = vlaneseq
  %v2263 = vshrl.u32 %v2262, 7
  %v2264 = vsub.s32 7, %v2263
  %v2265 = vrot.slane %v1296, %v2264
  %v2266 = vlaneseq
  %v2267 = vshrl.u32 %v2266, 7
  %v2268 = vsub.s32 0, %v2267
  %v2269 = vrot.slane %v1299, %v2268
  %v2270 = vlaneseq
  %v2271 = vshrl.u32 %v2270, 7
  %v2272 = vsub.s32 1, %v2271
  %v2273 = vrot.slane %v1299, %v2272
  %v2274 = vlaneseq
  %v2275 = vshrl.u32 %v2274, 7
  %v2276 = vsub.s32 2, %v2275
  %v2277 = vrot.slane %v1299, %v2276
  %v2278 = vlaneseq
  %v2279 = vshrl.u32 %v2278, 7
  %v2280 = vsub.s32 3, %v2279
  %v2281 = vrot.slane %v1299, %v2280
  %v2282 = vlaneseq
  %v2283 = vshrl.u32 %v2282, 7
  %v2284 = vsub.s32 4, %v2283
  %v2285 = vrot.slane %v1299, %v2284
  %v2286 = vlaneseq
  %v2287 = vshrl.u32 %v2286, 7
  %v2288 = vsub.s32 5, %v2287
  %v2289 = vrot.slane %v1299, %v2288
  %v2290 = vlaneseq
  %v2291 = vshrl.u32 %v2290, 7
  %v2292 = vsub.s32 6, %v2291
  %v2293 = vrot.slane %v1299, %v2292
  %v2294 = vlaneseq
  %v2295 = vshrl.u32 %v2294, 7
  %v2296 = vsub.s32 7, %v2295
  %v2297 = vrot.slane %v1299, %v2296
  %v2298 = vlaneseq
  %v2299 = vshrl.u32 %v2298, 7
  %v2300 = vsub.s32 0, %v2299
  %v2301 = vrot.slane %v1302, %v2300
  %v2302 = vlaneseq
  %v2303 = vshrl.u32 %v2302, 7
  %v2304 = vsub.s32 1, %v2303
  %v2305 = vrot.slane %v1302, %v2304
  %v2306 = vlaneseq
  %v2307 = vshrl.u32 %v2306, 7
  %v2308 = vsub.s32 2, %v2307
  %v2309 = vrot.slane %v1302, %v2308
  %v2310 = vlaneseq
  %v2311 = vshrl.u32 %v2310, 7
  %v2312 = vsub.s32 3, %v2311
  %v2313 = vrot.slane %v1302, %v2312
  %v2314 = vlaneseq
  %v2315 = vshrl.u32 %v2314, 7
  %v2316 = vsub.s32 4, %v2315
  %v2317 = vrot.slane %v1302, %v2316
  %v2318 = vlaneseq
  %v2319 = vshrl.u32 %v2318, 7
  %v2320 = vsub.s32 5, %v2319
  %v2321 = vrot.slane %v1302, %v2320
  %v2322 = vlaneseq
  %v2323 = vshrl.u32 %v2322, 7
  %v2324 = vsub.s32 6, %v2323
  %v2325 = vrot.slane %v1302, %v2324
  %v2326 = vlaneseq
  %v2327 = vshrl.u32 %v2326, 7
  %v2328 = vsub.s32 7, %v2327
  %v2329 = vrot.slane %v1302, %v2328
  %v2330 = vlaneseq
  %v2331 = vshrl.u32 %v2330, 7
  %v2332 = vsub.s32 0, %v2331
  %v2333 = vrot.slane %v1305, %v2332
  %v2334 = vlaneseq
  %v2335 = vshrl.u32 %v2334, 7
  %v2336 = vsub.s32 1, %v2335
  %v2337 = vrot.slane %v1305, %v2336
  %v2338 = vlaneseq
  %v2339 = vshrl.u32 %v2338, 7
  %v2340 = vsub.s32 2, %v2339
  %v2341 = vrot.slane %v1305, %v2340
  %v2342 = vlaneseq
  %v2343 = vshrl.u32 %v2342, 7
  %v2344 = vsub.s32 3, %v2343
  %v2345 = vrot.slane %v1305, %v2344
  %v2346 = vlaneseq
  %v2347 = vshrl.u32 %v2346, 7
  %v2348 = vsub.s32 4, %v2347
  %v2349 = vrot.slane %v1305, %v2348
  %v2350 = vlaneseq
  %v2351 = vshrl.u32 %v2350, 7
  %v2352 = vsub.s32 5, %v2351
  %v2353 = vrot.slane %v1305, %v2352
  %v2354 = vlaneseq
  %v2355 = vshrl.u32 %v2354, 7
  %v2356 = vsub.s32 6, %v2355
  %v2357 = vrot.slane %v1305, %v2356
  %v2358 = vlaneseq
  %v2359 = vshrl.u32 %v2358, 7
  %v2360 = vsub.s32 7, %v2359
  %v2361 = vrot.slane %v1305, %v2360
  %v2362 = vcombine.low %v1341, %v1345
  %v2363 = vcombine.low %v1349, %v1353
  %v2364 = vcombine.low %v1357, %v1361
  %v2365 = vcombine.low %v1365, %v1369
  %v2367 = vunpack.c.l.s4 1966171168
  %v2368 = vunpack.c.0.s8 %v2367
  %v2369 = vlaneseq
  %v2370 = vshrl.u32 %v2369, 7
  %v2371 = vsub.s32 %v2368, %v2370
  %v2372 = vrot.slane %v2362, %v2371
  %v2374 = vunpack.c.l.s4 1966171168
  %v2375 = vunpack.c.0.s8 %v2374
  %v2376 = vlaneseq
  %v2377 = vshrl.u32 %v2376, 7
  %v2378 = vsub.s32 %v2375, %v2377
  %v2379 = vrot.slane %v2363, %v2378
  %v2381 = vunpack.c.l.s4 1966171168
  %v2382 = vunpack.c.0.s8 %v2381
  %v2383 = vlaneseq
  %v2384 = vshrl.u32 %v2383, 7
  %v2385 = vsub.s32 %v2382, %v2384
  %v2386 = vrot.slane %v2364, %v2385
  %v2388 = vunpack.c.l.s4 1966171168
  %v2389 = vunpack.c.0.s8 %v2388
  %v2390 = vlaneseq
  %v2391 = vshrl.u32 %v2390, 7
  %v2392 = vsub.s32 %v2389, %v2391
  %v2393 = vrot.slane %v2365, %v2392
  %v2394 = vcombine.low %v2372, %v2379
  %v2395 = vcombine.low %v2386, %v2393
  %v2397 = vunpack.c.l.s4 1966171168
  %v2398 = vunpack.c.0.s8 %v2397
  %v2399 = vlaneseq
  %v2400 = vshrl.u32 %v2399, 7
  %v2401 = vsub.s32 %v2398, %v2400
  %v2402 = vrot.slane %v2394, %v2401
  %v2404 = vunpack.c.l.s4 1966171168
  %v2405 = vunpack.c.0.s8 %v2404
  %v2406 = vlaneseq
  %v2407 = vshrl.u32 %v2406, 7
  %v2408 = vsub.s32 %v2405, %v2407
  %v2409 = vrot.slane %v2395, %v2408
  %v2410 = vcombine.low %v2402, %v2409
  %v2411 = vcombine.low %v1373, %v1377
  %v2412 = vcombine.low %v1381, %v1385
  %v2413 = vcombine.low %v1389, %v1393
  %v2414 = vcombine.low %v1397, %v1401
  %v2416 = vunpack.c.l.s4 1966171168
  %v2417 = vunpack.c.0.s8 %v2416
  %v2418 = vlaneseq
  %v2419 = vshrl.u32 %v2418, 7
  %v2420 = vsub.s32 %v2417, %v2419
  %v2421 = vrot.slane %v2411, %v2420
  %v2423 = vunpack.c.l.s4 1966171168
  %v2424 = vunpack.c.0.s8 %v2423
  %v2425 = vlaneseq
  %v2426 = vshrl.u32 %v2425, 7
  %v2427 = vsub.s32 %v2424, %v2426
  %v2428 = vrot.slane %v2412, %v2427
  %v2430 = vunpack.c.l.s4 1966171168
  %v2431 = vunpack.c.0.s8 %v2430
  %v2432 = vlaneseq
  %v2433 = vshrl.u32 %v2432, 7
  %v2434 = vsub.s32 %v2431, %v2433
  %v2435 = vrot.slane %v2413, %v2434
  %v2437 = vunpack.c.l.s4 1966171168
  %v2438 = vunpack.c.0.s8 %v2437
  %v2439 = vlaneseq
  %v2440 = vshrl.u32 %v2439, 7
  %v2441 = vsub.s32 %v2438, %v2440
  %v2442 = vrot.slane %v2414, %v2441
  %v2443 = vcombine.low %v2421, %v2428
  %v2444 = vcombine.low %v2435, %v2442
  %v2446 = vunpack.c.l.s4 1966171168
  %v2447 = vunpack.c.0.s8 %v2446
  %v2448 = vlaneseq
  %v2449 = vshrl.u32 %v2448, 7
  %v2450 = vsub.s32 %v2447, %v2449
  %v2451 = vrot.slane %v2443, %v2450
  %v2453 = vunpack.c.l.s4 1966171168
  %v2454 = vunpack.c.0.s8 %v2453
  %v2455 = vlaneseq
  %v2456 = vshrl.u32 %v2455, 7
  %v2457 = vsub.s32 %v2454, %v2456
  %v2458 = vrot.slane %v2444, %v2457
  %v2459 = vcombine.low %v2451, %v2458
  %v2460 = vcombine.low %v1405, %v1409
  %v2461 = vcombine.low %v1413, %v1417
  %v2462 = vcombine.low %v1421, %v1425
  %v2463 = vcombine.low %v1429, %v1433
  %v2465 = vunpack.c.l.s4 1966171168
  %v2466 = vunpack.c.0.s8 %v2465
  %v2467 = vlaneseq
  %v2468 = vshrl.u32 %v2467, 7
  %v2469 = vsub.s32 %v2466, %v2468
  %v2470 = vrot.slane %v2460, %v2469
  %v2472 = vunpack.c.l.s4 1966171168
  %v2473 = vunpack.c.0.s8 %v2472
  %v2474 = vlaneseq
  %v2475 = vshrl.u32 %v2474, 7
  %v2476 = vsub.s32 %v2473, %v2475
  %v2477 = vrot.slane %v2461, %v2476
  %v2479 = vunpack.c.l.s4 1966171168
  %v2480 = vunpack.c.0.s8 %v2479
  %v2481 = vlaneseq
  %v2482 = vshrl.u32 %v2481, 7
  %v2483 = vsub.s32 %v2480, %v2482
  %v2484 = vrot.slane %v2462, %v2483
  %v2486 = vunpack.c.l.s4 1966171168
  %v2487 = vunpack.c.0.s8 %v2486
  %v2488 = vlaneseq
  %v2489 = vshrl.u32 %v2488, 7
  %v2490 = vsub.s32 %v2487, %v2489
  %v2491 = vrot.slane %v2463, %v2490
  %v2492 = vcombine.low %v2470, %v2477
  %v2493 = vcombine.low %v2484, %v2491
  %v2495 = vunpack.c.l.s4 1966171168
  %v2496 = vunpack.c.0.s8 %v2495
  %v2497 = vlaneseq
  %v2498 = vshrl.u32 %v2497, 7
  %v2499 = vsub.s32 %v2496, %v2498
  %v2500 = vrot.slane %v2492, %v2499
  %v2502 = vunpack.c.l.s4 1966171168
  %v2503 = vunpack.c.0.s8 %v2502
  %v2504 = vlaneseq
  %v2505 = vshrl.u32 %v2504, 7
  %v2506 = vsub.s32 %v2503, %v2505
  %v2507 = vrot.slane %v2493, %v2506
  %v2508 = vcombine.low %v2500, %v2507
  %v2509 = vcombine.low %v1437, %v1441
  %v2510 = vcombine.low %v1445, %v1449
  %v2511 = vcombine.low %v1453, %v1457
  %v2512 = vcombine.low %v1461, %v1465
  %v2514 = vunpack.c.l.s4 1966171168
  %v2515 = vunpack.c.0.s8 %v2514
  %v2516 = vlaneseq
  %v2517 = vshrl.u32 %v2516, 7
  %v2518 = vsub.s32 %v2515, %v2517
  %v2519 = vrot.slane %v2509, %v2518
  %v2521 = vunpack.c.l.s4 1966171168
  %v2522 = vunpack.c.0.s8 %v2521
  %v2523 = vlaneseq
  %v2524 = vshrl.u32 %v2523, 7
  %v2525 = vsub.s32 %v2522, %v2524
  %v2526 = vrot.slane %v2510, %v2525
  %v2528 = vunpack.c.l.s4 1966171168
  %v2529 = vunpack.c.0.s8 %v2528
  %v2530 = vlaneseq
  %v2531 = vshrl.u32 %v2530, 7
  %v2532 = vsub.s32 %v2529, %v2531
  %v2533 = vrot.slane %v2511, %v2532
  %v2535 = vunpack.c.l.s4 1966171168
  %v2536 = vunpack.c.0.s8 %v2535
  %v2537 = vlaneseq
  %v2538 = vshrl.u32 %v2537, 7
  %v2539 = vsub.s32 %v2536, %v2538
  %v2540 = vrot.slane %v2512, %v2539
  %v2541 = vcombine.low %v2519, %v2526
  %v2542 = vcombine.low %v2533, %v2540
  %v2544 = vunpack.c.l.s4 1966171168
  %v2545 = vunpack.c.0.s8 %v2544
  %v2546 = vlaneseq
  %v2547 = vshrl.u32 %v2546, 7
  %v2548 = vsub.s32 %v2545, %v2547
  %v2549 = vrot.slane %v2541, %v2548
  %v2551 = vunpack.c.l.s4 1966171168
  %v2552 = vunpack.c.0.s8 %v2551
  %v2553 = vlaneseq
  %v2554 = vshrl.u32 %v2553, 7
  %v2555 = vsub.s32 %v2552, %v2554
  %v2556 = vrot.slane %v2542, %v2555
  %v2557 = vcombine.low %v2549, %v2556
  %v2558 = vcombine.low %v1469, %v1473
  %v2559 = vcombine.low %v1477, %v1481
  %v2560 = vcombine.low %v1485, %v1489
  %v2561 = vcombine.low %v1493, %v1497
  %v2563 = vunpack.c.l.s4 1966171168
  %v2564 = vunpack.c.0.s8 %v2563
  %v2565 = vlaneseq
  %v2566 = vshrl.u32 %v2565, 7
  %v2567 = vsub.s32 %v2564, %v2566
  %v2568 = vrot.slane %v2558, %v2567
  %v2570 = vunpack.c.l.s4 1966171168
  %v2571 = vunpack.c.0.s8 %v2570
  %v2572 = vlaneseq
  %v2573 = vshrl.u32 %v2572, 7
  %v2574 = vsub.s32 %v2571, %v2573
  %v2575 = vrot.slane %v2559, %v2574
  %v2577 = vunpack.c.l.s4 1966171168
  %v2578 = vunpack.c.0.s8 %v2577
  %v2579 = vlaneseq
  %v2580 = vshrl.u32 %v2579, 7
  %v2581 = vsub.s32 %v2578, %v2580
  %v2582 = vrot.slane %v2560, %v2581
  %v2584 = vunpack.c.l.s4 1966171168
  %v2585 = vunpack.c.0.s8 %v2584
  %v2586 = vlaneseq
  %v2587 = vshrl.u32 %v2586, 7
  %v2588 = vsub.s32 %v2585, %v2587
  %v2589 = vrot.slane %v2561, %v2588
  %v2590 = vcombine.low %v2568, %v2575
  %v2591 = vcombine.low %v2582, %v2589
  %v2593 = vunpack.c.l.s4 1966171168
  %v2594 = vunpack.c.0.s8 %v2593
  %v2595 = vlaneseq
  %v2596 = vshrl.u32 %v2595, 7
  %v2597 = vsub.s32 %v2594, %v2596
  %v2598 = vrot.slane %v2590, %v2597
  %v2600 = vunpack.c.l.s4 1966171168
  %v2601 = vunpack.c.0.s8 %v2600
  %v2602 = vlaneseq
  %v2603 = vshrl.u32 %v2602, 7
  %v2604 = vsub.s32 %v2601, %v2603
  %v2605 = vrot.slane %v2591, %v2604
  %v2606 = vcombine.low %v2598, %v2605
  %v2607 = vcombine.low %v1501, %v1505
  %v2608 = vcombine.low %v1509, %v1513
  %v2609 = vcombine.low %v1517, %v1521
  %v2610 = vcombine.low %v1525, %v1529
  %v2612 = vunpack.c.l.s4 1966171168
  %v2613 = vunpack.c.0.s8 %v2612
  %v2614 = vlaneseq
  %v2615 = vshrl.u32 %v2614, 7
  %v2616 = vsub.s32 %v2613, %v2615
  %v2617 = vrot.slane %v2607, %v2616
  %v2619 = vunpack.c.l.s4 1966171168
  %v2620 = vunpack.c.0.s8 %v2619
  %v2621 = vlaneseq
  %v2622 = vshrl.u32 %v2621, 7
  %v2623 = vsub.s32 %v2620, %v2622
  %v2624 = vrot.slane %v2608, %v2623
  %v2626 = vunpack.c.l.s4 1966171168
  %v2627 = vunpack.c.0.s8 %v2626
  %v2628 = vlaneseq
  %v2629 = vshrl.u32 %v2628, 7
  %v2630 = vsub.s32 %v2627, %v2629
  %v2631 = vrot.slane %v2609, %v2630
  %v2633 = vunpack.c.l.s4 1966171168
  %v2634 = vunpack.c.0.s8 %v2633
  %v2635 = vlaneseq
  %v2636 = vshrl.u32 %v2635, 7
  %v2637 = vsub.s32 %v2634, %v2636
  %v2638 = vrot.slane %v2610, %v2637
  %v2639 = vcombine.low %v2617, %v2624
  %v2640 = vcombine.low %v2631, %v2638
  %v2642 = vunpack.c.l.s4 1966171168
  %v2643 = vunpack.c.0.s8 %v2642
  %v2644 = vlaneseq
  %v2645 = vshrl.u32 %v2644, 7
  %v2646 = vsub.s32 %v2643, %v2645
  %v2647 = vrot.slane %v2639, %v2646
  %v2649 = vunpack.c.l.s4 1966171168
  %v2650 = vunpack.c.0.s8 %v2649
  %v2651 = vlaneseq
  %v2652 = vshrl.u32 %v2651, 7
  %v2653 = vsub.s32 %v2650, %v2652
  %v2654 = vrot.slane %v2640, %v2653
  %v2655 = vcombine.low %v2647, %v2654
  %v2656 = vcombine.low %v1533, %v1537
  %v2657 = vcombine.low %v1541, %v1545
  %v2658 = vcombine.low %v1549, %v1553
  %v2659 = vcombine.low %v1557, %v1561
  %v2661 = vunpack.c.l.s4 1966171168
  %v2662 = vunpack.c.0.s8 %v2661
  %v2663 = vlaneseq
  %v2664 = vshrl.u32 %v2663, 7
  %v2665 = vsub.s32 %v2662, %v2664
  %v2666 = vrot.slane %v2656, %v2665
  %v2668 = vunpack.c.l.s4 1966171168
  %v2669 = vunpack.c.0.s8 %v2668
  %v2670 = vlaneseq
  %v2671 = vshrl.u32 %v2670, 7
  %v2672 = vsub.s32 %v2669, %v2671
  %v2673 = vrot.slane %v2657, %v2672
  %v2675 = vunpack.c.l.s4 1966171168
  %v2676 = vunpack.c.0.s8 %v2675
  %v2677 = vlaneseq
  %v2678 = vshrl.u32 %v2677, 7
  %v2679 = vsub.s32 %v2676, %v2678
  %v2680 = vrot.slane %v2658, %v2679
  %v2682 = vunpack.c.l.s4 1966171168
  %v2683 = vunpack.c.0.s8 %v2682
  %v2684 = vlaneseq
  %v2685 = vshrl.u32 %v2684, 7
  %v2686 = vsub.s32 %v2683, %v2685
  %v2687 = vrot.slane %v2659, %v2686
  %v2688 = vcombine.low %v2666, %v2673
  %v2689 = vcombine.low %v2680, %v2687
  %v2691 = vunpack.c.l.s4 1966171168
  %v2692 = vunpack.c.0.s8 %v2691
  %v2693 = vlaneseq
  %v2694 = vshrl.u32 %v2693, 7
  %v2695 = vsub.s32 %v2692, %v2694
  %v2696 = vrot.slane %v2688, %v2695
  %v2698 = vunpack.c.l.s4 1966171168
  %v2699 = vunpack.c.0.s8 %v2698
  %v2700 = vlaneseq
  %v2701 = vshrl.u32 %v2700, 7
  %v2702 = vsub.s32 %v2699, %v2701
  %v2703 = vrot.slane %v2689, %v2702
  %v2704 = vcombine.low %v2696, %v2703
  %v2705 = vcombine.low %v1565, %v1569
  %v2706 = vcombine.low %v1573, %v1577
  %v2707 = vcombine.low %v1581, %v1585
  %v2708 = vcombine.low %v1589, %v1593
  %v2710 = vunpack.c.l.s4 1966171168
  %v2711 = vunpack.c.0.s8 %v2710
  %v2712 = vlaneseq
  %v2713 = vshrl.u32 %v2712, 7
  %v2714 = vsub.s32 %v2711, %v2713
  %v2715 = vrot.slane %v2705, %v2714
  %v2717 = vunpack.c.l.s4 1966171168
  %v2718 = vunpack.c.0.s8 %v2717
  %v2719 = vlaneseq
  %v2720 = vshrl.u32 %v2719, 7
  %v2721 = vsub.s32 %v2718, %v2720
  %v2722 = vrot.slane %v2706, %v2721
  %v2724 = vunpack.c.l.s4 1966171168
  %v2725 = vunpack.c.0.s8 %v2724
  %v2726 = vlaneseq
  %v2727 = vshrl.u32 %v2726, 7
  %v2728 = vsub.s32 %v2725, %v2727
  %v2729 = vrot.slane %v2707, %v2728
  %v2731 = vunpack.c.l.s4 1966171168
  %v2732 = vunpack.c.0.s8 %v2731
  %v2733 = vlaneseq
  %v2734 = vshrl.u32 %v2733, 7
  %v2735 = vsub.s32 %v2732, %v2734
  %v2736 = vrot.slane %v2708, %v2735
  %v2737 = vcombine.low %v2715, %v2722
  %v2738 = vcombine.low %v2729, %v2736
  %v2740 = vunpack.c.l.s4 1966171168
  %v2741 = vunpack.c.0.s8 %v2740
  %v2742 = vlaneseq
  %v2743 = vshrl.u32 %v2742, 7
  %v2744 = vsub.s32 %v2741, %v2743
  %v2745 = vrot.slane %v2737, %v2744
  %v2747 = vunpack.c.l.s4 1966171168
  %v2748 = vunpack.c.0.s8 %v2747
  %v2749 = vlaneseq
  %v2750 = vshrl.u32 %v2749, 7
  %v2751 = vsub.s32 %v2748, %v2750
  %v2752 = vrot.slane %v2738, %v2751
  %v2753 = vcombine.low %v2745, %v2752
  %v2754 = vcombine.low %v1597, %v1601
  %v2755 = vcombine.low %v1605, %v1609
  %v2756 = vcombine.low %v1613, %v1617
  %v2757 = vcombine.low %v1621, %v1625
  %v2759 = vunpack.c.l.s4 1966171168
  %v2760 = vunpack.c.0.s8 %v2759
  %v2761 = vlaneseq
  %v2762 = vshrl.u32 %v2761, 7
  %v2763 = vsub.s32 %v2760, %v2762
  %v2764 = vrot.slane %v2754, %v2763
  %v2766 = vunpack.c.l.s4 1966171168
  %v2767 = vunpack.c.0.s8 %v2766
  %v2768 = vlaneseq
  %v2769 = vshrl.u32 %v2768, 7
  %v2770 = vsub.s32 %v2767, %v2769
  %v2771 = vrot.slane %v2755, %v2770
  %v2773 = vunpack.c.l.s4 1966171168
  %v2774 = vunpack.c.0.s8 %v2773
  %v2775 = vlaneseq
  %v2776 = vshrl.u32 %v2775, 7
  %v2777 = vsub.s32 %v2774, %v2776
  %v2778 = vrot.slane %v2756, %v2777
  %v2780 = vunpack.c.l.s4 1966171168
  %v2781 = vunpack.c.0.s8 %v2780
  %v2782 = vlaneseq
  %v2783 = vshrl.u32 %v2782, 7
  %v2784 = vsub.s32 %v2781, %v2783
  %v2785 = vrot.slane %v2757, %v2784
  %v2786 = vcombine.low %v2764, %v2771
  %v2787 = vcombine.low %v2778, %v2785
  %v2789 = vunpack.c.l.s4 1966171168
  %v2790 = vunpack.c.0.s8 %v2789
  %v2791 = vlaneseq
  %v2792 = vshrl.u32 %v2791, 7
  %v2793 = vsub.s32 %v2790, %v2792
  %v2794 = vrot.slane %v2786, %v2793
  %v2796 = vunpack.c.l.s4 1966171168
  %v2797 = vunpack.c.0.s8 %v2796
  %v2798 = vlaneseq
  %v2799 = vshrl.u32 %v2798, 7
  %v2800 = vsub.s32 %v2797, %v2799
  %v2801 = vrot.slane %v2787, %v2800
  %v2802 = vcombine.low %v2794, %v2801
  %v2803 = vcombine.low %v1629, %v1633
  %v2804 = vcombine.low %v1637, %v1641
  %v2805 = vcombine.low %v1645, %v1649
  %v2806 = vcombine.low %v1653, %v1657
  %v2808 = vunpack.c.l.s4 1966171168
  %v2809 = vunpack.c.0.s8 %v2808
  %v2810 = vlaneseq
  %v2811 = vshrl.u32 %v2810, 7
  %v2812 = vsub.s32 %v2809, %v2811
  %v2813 = vrot.slane %v2803, %v2812
  %v2815 = vunpack.c.l.s4 1966171168
  %v2816 = vunpack.c.0.s8 %v2815
  %v2817 = vlaneseq
  %v2818 = vshrl.u32 %v2817, 7
  %v2819 = vsub.s32 %v2816, %v2818
  %v2820 = vrot.slane %v2804, %v2819
  %v2822 = vunpack.c.l.s4 1966171168
  %v2823 = vunpack.c.0.s8 %v2822
  %v2824 = vlaneseq
  %v2825 = vshrl.u32 %v2824, 7
  %v2826 = vsub.s32 %v2823, %v2825
  %v2827 = vrot.slane %v2805, %v2826
  %v2829 = vunpack.c.l.s4 1966171168
  %v2830 = vunpack.c.0.s8 %v2829
  %v2831 = vlaneseq
  %v2832 = vshrl.u32 %v2831, 7
  %v2833 = vsub.s32 %v2830, %v2832
  %v2834 = vrot.slane %v2806, %v2833
  %v2835 = vcombine.low %v2813, %v2820
  %v2836 = vcombine.low %v2827, %v2834
  %v2838 = vunpack.c.l.s4 1966171168
  %v2839 = vunpack.c.0.s8 %v2838
  %v2840 = vlaneseq
  %v2841 = vshrl.u32 %v2840, 7
  %v2842 = vsub.s32 %v2839, %v2841
  %v2843 = vrot.slane %v2835, %v2842
  %v2845 = vunpack.c.l.s4 1966171168
  %v2846 = vunpack.c.0.s8 %v2845
  %v2847 = vlaneseq
  %v2848 = vshrl.u32 %v2847, 7
  %v2849 = vsub.s32 %v2846, %v2848
  %v2850 = vrot.slane %v2836, %v2849
  %v2851 = vcombine.low %v2843, %v2850
  %v2852 = vcombine.low %v1661, %v1665
  %v2853 = vcombine.low %v1669, %v1673
  %v2854 = vcombine.low %v1677, %v1681
  %v2855 = vcombine.low %v1685, %v1689
  %v2857 = vunpack.c.l.s4 1966171168
  %v2858 = vunpack.c.0.s8 %v2857
  %v2859 = vlaneseq
  %v2860 = vshrl.u32 %v2859, 7
  %v2861 = vsub.s32 %v2858, %v2860
  %v2862 = vrot.slane %v2852, %v2861
  %v2864 = vunpack.c.l.s4 1966171168
  %v2865 = vunpack.c.0.s8 %v2864
  %v2866 = vlaneseq
  %v2867 = vshrl.u32 %v2866, 7
  %v2868 = vsub.s32 %v2865, %v2867
  %v2869 = vrot.slane %v2853, %v2868
  %v2871 = vunpack.c.l.s4 1966171168
  %v2872 = vunpack.c.0.s8 %v2871
  %v2873 = vlaneseq
  %v2874 = vshrl.u32 %v2873, 7
  %v2875 = vsub.s32 %v2872, %v2874
  %v2876 = vrot.slane %v2854, %v2875
  %v2878 = vunpack.c.l.s4 1966171168
  %v2879 = vunpack.c.0.s8 %v2878
  %v2880 = vlaneseq
  %v2881 = vshrl.u32 %v2880, 7
  %v2882 = vsub.s32 %v2879, %v2881
  %v2883 = vrot.slane %v2855, %v2882
  %v2884 = vcombine.low %v2862, %v2869
  %v2885 = vcombine.low %v2876, %v2883
  %v2887 = vunpack.c.l.s4 1966171168
  %v2888 = vunpack.c.0.s8 %v2887
  %v2889 = vlaneseq
  %v2890 = vshrl.u32 %v2889, 7
  %v2891 = vsub.s32 %v2888, %v2890
  %v2892 = vrot.slane %v2884, %v2891
  %v2894 = vunpack.c.l.s4 1966171168
  %v2895 = vunpack.c.0.s8 %v2894
  %v2896 = vlaneseq
  %v2897 = vshrl.u32 %v2896, 7
  %v2898 = vsub.s32 %v2895, %v2897
  %v2899 = vrot.slane %v2885, %v2898
  %v2900 = vcombine.low %v2892, %v2899
  %v2901 = vcombine.low %v1693, %v1697
  %v2902 = vcombine.low %v1701, %v1705
  %v2903 = vcombine.low %v1709, %v1713
  %v2904 = vcombine.low %v1717, %v1721
  %v2906 = vunpack.c.l.s4 1966171168
  %v2907 = vunpack.c.0.s8 %v2906
  %v2908 = vlaneseq
  %v2909 = vshrl.u32 %v2908, 7
  %v2910 = vsub.s32 %v2907, %v2909
  %v2911 = vrot.slane %v2901, %v2910
  %v2913 = vunpack.c.l.s4 1966171168
  %v2914 = vunpack.c.0.s8 %v2913
  %v2915 = vlaneseq
  %v2916 = vshrl.u32 %v2915, 7
  %v2917 = vsub.s32 %v2914, %v2916
  %v2918 = vrot.slane %v2902, %v2917
  %v2920 = vunpack.c.l.s4 1966171168
  %v2921 = vunpack.c.0.s8 %v2920
  %v2922 = vlaneseq
  %v2923 = vshrl.u32 %v2922, 7
  %v2924 = vsub.s32 %v2921, %v2923
  %v2925 = vrot.slane %v2903, %v2924
  %v2927 = vunpack.c.l.s4 1966171168
  %v2928 = vunpack.c.0.s8 %v2927
  %v2929 = vlaneseq
  %v2930 = vshrl.u32 %v2929, 7
  %v2931 = vsub.s32 %v2928, %v2930
  %v2932 = vrot.slane %v2904, %v2931
  %v2933 = vcombine.low %v2911, %v2918
  %v2934 = vcombine.low %v2925, %v2932
  %v2936 = vunpack.c.l.s4 1966171168
  %v2937 = vunpack.c.0.s8 %v2936
  %v2938 = vlaneseq
  %v2939 = vshrl.u32 %v2938, 7
  %v2940 = vsub.s32 %v2937, %v2939
  %v2941 = vrot.slane %v2933, %v2940
  %v2943 = vunpack.c.l.s4 1966171168
  %v2944 = vunpack.c.0.s8 %v2943
  %v2945 = vlaneseq
  %v2946 = vshrl.u32 %v2945, 7
  %v2947 = vsub.s32 %v2944, %v2946
  %v2948 = vrot.slane %v2934, %v2947
  %v2949 = vcombine.low %v2941, %v2948
  %v2950 = vcombine.low %v1725, %v1729
  %v2951 = vcombine.low %v1733, %v1737
  %v2952 = vcombine.low %v1741, %v1745
  %v2953 = vcombine.low %v1749, %v1753
  %v2955 = vunpack.c.l.s4 1966171168
  %v2956 = vunpack.c.0.s8 %v2955
  %v2957 = vlaneseq
  %v2958 = vshrl.u32 %v2957, 7
  %v2959 = vsub.s32 %v2956, %v2958
  %v2960 = vrot.slane %v2950, %v2959
  %v2962 = vunpack.c.l.s4 1966171168
  %v2963 = vunpack.c.0.s8 %v2962
  %v2964 = vlaneseq
  %v2965 = vshrl.u32 %v2964, 7
  %v2966 = vsub.s32 %v2963, %v2965
  %v2967 = vrot.slane %v2951, %v2966
  %v2969 = vunpack.c.l.s4 1966171168
  %v2970 = vunpack.c.0.s8 %v2969
  %v2971 = vlaneseq
  %v2972 = vshrl.u32 %v2971, 7
  %v2973 = vsub.s32 %v2970, %v2972
  %v2974 = vrot.slane %v2952, %v2973
  %v2976 = vunpack.c.l.s4 1966171168
  %v2977 = vunpack.c.0.s8 %v2976
  %v2978 = vlaneseq
  %v2979 = vshrl.u32 %v2978, 7
  %v2980 = vsub.s32 %v2977, %v2979
  %v2981 = vrot.slane %v2953, %v2980
  %v2982 = vcombine.low %v2960, %v2967
  %v2983 = vcombine.low %v2974, %v2981
  %v2985 = vunpack.c.l.s4 1966171168
  %v2986 = vunpack.c.0.s8 %v2985
  %v2987 = vlaneseq
  %v2988 = vshrl.u32 %v2987, 7
  %v2989 = vsub.s32 %v2986, %v2988
  %v2990 = vrot.slane %v2982, %v2989
  %v2992 = vunpack.c.l.s4 1966171168
  %v2993 = vunpack.c.0.s8 %v2992
  %v2994 = vlaneseq
  %v2995 = vshrl.u32 %v2994, 7
  %v2996 = vsub.s32 %v2993, %v2995
  %v2997 = vrot.slane %v2983, %v2996
  %v2998 = vcombine.low %v2990, %v2997
  %v2999 = vcombine.low %v1757, %v1761
  %v3000 = vcombine.low %v1765, %v1769
  %v3001 = vcombine.low %v1773, %v1777
  %v3002 = vcombine.low %v1781, %v1785
  %v3004 = vunpack.c.l.s4 1966171168
  %v3005 = vunpack.c.0.s8 %v3004
  %v3006 = vlaneseq
  %v3007 = vshrl.u32 %v3006, 7
  %v3008 = vsub.s32 %v3005, %v3007
  %v3009 = vrot.slane %v2999, %v3008
  %v3011 = vunpack.c.l.s4 1966171168
  %v3012 = vunpack.c.0.s8 %v3011
  %v3013 = vlaneseq
  %v3014 = vshrl.u32 %v3013, 7
  %v3015 = vsub.s32 %v3012, %v3014
  %v3016 = vrot.slane %v3000, %v3015
  %v3018 = vunpack.c.l.s4 1966171168
  %v3019 = vunpack.c.0.s8 %v3018
  %v3020 = vlaneseq
  %v3021 = vshrl.u32 %v3020, 7
  %v3022 = vsub.s32 %v3019, %v3021
  %v3023 = vrot.slane %v3001, %v3022
  %v3025 = vunpack.c.l.s4 1966171168
  %v3026 = vunpack.c.0.s8 %v3025
  %v3027 = vlaneseq
  %v3028 = vshrl.u32 %v3027, 7
  %v3029 = vsub.s32 %v3026, %v3028
  %v3030 = vrot.slane %v3002, %v3029
  %v3031 = vcombine.low %v3009, %v3016
  %v3032 = vcombine.low %v3023, %v3030
  %v3034 = vunpack.c.l.s4 1966171168
  %v3035 = vunpack.c.0.s8 %v3034
  %v3036 = vlaneseq
  %v3037 = vshrl.u32 %v3036, 7
  %v3038 = vsub.s32 %v3035, %v3037
  %v3039 = vrot.slane %v3031, %v3038
  %v3041 = vunpack.c.l.s4 1966171168
  %v3042 = vunpack.c.0.s8 %v3041
  %v3043 = vlaneseq
  %v3044 = vshrl.u32 %v3043, 7
  %v3045 = vsub.s32 %v3042, %v3044
  %v3046 = vrot.slane %v3032, %v3045
  %v3047 = vcombine.low %v3039, %v3046
  %v3048 = vcombine.low %v1789, %v1793
  %v3049 = vcombine.low %v1797, %v1801
  %v3050 = vcombine.low %v1805, %v1809
  %v3051 = vcombine.low %v1813, %v1817
  %v3053 = vunpack.c.l.s4 1966171168
  %v3054 = vunpack.c.0.s8 %v3053
  %v3055 = vlaneseq
  %v3056 = vshrl.u32 %v3055, 7
  %v3057 = vsub.s32 %v3054, %v3056
  %v3058 = vrot.slane %v3048, %v3057
  %v3060 = vunpack.c.l.s4 1966171168
  %v3061 = vunpack.c.0.s8 %v3060
  %v3062 = vlaneseq
  %v3063 = vshrl.u32 %v3062, 7
  %v3064 = vsub.s32 %v3061, %v3063
  %v3065 = vrot.slane %v3049, %v3064
  %v3067 = vunpack.c.l.s4 1966171168
  %v3068 = vunpack.c.0.s8 %v3067
  %v3069 = vlaneseq
  %v3070 = vshrl.u32 %v3069, 7
  %v3071 = vsub.s32 %v3068, %v3070
  %v3072 = vrot.slane %v3050, %v3071
  %v3074 = vunpack.c.l.s4 1966171168
  %v3075 = vunpack.c.0.s8 %v3074
  %v3076 = vlaneseq
  %v3077 = vshrl.u32 %v3076, 7
  %v3078 = vsub.s32 %v3075, %v3077
  %v3079 = vrot.slane %v3051, %v3078
  %v3080 = vcombine.low %v3058, %v3065
  %v3081 = vcombine.low %v3072, %v3079
  %v3083 = vunpack.c.l.s4 1966171168
  %v3084 = vunpack.c.0.s8 %v3083
  %v3085 = vlaneseq
  %v3086 = vshrl.u32 %v3085, 7
  %v3087 = vsub.s32 %v3084, %v3086
  %v3088 = vrot.slane %v3080, %v3087
  %v3090 = vunpack.c.l.s4 1966171168
  %v3091 = vunpack.c.0.s8 %v3090
  %v3092 = vlaneseq
  %v3093 = vshrl.u32 %v3092, 7
  %v3094 = vsub.s32 %v3091, %v3093
  %v3095 = vrot.slane %v3081, %v3094
  %v3096 = vcombine.low %v3088, %v3095
  %v3097 = vcombine.low %v1821, %v1825
  %v3098 = vcombine.low %v1829, %v1833
  %v3099 = vcombine.low %v1837, %v1841
  %v3100 = vcombine.low %v1845, %v1849
  %v3102 = vunpack.c.l.s4 1966171168
  %v3103 = vunpack.c.0.s8 %v3102
  %v3104 = vlaneseq
  %v3105 = vshrl.u32 %v3104, 7
  %v3106 = vsub.s32 %v3103, %v3105
  %v3107 = vrot.slane %v3097, %v3106
  %v3109 = vunpack.c.l.s4 1966171168
  %v3110 = vunpack.c.0.s8 %v3109
  %v3111 = vlaneseq
  %v3112 = vshrl.u32 %v3111, 7
  %v3113 = vsub.s32 %v3110, %v3112
  %v3114 = vrot.slane %v3098, %v3113
  %v3116 = vunpack.c.l.s4 1966171168
  %v3117 = vunpack.c.0.s8 %v3116
  %v3118 = vlaneseq
  %v3119 = vshrl.u32 %v3118, 7
  %v3120 = vsub.s32 %v3117, %v3119
  %v3121 = vrot.slane %v3099, %v3120
  %v3123 = vunpack.c.l.s4 1966171168
  %v3124 = vunpack.c.0.s8 %v3123
  %v3125 = vlaneseq
  %v3126 = vshrl.u32 %v3125, 7
  %v3127 = vsub.s32 %v3124, %v3126
  %v3128 = vrot.slane %v3100, %v3127
  %v3129 = vcombine.low %v3107, %v3114
  %v3130 = vcombine.low %v3121, %v3128
  %v3132 = vunpack.c.l.s4 1966171168
  %v3133 = vunpack.c.0.s8 %v3132
  %v3134 = vlaneseq
  %v3135 = vshrl.u32 %v3134, 7
  %v3136 = vsub.s32 %v3133, %v3135
  %v3137 = vrot.slane %v3129, %v3136
  %v3139 = vunpack.c.l.s4 1966171168
  %v3140 = vunpack.c.0.s8 %v3139
  %v3141 = vlaneseq
  %v3142 = vshrl.u32 %v3141, 7
  %v3143 = vsub.s32 %v3140, %v3142
  %v3144 = vrot.slane %v3130, %v3143
  %v3145 = vcombine.low %v3137, %v3144
  %v3146 = vcombine.low %v1853, %v1857
  %v3147 = vcombine.low %v1861, %v1865
  %v3148 = vcombine.low %v1869, %v1873
  %v3149 = vcombine.low %v1877, %v1881
  %v3151 = vunpack.c.l.s4 1966171168
  %v3152 = vunpack.c.0.s8 %v3151
  %v3153 = vlaneseq
  %v3154 = vshrl.u32 %v3153, 7
  %v3155 = vsub.s32 %v3152, %v3154
  %v3156 = vrot.slane %v3146, %v3155
  %v3158 = vunpack.c.l.s4 1966171168
  %v3159 = vunpack.c.0.s8 %v3158
  %v3160 = vlaneseq
  %v3161 = vshrl.u32 %v3160, 7
  %v3162 = vsub.s32 %v3159, %v3161
  %v3163 = vrot.slane %v3147, %v3162
  %v3165 = vunpack.c.l.s4 1966171168
  %v3166 = vunpack.c.0.s8 %v3165
  %v3167 = vlaneseq
  %v3168 = vshrl.u32 %v3167, 7
  %v3169 = vsub.s32 %v3166, %v3168
  %v3170 = vrot.slane %v3148, %v3169
  %v3172 = vunpack.c.l.s4 1966171168
  %v3173 = vunpack.c.0.s8 %v3172
  %v3174 = vlaneseq
  %v3175 = vshrl.u32 %v3174, 7
  %v3176 = vsub.s32 %v3173, %v3175
  %v3177 = vrot.slane %v3149, %v3176
  %v3178 = vcombine.low %v3156, %v3163
  %v3179 = vcombine.low %v3170, %v3177
  %v3181 = vunpack.c.l.s4 1966171168
  %v3182 = vunpack.c.0.s8 %v3181
  %v3183 = vlaneseq
  %v3184 = vshrl.u32 %v3183, 7
  %v3185 = vsub.s32 %v3182, %v3184
  %v3186 = vrot.slane %v3178, %v3185
  %v3188 = vunpack.c.l.s4 1966171168
  %v3189 = vunpack.c.0.s8 %v3188
  %v3190 = vlaneseq
  %v3191 = vshrl.u32 %v3190, 7
  %v3192 = vsub.s32 %v3189, %v3191
  %v3193 = vrot.slane %v3179, %v3192
  %v3194 = vcombine.low %v3186, %v3193
  %v3195 = vcombine.low %v1885, %v1889
  %v3196 = vcombine.low %v1893, %v1897
  %v3197 = vcombine.low %v1901, %v1905
  %v3198 = vcombine.low %v1909, %v1913
  %v3200 = vunpack.c.l.s4 1966171168
  %v3201 = vunpack.c.0.s8 %v3200
  %v3202 = vlaneseq
  %v3203 = vshrl.u32 %v3202, 7
  %v3204 = vsub.s32 %v3201, %v3203
  %v3205 = vrot.slane %v3195, %v3204
  %v3207 = vunpack.c.l.s4 1966171168
  %v3208 = vunpack.c.0.s8 %v3207
  %v3209 = vlaneseq
  %v3210 = vshrl.u32 %v3209, 7
  %v3211 = vsub.s32 %v3208, %v3210
  %v3212 = vrot.slane %v3196, %v3211
  %v3214 = vunpack.c.l.s4 1966171168
  %v3215 = vunpack.c.0.s8 %v3214
  %v3216 = vlaneseq
  %v3217 = vshrl.u32 %v3216, 7
  %v3218 = vsub.s32 %v3215, %v3217
  %v3219 = vrot.slane %v3197, %v3218
  %v3221 = vunpack.c.l.s4 1966171168
  %v3222 = vunpack.c.0.s8 %v3221
  %v3223 = vlaneseq
  %v3224 = vshrl.u32 %v3223, 7
  %v3225 = vsub.s32 %v3222, %v3224
  %v3226 = vrot.slane %v3198, %v3225
  %v3227 = vcombine.low %v3205, %v3212
  %v3228 = vcombine.low %v3219, %v3226
  %v3230 = vunpack.c.l.s4 1966171168
  %v3231 = vunpack.c.0.s8 %v3230
  %v3232 = vlaneseq
  %v3233 = vshrl.u32 %v3232, 7
  %v3234 = vsub.s32 %v3231, %v3233
  %v3235 = vrot.slane %v3227, %v3234
  %v3237 = vunpack.c.l.s4 1966171168
  %v3238 = vunpack.c.0.s8 %v3237
  %v3239 = vlaneseq
  %v3240 = vshrl.u32 %v3239, 7
  %v3241 = vsub.s32 %v3238, %v3240
  %v3242 = vrot.slane %v3228, %v3241
  %v3243 = vcombine.low %v3235, %v3242
  %v3244 = vcombine.low %v1917, %v1921
  %v3245 = vcombine.low %v1925, %v1929
  %v3246 = vcombine.low %v1933, %v1937
  %v3247 = vcombine.low %v1941, %v1945
  %v3249 = vunpack.c.l.s4 1966171168
  %v3250 = vunpack.c.0.s8 %v3249
  %v3251 = vlaneseq
  %v3252 = vshrl.u32 %v3251, 7
  %v3253 = vsub.s32 %v3250, %v3252
  %v3254 = vrot.slane %v3244, %v3253
  %v3256 = vunpack.c.l.s4 1966171168
  %v3257 = vunpack.c.0.s8 %v3256
  %v3258 = vlaneseq
  %v3259 = vshrl.u32 %v3258, 7
  %v3260 = vsub.s32 %v3257, %v3259
  %v3261 = vrot.slane %v3245, %v3260
  %v3263 = vunpack.c.l.s4 1966171168
  %v3264 = vunpack.c.0.s8 %v3263
  %v3265 = vlaneseq
  %v3266 = vshrl.u32 %v3265, 7
  %v3267 = vsub.s32 %v3264, %v3266
  %v3268 = vrot.slane %v3246, %v3267
  %v3270 = vunpack.c.l.s4 1966171168
  %v3271 = vunpack.c.0.s8 %v3270
  %v3272 = vlaneseq
  %v3273 = vshrl.u32 %v3272, 7
  %v3274 = vsub.s32 %v3271, %v3273
  %v3275 = vrot.slane %v3247, %v3274
  %v3276 = vcombine.low %v3254, %v3261
  %v3277 = vcombine.low %v3268, %v3275
  %v3279 = vunpack.c.l.s4 1966171168
  %v3280 = vunpack.c.0.s8 %v3279
  %v3281 = vlaneseq
  %v3282 = vshrl.u32 %v3281, 7
  %v3283 = vsub.s32 %v3280, %v3282
  %v3284 = vrot.slane %v3276, %v3283
  %v3286 = vunpack.c.l.s4 1966171168
  %v3287 = vunpack.c.0.s8 %v3286
  %v3288 = vlaneseq
  %v3289 = vshrl.u32 %v3288, 7
  %v3290 = vsub.s32 %v3287, %v3289
  %v3291 = vrot.slane %v3277, %v3290
  %v3292 = vcombine.low %v3284, %v3291
  %v3293 = vcombine.low %v1949, %v1953
  %v3294 = vcombine.low %v1957, %v1961
  %v3295 = vcombine.low %v1965, %v1969
  %v3296 = vcombine.low %v1973, %v1977
  %v3298 = vunpack.c.l.s4 1966171168
  %v3299 = vunpack.c.0.s8 %v3298
  %v3300 = vlaneseq
  %v3301 = vshrl.u32 %v3300, 7
  %v3302 = vsub.s32 %v3299, %v3301
  %v3303 = vrot.slane %v3293, %v3302
  %v3305 = vunpack.c.l.s4 1966171168
  %v3306 = vunpack.c.0.s8 %v3305
  %v3307 = vlaneseq
  %v3308 = vshrl.u32 %v3307, 7
  %v3309 = vsub.s32 %v3306, %v3308
  %v3310 = vrot.slane %v3294, %v3309
  %v3312 = vunpack.c.l.s4 1966171168
  %v3313 = vunpack.c.0.s8 %v3312
  %v3314 = vlaneseq
  %v3315 = vshrl.u32 %v3314, 7
  %v3316 = vsub.s32 %v3313, %v3315
  %v3317 = vrot.slane %v3295, %v3316
  %v3319 = vunpack.c.l.s4 1966171168
  %v3320 = vunpack.c.0.s8 %v3319
  %v3321 = vlaneseq
  %v3322 = vshrl.u32 %v3321, 7
  %v3323 = vsub.s32 %v3320, %v3322
  %v3324 = vrot.slane %v3296, %v3323
  %v3325 = vcombine.low %v3303, %v3310
  %v3326 = vcombine.low %v3317, %v3324
  %v3328 = vunpack.c.l.s4 1966171168
  %v3329 = vunpack.c.0.s8 %v3328
  %v3330 = vlaneseq
  %v3331 = vshrl.u32 %v3330, 7
  %v3332 = vsub.s32 %v3329, %v3331
  %v3333 = vrot.slane %v3325, %v3332
  %v3335 = vunpack.c.l.s4 1966171168
  %v3336 = vunpack.c.0.s8 %v3335
  %v3337 = vlaneseq
  %v3338 = vshrl.u32 %v3337, 7
  %v3339 = vsub.s32 %v3336, %v3338
  %v3340 = vrot.slane %v3326, %v3339
  %v3341 = vcombine.low %v3333, %v3340
  %v3342 = vcombine.low %v1981, %v1985
  %v3343 = vcombine.low %v1989, %v1993
  %v3344 = vcombine.low %v1997, %v2001
  %v3345 = vcombine.low %v2005, %v2009
  %v3347 = vunpack.c.l.s4 1966171168
  %v3348 = vunpack.c.0.s8 %v3347
  %v3349 = vlaneseq
  %v3350 = vshrl.u32 %v3349, 7
  %v3351 = vsub.s32 %v3348, %v3350
  %v3352 = vrot.slane %v3342, %v3351
  %v3354 = vunpack.c.l.s4 1966171168
  %v3355 = vunpack.c.0.s8 %v3354
  %v3356 = vlaneseq
  %v3357 = vshrl.u32 %v3356, 7
  %v3358 = vsub.s32 %v3355, %v3357
  %v3359 = vrot.slane %v3343, %v3358
  %v3361 = vunpack.c.l.s4 1966171168
  %v3362 = vunpack.c.0.s8 %v3361
  %v3363 = vlaneseq
  %v3364 = vshrl.u32 %v3363, 7
  %v3365 = vsub.s32 %v3362, %v3364
  %v3366 = vrot.slane %v3344, %v3365
  %v3368 = vunpack.c.l.s4 1966171168
  %v3369 = vunpack.c.0.s8 %v3368
  %v3370 = vlaneseq
  %v3371 = vshrl.u32 %v3370, 7
  %v3372 = vsub.s32 %v3369, %v3371
  %v3373 = vrot.slane %v3345, %v3372
  %v3374 = vcombine.low %v3352, %v3359
  %v3375 = vcombine.low %v3366, %v3373
  %v3377 = vunpack.c.l.s4 1966171168
  %v3378 = vunpack.c.0.s8 %v3377
  %v3379 = vlaneseq
  %v3380 = vshrl.u32 %v3379, 7
  %v3381 = vsub.s32 %v3378, %v3380
  %v3382 = vrot.slane %v3374, %v3381
  %v3384 = vunpack.c.l.s4 1966171168
  %v3385 = vunpack.c.0.s8 %v3384
  %v3386 = vlaneseq
  %v3387 = vshrl.u32 %v3386, 7
  %v3388 = vsub.s32 %v3385, %v3387
  %v3389 = vrot.slane %v3375, %v3388
  %v3390 = vcombine.low %v3382, %v3389
  %v3391 = vcombine.low %v2013, %v2017
  %v3392 = vcombine.low %v2021, %v2025
  %v3393 = vcombine.low %v2029, %v2033
  %v3394 = vcombine.low %v2037, %v2041
  %v3396 = vunpack.c.l.s4 1966171168
  %v3397 = vunpack.c.0.s8 %v3396
  %v3398 = vlaneseq
  %v3399 = vshrl.u32 %v3398, 7
  %v3400 = vsub.s32 %v3397, %v3399
  %v3401 = vrot.slane %v3391, %v3400
  %v3403 = vunpack.c.l.s4 1966171168
  %v3404 = vunpack.c.0.s8 %v3403
  %v3405 = vlaneseq
  %v3406 = vshrl.u32 %v3405, 7
  %v3407 = vsub.s32 %v3404, %v3406
  %v3408 = vrot.slane %v3392, %v3407
  %v3410 = vunpack.c.l.s4 1966171168
  %v3411 = vunpack.c.0.s8 %v3410
  %v3412 = vlaneseq
  %v3413 = vshrl.u32 %v3412, 7
  %v3414 = vsub.s32 %v3411, %v3413
  %v3415 = vrot.slane %v3393, %v3414
  %v3417 = vunpack.c.l.s4 1966171168
  %v3418 = vunpack.c.0.s8 %v3417
  %v3419 = vlaneseq
  %v3420 = vshrl.u32 %v3419, 7
  %v3421 = vsub.s32 %v3418, %v3420
  %v3422 = vrot.slane %v3394, %v3421
  %v3423 = vcombine.low %v3401, %v3408
  %v3424 = vcombine.low %v3415, %v3422
  %v3426 = vunpack.c.l.s4 1966171168
  %v3427 = vunpack.c.0.s8 %v3426
  %v3428 = vlaneseq
  %v3429 = vshrl.u32 %v3428, 7
  %v3430 = vsub.s32 %v3427, %v3429
  %v3431 = vrot.slane %v3423, %v3430
  %v3433 = vunpack.c.l.s4 1966171168
  %v3434 = vunpack.c.0.s8 %v3433
  %v3435 = vlaneseq
  %v3436 = vshrl.u32 %v3435, 7
  %v3437 = vsub.s32 %v3434, %v3436
  %v3438 = vrot.slane %v3424, %v3437
  %v3439 = vcombine.low %v3431, %v3438
  %v3440 = vcombine.low %v2045, %v2049
  %v3441 = vcombine.low %v2053, %v2057
  %v3442 = vcombine.low %v2061, %v2065
  %v3443 = vcombine.low %v2069, %v2073
  %v3445 = vunpack.c.l.s4 1966171168
  %v3446 = vunpack.c.0.s8 %v3445
  %v3447 = vlaneseq
  %v3448 = vshrl.u32 %v3447, 7
  %v3449 = vsub.s32 %v3446, %v3448
  %v3450 = vrot.slane %v3440, %v3449
  %v3452 = vunpack.c.l.s4 1966171168
  %v3453 = vunpack.c.0.s8 %v3452
  %v3454 = vlaneseq
  %v3455 = vshrl.u32 %v3454, 7
  %v3456 = vsub.s32 %v3453, %v3455
  %v3457 = vrot.slane %v3441, %v3456
  %v3459 = vunpack.c.l.s4 1966171168
  %v3460 = vunpack.c.0.s8 %v3459
  %v3461 = vlaneseq
  %v3462 = vshrl.u32 %v3461, 7
  %v3463 = vsub.s32 %v3460, %v3462
  %v3464 = vrot.slane %v3442, %v3463
  %v3466 = vunpack.c.l.s4 1966171168
  %v3467 = vunpack.c.0.s8 %v3466
  %v3468 = vlaneseq
  %v3469 = vshrl.u32 %v3468, 7
  %v3470 = vsub.s32 %v3467, %v3469
  %v3471 = vrot.slane %v3443, %v3470
  %v3472 = vcombine.low %v3450, %v3457
  %v3473 = vcombine.low %v3464, %v3471
  %v3475 = vunpack.c.l.s4 1966171168
  %v3476 = vunpack.c.0.s8 %v3475
  %v3477 = vlaneseq
  %v3478 = vshrl.u32 %v3477, 7
  %v3479 = vsub.s32 %v3476, %v3478
  %v3480 = vrot.slane %v3472, %v3479
  %v3482 = vunpack.c.l.s4 1966171168
  %v3483 = vunpack.c.0.s8 %v3482
  %v3484 = vlaneseq
  %v3485 = vshrl.u32 %v3484, 7
  %v3486 = vsub.s32 %v3483, %v3485
  %v3487 = vrot.slane %v3473, %v3486
  %v3488 = vcombine.low %v3480, %v3487
  %v3489 = vcombine.low %v2077, %v2081
  %v3490 = vcombine.low %v2085, %v2089
  %v3491 = vcombine.low %v2093, %v2097
  %v3492 = vcombine.low %v2101, %v2105
  %v3494 = vunpack.c.l.s4 1966171168
  %v3495 = vunpack.c.0.s8 %v3494
  %v3496 = vlaneseq
  %v3497 = vshrl.u32 %v3496, 7
  %v3498 = vsub.s32 %v3495, %v3497
  %v3499 = vrot.slane %v3489, %v3498
  %v3501 = vunpack.c.l.s4 1966171168
  %v3502 = vunpack.c.0.s8 %v3501
  %v3503 = vlaneseq
  %v3504 = vshrl.u32 %v3503, 7
  %v3505 = vsub.s32 %v3502, %v3504
  %v3506 = vrot.slane %v3490, %v3505
  %v3508 = vunpack.c.l.s4 1966171168
  %v3509 = vunpack.c.0.s8 %v3508
  %v3510 = vlaneseq
  %v3511 = vshrl.u32 %v3510, 7
  %v3512 = vsub.s32 %v3509, %v3511
  %v3513 = vrot.slane %v3491, %v3512
  %v3515 = vunpack.c.l.s4 1966171168
  %v3516 = vunpack.c.0.s8 %v3515
  %v3517 = vlaneseq
  %v3518 = vshrl.u32 %v3517, 7
  %v3519 = vsub.s32 %v3516, %v3518
  %v3520 = vrot.slane %v3492, %v3519
  %v3521 = vcombine.low %v3499, %v3506
  %v3522 = vcombine.low %v3513, %v3520
  %v3524 = vunpack.c.l.s4 1966171168
  %v3525 = vunpack.c.0.s8 %v3524
  %v3526 = vlaneseq
  %v3527 = vshrl.u32 %v3526, 7
  %v3528 = vsub.s32 %v3525, %v3527
  %v3529 = vrot.slane %v3521, %v3528
  %v3531 = vunpack.c.l.s4 1966171168
  %v3532 = vunpack.c.0.s8 %v3531
  %v3533 = vlaneseq
  %v3534 = vshrl.u32 %v3533, 7
  %v3535 = vsub.s32 %v3532, %v3534
  %v3536 = vrot.slane %v3522, %v3535
  %v3537 = vcombine.low %v3529, %v3536
  %v3538 = vcombine.low %v2109, %v2113
  %v3539 = vcombine.low %v2117, %v2121
  %v3540 = vcombine.low %v2125, %v2129
  %v3541 = vcombine.low %v2133, %v2137
  %v3543 = vunpack.c.l.s4 1966171168
  %v3544 = vunpack.c.0.s8 %v3543
  %v3545 = vlaneseq
  %v3546 = vshrl.u32 %v3545, 7
  %v3547 = vsub.s32 %v3544, %v3546
  %v3548 = vrot.slane %v3538, %v3547
  %v3550 = vunpack.c.l.s4 1966171168
  %v3551 = vunpack.c.0.s8 %v3550
  %v3552 = vlaneseq
  %v3553 = vshrl.u32 %v3552, 7
  %v3554 = vsub.s32 %v3551, %v3553
  %v3555 = vrot.slane %v3539, %v3554
  %v3557 = vunpack.c.l.s4 1966171168
  %v3558 = vunpack.c.0.s8 %v3557
  %v3559 = vlaneseq
  %v3560 = vshrl.u32 %v3559, 7
  %v3561 = vsub.s32 %v3558, %v3560
  %v3562 = vrot.slane %v3540, %v3561
  %v3564 = vunpack.c.l.s4 1966171168
  %v3565 = vunpack.c.0.s8 %v3564
  %v3566 = vlaneseq
  %v3567 = vshrl.u32 %v3566, 7
  %v3568 = vsub.s32 %v3565, %v3567
  %v3569 = vrot.slane %v3541, %v3568
  %v3570 = vcombine.low %v3548, %v3555
  %v3571 = vcombine.low %v3562, %v3569
  %v3573 = vunpack.c.l.s4 1966171168
  %v3574 = vunpack.c.0.s8 %v3573
  %v3575 = vlaneseq
  %v3576 = vshrl.u32 %v3575, 7
  %v3577 = vsub.s32 %v3574, %v3576
  %v3578 = vrot.slane %v3570, %v3577
  %v3580 = vunpack.c.l.s4 1966171168
  %v3581 = vunpack.c.0.s8 %v3580
  %v3582 = vlaneseq
  %v3583 = vshrl.u32 %v3582, 7
  %v3584 = vsub.s32 %v3581, %v3583
  %v3585 = vrot.slane %v3571, %v3584
  %v3586 = vcombine.low %v3578, %v3585
  %v3587 = vcombine.low %v2141, %v2145
  %v3588 = vcombine.low %v2149, %v2153
  %v3589 = vcombine.low %v2157, %v2161
  %v3590 = vcombine.low %v2165, %v2169
  %v3592 = vunpack.c.l.s4 1966171168
  %v3593 = vunpack.c.0.s8 %v3592
  %v3594 = vlaneseq
  %v3595 = vshrl.u32 %v3594, 7
  %v3596 = vsub.s32 %v3593, %v3595
  %v3597 = vrot.slane %v3587, %v3596
  %v3599 = vunpack.c.l.s4 1966171168
  %v3600 = vunpack.c.0.s8 %v3599
  %v3601 = vlaneseq
  %v3602 = vshrl.u32 %v3601, 7
  %v3603 = vsub.s32 %v3600, %v3602
  %v3604 = vrot.slane %v3588, %v3603
  %v3606 = vunpack.c.l.s4 1966171168
  %v3607 = vunpack.c.0.s8 %v3606
  %v3608 = vlaneseq
  %v3609 = vshrl.u32 %v3608, 7
  %v3610 = vsub.s32 %v3607, %v3609
  %v3611 = vrot.slane %v3589, %v3610
  %v3613 = vunpack.c.l.s4 1966171168
  %v3614 = vunpack.c.0.s8 %v3613
  %v3615 = vlaneseq
  %v3616 = vshrl.u32 %v3615, 7
  %v3617 = vsub.s32 %v3614, %v3616
  %v3618 = vrot.slane %v3590, %v3617
  %v3619 = vcombine.low %v3597, %v3604
  %v3620 = vcombine.low %v3611, %v3618
  %v3622 = vunpack.c.l.s4 1966171168
  %v3623 = vunpack.c.0.s8 %v3622
  %v3624 = vlaneseq
  %v3625 = vshrl.u32 %v3624, 7
  %v3626 = vsub.s32 %v3623, %v3625
  %v3627 = vrot.slane %v3619, %v3626
  %v3629 = vunpack.c.l.s4 1966171168
  %v3630 = vunpack.c.0.s8 %v3629
  %v3631 = vlaneseq
  %v3632 = vshrl.u32 %v3631, 7
  %v3633 = vsub.s32 %v3630, %v3632
  %v3634 = vrot.slane %v3620, %v3633
  %v3635 = vcombine.low %v3627, %v3634
  %v3636 = vcombine.low %v2173, %v2177
  %v3637 = vcombine.low %v2181, %v2185
  %v3638 = vcombine.low %v2189, %v2193
  %v3639 = vcombine.low %v2197, %v2201
  %v3641 = vunpack.c.l.s4 1966171168
  %v3642 = vunpack.c.0.s8 %v3641
  %v3643 = vlaneseq
  %v3644 = vshrl.u32 %v3643, 7
  %v3645 = vsub.s32 %v3642, %v3644
  %v3646 = vrot.slane %v3636, %v3645
  %v3648 = vunpack.c.l.s4 1966171168
  %v3649 = vunpack.c.0.s8 %v3648
  %v3650 = vlaneseq
  %v3651 = vshrl.u32 %v3650, 7
  %v3652 = vsub.s32 %v3649, %v3651
  %v3653 = vrot.slane %v3637, %v3652
  %v3655 = vunpack.c.l.s4 1966171168
  %v3656 = vunpack.c.0.s8 %v3655
  %v3657 = vlaneseq
  %v3658 = vshrl.u32 %v3657, 7
  %v3659 = vsub.s32 %v3656, %v3658
  %v3660 = vrot.slane %v3638, %v3659
  %v3662 = vunpack.c.l.s4 1966171168
  %v3663 = vunpack.c.0.s8 %v3662
  %v3664 = vlaneseq
  %v3665 = vshrl.u32 %v3664, 7
  %v3666 = vsub.s32 %v3663, %v3665
  %v3667 = vrot.slane %v3639, %v3666
  %v3668 = vcombine.low %v3646, %v3653
  %v3669 = vcombine.low %v3660, %v3667
  %v3671 = vunpack.c.l.s4 1966171168
  %v3672 = vunpack.c.0.s8 %v3671
  %v3673 = vlaneseq
  %v3674 = vshrl.u32 %v3673, 7
  %v3675 = vsub.s32 %v3672, %v3674
  %v3676 = vrot.slane %v3668, %v3675
  %v3678 = vunpack.c.l.s4 1966171168
  %v3679 = vunpack.c.0.s8 %v3678
  %v3680 = vlaneseq
  %v3681 = vshrl.u32 %v3680, 7
  %v3682 = vsub.s32 %v3679, %v3681
  %v3683 = vrot.slane %v3669, %v3682
  %v3684 = vcombine.low %v3676, %v3683
  %v3685 = vcombine.low %v2205, %v2209
  %v3686 = vcombine.low %v2213, %v2217
  %v3687 = vcombine.low %v2221, %v2225
  %v3688 = vcombine.low %v2229, %v2233
  %v3690 = vunpack.c.l.s4 1966171168
  %v3691 = vunpack.c.0.s8 %v3690
  %v3692 = vlaneseq
  %v3693 = vshrl.u32 %v3692, 7
  %v3694 = vsub.s32 %v3691, %v3693
  %v3695 = vrot.slane %v3685, %v3694
  %v3697 = vunpack.c.l.s4 1966171168
  %v3698 = vunpack.c.0.s8 %v3697
  %v3699 = vlaneseq
  %v3700 = vshrl.u32 %v3699, 7
  %v3701 = vsub.s32 %v3698, %v3700
  %v3702 = vrot.slane %v3686, %v3701
  %v3704 = vunpack.c.l.s4 1966171168
  %v3705 = vunpack.c.0.s8 %v3704
  %v3706 = vlaneseq
  %v3707 = vshrl.u32 %v3706, 7
  %v3708 = vsub.s32 %v3705, %v3707
  %v3709 = vrot.slane %v3687, %v3708
  %v3711 = vunpack.c.l.s4 1966171168
  %v3712 = vunpack.c.0.s8 %v3711
  %v3713 = vlaneseq
  %v3714 = vshrl.u32 %v3713, 7
  %v3715 = vsub.s32 %v3712, %v3714
  %v3716 = vrot.slane %v3688, %v3715
  %v3717 = vcombine.low %v3695, %v3702
  %v3718 = vcombine.low %v3709, %v3716
  %v3720 = vunpack.c.l.s4 1966171168
  %v3721 = vunpack.c.0.s8 %v3720
  %v3722 = vlaneseq
  %v3723 = vshrl.u32 %v3722, 7
  %v3724 = vsub.s32 %v3721, %v3723
  %v3725 = vrot.slane %v3717, %v3724
  %v3727 = vunpack.c.l.s4 1966171168
  %v3728 = vunpack.c.0.s8 %v3727
  %v3729 = vlaneseq
  %v3730 = vshrl.u32 %v3729, 7
  %v3731 = vsub.s32 %v3728, %v3730
  %v3732 = vrot.slane %v3718, %v3731
  %v3733 = vcombine.low %v3725, %v3732
  %v3734 = vcombine.low %v2237, %v2241
  %v3735 = vcombine.low %v2245, %v2249
  %v3736 = vcombine.low %v2253, %v2257
  %v3737 = vcombine.low %v2261, %v2265
  %v3739 = vunpack.c.l.s4 1966171168
  %v3740 = vunpack.c.0.s8 %v3739
  %v3741 = vlaneseq
  %v3742 = vshrl.u32 %v3741, 7
  %v3743 = vsub.s32 %v3740, %v3742
  %v3744 = vrot.slane %v3734, %v3743
  %v3746 = vunpack.c.l.s4 1966171168
  %v3747 = vunpack.c.0.s8 %v3746
  %v3748 = vlaneseq
  %v3749 = vshrl.u32 %v3748, 7
  %v3750 = vsub.s32 %v3747, %v3749
  %v3751 = vrot.slane %v3735, %v3750
  %v3753 = vunpack.c.l.s4 1966171168
  %v3754 = vunpack.c.0.s8 %v3753
  %v3755 = vlaneseq
  %v3756 = vshrl.u32 %v3755, 7
  %v3757 = vsub.s32 %v3754, %v3756
  %v3758 = vrot.slane %v3736, %v3757
  %v3760 = vunpack.c.l.s4 1966171168
  %v3761 = vunpack.c.0.s8 %v3760
  %v3762 = vlaneseq
  %v3763 = vshrl.u32 %v3762, 7
  %v3764 = vsub.s32 %v3761, %v3763
  %v3765 = vrot.slane %v3737, %v3764
  %v3766 = vcombine.low %v3744, %v3751
  %v3767 = vcombine.low %v3758, %v3765
  %v3769 = vunpack.c.l.s4 1966171168
  %v3770 = vunpack.c.0.s8 %v3769
  %v3771 = vlaneseq
  %v3772 = vshrl.u32 %v3771, 7
  %v3773 = vsub.s32 %v3770, %v3772
  %v3774 = vrot.slane %v3766, %v3773
  %v3776 = vunpack.c.l.s4 1966171168
  %v3777 = vunpack.c.0.s8 %v3776
  %v3778 = vlaneseq
  %v3779 = vshrl.u32 %v3778, 7
  %v3780 = vsub.s32 %v3777, %v3779
  %v3781 = vrot.slane %v3767, %v3780
  %v3782 = vcombine.low %v3774, %v3781
  %v3783 = vcombine.low %v2269, %v2273
  %v3784 = vcombine.low %v2277, %v2281
  %v3785 = vcombine.low %v2285, %v2289
  %v3786 = vcombine.low %v2293, %v2297
  %v3788 = vunpack.c.l.s4 1966171168
  %v3789 = vunpack.c.0.s8 %v3788
  %v3790 = vlaneseq
  %v3791 = vshrl.u32 %v3790, 7
  %v3792 = vsub.s32 %v3789, %v3791
  %v3793 = vrot.slane %v3783, %v3792
  %v3795 = vunpack.c.l.s4 1966171168
  %v3796 = vunpack.c.0.s8 %v3795
  %v3797 = vlaneseq
  %v3798 = vshrl.u32 %v3797, 7
  %v3799 = vsub.s32 %v3796, %v3798
  %v3800 = vrot.slane %v3784, %v3799
  %v3802 = vunpack.c.l.s4 1966171168
  %v3803 = vunpack.c.0.s8 %v3802
  %v3804 = vlaneseq
  %v3805 = vshrl.u32 %v3804, 7
  %v3806 = vsub.s32 %v3803, %v3805
  %v3807 = vrot.slane %v3785, %v3806
  %v3809 = vunpack.c.l.s4 1966171168
  %v3810 = vunpack.c.0.s8 %v3809
  %v3811 = vlaneseq
  %v3812 = vshrl.u32 %v3811, 7
  %v3813 = vsub.s32 %v3810, %v3812
  %v3814 = vrot.slane %v3786, %v3813
  %v3815 = vcombine.low %v3793, %v3800
  %v3816 = vcombine.low %v3807, %v3814
  %v3818 = vunpack.c.l.s4 1966171168
  %v3819 = vunpack.c.0.s8 %v3818
  %v3820 = vlaneseq
  %v3821 = vshrl.u32 %v3820, 7
  %v3822 = vsub.s32 %v3819, %v3821
  %v3823 = vrot.slane %v3815, %v3822
  %v3825 = vunpack.c.l.s4 1966171168
  %v3826 = vunpack.c.0.s8 %v3825
  %v3827 = vlaneseq
  %v3828 = vshrl.u32 %v3827, 7
  %v3829 = vsub.s32 %v3826, %v3828
  %v3830 = vrot.slane %v3816, %v3829
  %v3831 = vcombine.low %v3823, %v3830
  %v3832 = vcombine.low %v2301, %v2305
  %v3833 = vcombine.low %v2309, %v2313
  %v3834 = vcombine.low %v2317, %v2321
  %v3835 = vcombine.low %v2325, %v2329
  %v3837 = vunpack.c.l.s4 1966171168
  %v3838 = vunpack.c.0.s8 %v3837
  %v3839 = vlaneseq
  %v3840 = vshrl.u32 %v3839, 7
  %v3841 = vsub.s32 %v3838, %v3840
  %v3842 = vrot.slane %v3832, %v3841
  %v3844 = vunpack.c.l.s4 1966171168
  %v3845 = vunpack.c.0.s8 %v3844
  %v3846 = vlaneseq
  %v3847 = vshrl.u32 %v3846, 7
  %v3848 = vsub.s32 %v3845, %v3847
  %v3849 = vrot.slane %v3833, %v3848
  %v3851 = vunpack.c.l.s4 1966171168
  %v3852 = vunpack.c.0.s8 %v3851
  %v3853 = vlaneseq
  %v3854 = vshrl.u32 %v3853, 7
  %v3855 = vsub.s32 %v3852, %v3854
  %v3856 = vrot.slane %v3834, %v3855
  %v3858 = vunpack.c.l.s4 1966171168
  %v3859 = vunpack.c.0.s8 %v3858
  %v3860 = vlaneseq
  %v3861 = vshrl.u32 %v3860, 7
  %v3862 = vsub.s32 %v3859, %v3861
  %v3863 = vrot.slane %v3835, %v3862
  %v3864 = vcombine.low %v3842, %v3849
  %v3865 = vcombine.low %v3856, %v3863
  %v3867 = vunpack.c.l.s4 1966171168
  %v3868 = vunpack.c.0.s8 %v3867
  %v3869 = vlaneseq
  %v3870 = vshrl.u32 %v3869, 7
  %v3871 = vsub.s32 %v3868, %v3870
  %v3872 = vrot.slane %v3864, %v3871
  %v3874 = vunpack.c.l.s4 1966171168
  %v3875 = vunpack.c.0.s8 %v3874
  %v3876 = vlaneseq
  %v3877 = vshrl.u32 %v3876, 7
  %v3878 = vsub.s32 %v3875, %v3877
  %v3879 = vrot.slane %v3865, %v3878
  %v3880 = vcombine.low %v3872, %v3879
  %v3881 = vcombine.low %v2333, %v2337
  %v3882 = vcombine.low %v2341, %v2345
  %v3883 = vcombine.low %v2349, %v2353
  %v3884 = vcombine.low %v2357, %v2361
  %v3886 = vunpack.c.l.s4 1966171168
  %v3887 = vunpack.c.0.s8 %v3886
  %v3888 = vlaneseq
  %v3889 = vshrl.u32 %v3888, 7
  %v3890 = vsub.s32 %v3887, %v3889
  %v3891 = vrot.slane %v3881, %v3890
  %v3893 = vunpack.c.l.s4 1966171168
  %v3894 = vunpack.c.0.s8 %v3893
  %v3895 = vlaneseq
  %v3896 = vshrl.u32 %v3895, 7
  %v3897 = vsub.s32 %v3894, %v3896
  %v3898 = vrot.slane %v3882, %v3897
  %v3900 = vunpack.c.l.s4 1966171168
  %v3901 = vunpack.c.0.s8 %v3900
  %v3902 = vlaneseq
  %v3903 = vshrl.u32 %v3902, 7
  %v3904 = vsub.s32 %v3901, %v3903
  %v3905 = vrot.slane %v3883, %v3904
  %v3907 = vunpack.c.l.s4 1966171168
  %v3908 = vunpack.c.0.s8 %v3907
  %v3909 = vlaneseq
  %v3910 = vshrl.u32 %v3909, 7
  %v3911 = vsub.s32 %v3908, %v3910
  %v3912 = vrot.slane %v3884, %v3911
  %v3913 = vcombine.low %v3891, %v3898
  %v3914 = vcombine.low %v3905, %v3912
  %v3916 = vunpack.c.l.s4 1966171168
  %v3917 = vunpack.c.0.s8 %v3916
  %v3918 = vlaneseq
  %v3919 = vshrl.u32 %v3918, 7
  %v3920 = vsub.s32 %v3917, %v3919
  %v3921 = vrot.slane %v3913, %v3920
  %v3923 = vunpack.c.l.s4 1966171168
  %v3924 = vunpack.c.0.s8 %v3923
  %v3925 = vlaneseq
  %v3926 = vshrl.u32 %v3925, 7
  %v3927 = vsub.s32 %v3924, %v3926
  %v3928 = vrot.slane %v3914, %v3927
  %v3929 = vcombine.low %v3921, %v3928
  %3930 = vset.pattern.permute.xlu0 0
  %3931 = vperm.xlu0 %3930, %v2410
  %v3932 = vpop.permute.xlu0 %3931
  %3933 = vset.pattern.permute.xlu0 0
  %3934 = vperm.xlu0 %3933, %v2459
  %v3935 = vpop.permute.xlu0 %3934
  %3936 = vset.pattern.permute.xlu0 0
  %3937 = vperm.xlu0 %3936, %v2508
  %v3938 = vpop.permute.xlu0 %3937
  %3939 = vset.pattern.permute.xlu0 0
  %3940 = vperm.xlu0 %3939, %v2557
  %v3941 = vpop.permute.xlu0 %3940
  %3942 = vset.pattern.permute.xlu0 0
  %3943 = vperm.xlu0 %3942, %v2606
  %v3944 = vpop.permute.xlu0 %3943
  %3945 = vset.pattern.permute.xlu0 0
  %3946 = vperm.xlu0 %3945, %v2655
  %v3947 = vpop.permute.xlu0 %3946
  %3948 = vset.pattern.permute.xlu0 0
  %3949 = vperm.xlu0 %3948, %v2704
  %v3950 = vpop.permute.xlu0 %3949
  %3951 = vset.pattern.permute.xlu0 0
  %3952 = vperm.xlu0 %3951, %v2753
  %v3953 = vpop.permute.xlu0 %3952
  %3954 = vset.pattern.permute.xlu0 0
  %3955 = vperm.xlu0 %3954, %v2802
  %v3956 = vpop.permute.xlu0 %3955
  %3957 = vset.pattern.permute.xlu0 0
  %3958 = vperm.xlu0 %3957, %v2851
  %v3959 = vpop.permute.xlu0 %3958
  %3960 = vset.pattern.permute.xlu0 0
  %3961 = vperm.xlu0 %3960, %v2900
  %v3962 = vpop.permute.xlu0 %3961
  %3963 = vset.pattern.permute.xlu0 0
  %3964 = vperm.xlu0 %3963, %v2949
  %v3965 = vpop.permute.xlu0 %3964
  %3966 = vset.pattern.permute.xlu0 0
  %3967 = vperm.xlu0 %3966, %v2998
  %v3968 = vpop.permute.xlu0 %3967
  %3969 = vset.pattern.permute.xlu0 0
  %3970 = vperm.xlu0 %3969, %v3047
  %v3971 = vpop.permute.xlu0 %3970
  %3972 = vset.pattern.permute.xlu0 0
  %3973 = vperm.xlu0 %3972, %v3096
  %v3974 = vpop.permute.xlu0 %3973
  %3975 = vset.pattern.permute.xlu0 0
  %3976 = vperm.xlu0 %3975, %v3145
  %v3977 = vpop.permute.xlu0 %3976
  %3978 = vset.pattern.permute.xlu0 0
  %3979 = vperm.xlu0 %3978, %v3194
  %v3980 = vpop.permute.xlu0 %3979
  %3981 = vset.pattern.permute.xlu0 0
  %3982 = vperm.xlu0 %3981, %v3243
  %v3983 = vpop.permute.xlu0 %3982
  %3984 = vset.pattern.permute.xlu0 0
  %3985 = vperm.xlu0 %3984, %v3292
  %v3986 = vpop.permute.xlu0 %3985
  %3987 = vset.pattern.permute.xlu0 0
  %3988 = vperm.xlu0 %3987, %v3341
  %v3989 = vpop.permute.xlu0 %3988
  %3990 = vset.pattern.permute.xlu0 0
  %3991 = vperm.xlu0 %3990, %v3390
  %v3992 = vpop.permute.xlu0 %3991
  %3993 = vset.pattern.permute.xlu0 0
  %3994 = vperm.xlu0 %3993, %v3439
  %v3995 = vpop.permute.xlu0 %3994
  %3996 = vset.pattern.permute.xlu0 0
  %3997 = vperm.xlu0 %3996, %v3488
  %v3998 = vpop.permute.xlu0 %3997
  %3999 = vset.pattern.permute.xlu0 0
  %4000 = vperm.xlu0 %3999, %v3537
  %v4001 = vpop.permute.xlu0 %4000
  %4002 = vset.pattern.permute.xlu0 0
  %4003 = vperm.xlu0 %4002, %v3586
  %v4004 = vpop.permute.xlu0 %4003
  %4005 = vset.pattern.permute.xlu0 0
  %4006 = vperm.xlu0 %4005, %v3635
  %v4007 = vpop.permute.xlu0 %4006
  %4008 = vset.pattern.permute.xlu0 0
  %4009 = vperm.xlu0 %4008, %v3684
  %v4010 = vpop.permute.xlu0 %4009
  %4011 = vset.pattern.permute.xlu0 0
  %4012 = vperm.xlu0 %4011, %v3733
  %v4013 = vpop.permute.xlu0 %4012
  %4014 = vset.pattern.permute.xlu0 0
  %4015 = vperm.xlu0 %4014, %v3782
  %v4016 = vpop.permute.xlu0 %4015
  %4017 = vset.pattern.permute.xlu0 0
  %4018 = vperm.xlu0 %4017, %v3831
  %v4019 = vpop.permute.xlu0 %4018
  %4020 = vset.pattern.permute.xlu0 0
  %4021 = vperm.xlu0 %4020, %v3880
  %v4022 = vpop.permute.xlu0 %4021
  %4023 = vset.pattern.permute.xlu0 0
  %4024 = vperm.xlu0 %4023, %v3929
  %v4025 = vpop.permute.xlu0 %4024
  %v4026 = vlaneseq
  %v4027 = vand.u32 %v4026, 127
  %v4028 = vlaneseq
  %v4029 = vshrl.u32 %v4028, 7
  %v4030 = vsub.s32 %v4027, %v4029
  %v4031 = vrot.slane %v3932, %v4030
  %v4032 = vadd.s32 %v4027, 4294967288
  %v4033 = vlaneseq
  %v4034 = vshrl.u32 %v4033, 7
  %v4035 = vsub.s32 %v4032, %v4034
  %v4036 = vrot.slane %v3935, %v4035
  %vm4037 = vcmask 130112
  %v4038 = vsel %vm4037, %v4036, %v4031
  %v4039 = vadd.s32 %v4027, 4294967280
  %v4040 = vlaneseq
  %v4041 = vshrl.u32 %v4040, 7
  %v4042 = vsub.s32 %v4039, %v4041
  %v4043 = vrot.slane %v3938, %v4042
  %vm4044 = vcmask 195712
  %v4045 = vsel %vm4044, %v4043, %v4038
  %v4046 = vadd.s32 %v4027, 4294967272
  %v4047 = vlaneseq
  %v4048 = vshrl.u32 %v4047, 7
  %v4049 = vsub.s32 %v4046, %v4048
  %v4050 = vrot.slane %v3941, %v4049
  %vm4051 = vcmask 261312
  %v4052 = vsel %vm4051, %v4050, %v4045
  %v4053 = vadd.s32 %v4027, 4294967264
  %v4054 = vlaneseq
  %v4055 = vshrl.u32 %v4054, 7
  %v4056 = vsub.s32 %v4053, %v4055
  %v4057 = vrot.slane %v3944, %v4056
  %vm4058 = vcmask 326912
  %v4059 = vsel %vm4058, %v4057, %v4052
  %v4060 = vadd.s32 %v4027, 4294967256
  %v4061 = vlaneseq
  %v4062 = vshrl.u32 %v4061, 7
  %v4063 = vsub.s32 %v4060, %v4062
  %v4064 = vrot.slane %v3947, %v4063
  %vm4065 = vcmask 392512
  %v4066 = vsel %vm4065, %v4064, %v4059
  %v4067 = vadd.s32 %v4027, 4294967248
  %v4068 = vlaneseq
  %v4069 = vshrl.u32 %v4068, 7
  %v4070 = vsub.s32 %v4067, %v4069
  %v4071 = vrot.slane %v3950, %v4070
  %vm4072 = vcmask 458112
  %v4073 = vsel %vm4072, %v4071, %v4066
  %v4074 = vadd.s32 %v4027, 4294967240
  %v4075 = vlaneseq
  %v4076 = vshrl.u32 %v4075, 7
  %v4077 = vsub.s32 %v4074, %v4076
  %v4078 = vrot.slane %v3953, %v4077
  %vm4079 = vcmask 523712
  %v4080 = vsel %vm4079, %v4078, %v4073
  %v4081 = vadd.s32 %v4027, 4294967232
  %v4082 = vlaneseq
  %v4083 = vshrl.u32 %v4082, 7
  %v4084 = vsub.s32 %v4081, %v4083
  %v4085 = vrot.slane %v3956, %v4084
  %vm4086 = vcmask 589312
  %v4087 = vsel %vm4086, %v4085, %v4080
  %v4088 = vadd.s32 %v4027, 4294967224
  %v4089 = vlaneseq
  %v4090 = vshrl.u32 %v4089, 7
  %v4091 = vsub.s32 %v4088, %v4090
  %v4092 = vrot.slane %v3959, %v4091
  %vm4093 = vcmask 654912
  %v4094 = vsel %vm4093, %v4092, %v4087
  %v4095 = vadd.s32 %v4027, 4294967216
  %v4096 = vlaneseq
  %v4097 = vshrl.u32 %v4096, 7
  %v4098 = vsub.s32 %v4095, %v4097
  %v4099 = vrot.slane %v3962, %v4098
  %vm4100 = vcmask 720512
  %v4101 = vsel %vm4100, %v4099, %v4094
  %v4102 = vadd.s32 %v4027, 4294967208
  %v4103 = vlaneseq
  %v4104 = vshrl.u32 %v4103, 7
  %v4105 = vsub.s32 %v4102, %v4104
  %v4106 = vrot.slane %v3965, %v4105
  %vm4107 = vcmask 786112
  %v4108 = vsel %vm4107, %v4106, %v4101
  %v4109 = vadd.s32 %v4027, 4294967200
  %v4110 = vlaneseq
  %v4111 = vshrl.u32 %v4110, 7
  %v4112 = vsub.s32 %v4109, %v4111
  %v4113 = vrot.slane %v3968, %v4112
  %vm4114 = vcmask 851712
  %v4115 = vsel %vm4114, %v4113, %v4108
  %v4116 = vadd.s32 %v4027, 4294967192
  %v4117 = vlaneseq
  %v4118 = vshrl.u32 %v4117, 7
  %v4119 = vsub.s32 %v4116, %v4118
  %v4120 = vrot.slane %v3971, %v4119
  %vm4121 = vcmask 917312
  %v4122 = vsel %vm4121, %v4120, %v4115
  %v4123 = vadd.s32 %v4027, 4294967184
  %v4124 = vlaneseq
  %v4125 = vshrl.u32 %v4124, 7
  %v4126 = vsub.s32 %v4123, %v4125
  %v4127 = vrot.slane %v3974, %v4126
  %vm4128 = vcmask 982912
  %v4129 = vsel %vm4128, %v4127, %v4122
  %v4130 = vadd.s32 %v4027, 4294967176
  %v4131 = vlaneseq
  %v4132 = vshrl.u32 %v4131, 7
  %v4133 = vsub.s32 %v4130, %v4132
  %v4134 = vrot.slane %v3977, %v4133
  %vm4135 = vcmask 1048512
  %v4136 = vsel %vm4135, %v4134, %v4129
  %v4137 = vlaneseq
  %v4138 = vshrl.u32 %v4137, 7
  %v4139 = vsub.s32 %v4027, %v4138
  %v4140 = vrot.slane %v3980, %v4139
  %v4141 = vlaneseq
  %v4142 = vshrl.u32 %v4141, 7
  %v4143 = vsub.s32 %v4032, %v4142
  %v4144 = vrot.slane %v3983, %v4143
  %v4145 = vsel %vm4037, %v4144, %v4140
  %v4146 = vlaneseq
  %v4147 = vshrl.u32 %v4146, 7
  %v4148 = vsub.s32 %v4039, %v4147
  %v4149 = vrot.slane %v3986, %v4148
  %v4150 = vsel %vm4044, %v4149, %v4145
  %v4151 = vlaneseq
  %v4152 = vshrl.u32 %v4151, 7
  %v4153 = vsub.s32 %v4046, %v4152
  %v4154 = vrot.slane %v3989, %v4153
  %v4155 = vsel %vm4051, %v4154, %v4150
  %v4156 = vlaneseq
  %v4157 = vshrl.u32 %v4156, 7
  %v4158 = vsub.s32 %v4053, %v4157
  %v4159 = vrot.slane %v3992, %v4158
  %v4160 = vsel %vm4058, %v4159, %v4155
  %v4161 = vlaneseq
  %v4162 = vshrl.u32 %v4161, 7
  %v4163 = vsub.s32 %v4060, %v4162
  %v4164 = vrot.slane %v3995, %v4163
  %v4165 = vsel %vm4065, %v4164, %v4160
  %v4166 = vlaneseq
  %v4167 = vshrl.u32 %v4166, 7
  %v4168 = vsub.s32 %v4067, %v4167
  %v4169 = vrot.slane %v3998, %v4168
  %v4170 = vsel %vm4072, %v4169, %v4165
  %v4171 = vlaneseq
  %v4172 = vshrl.u32 %v4171, 7
  %v4173 = vsub.s32 %v4074, %v4172
  %v4174 = vrot.slane %v4001, %v4173
  %v4175 = vsel %vm4079, %v4174, %v4170
  %v4176 = vlaneseq
  %v4177 = vshrl.u32 %v4176, 7
  %v4178 = vsub.s32 %v4081, %v4177
  %v4179 = vrot.slane %v4004, %v4178
  %v4180 = vsel %vm4086, %v4179, %v4175
  %v4181 = vlaneseq
  %v4182 = vshrl.u32 %v4181, 7
  %v4183 = vsub.s32 %v4088, %v4182
  %v4184 = vrot.slane %v4007, %v4183
  %v4185 = vsel %vm4093, %v4184, %v4180
  %v4186 = vlaneseq
  %v4187 = vshrl.u32 %v4186, 7
  %v4188 = vsub.s32 %v4095, %v4187
  %v4189 = vrot.slane %v4010, %v4188
  %v4190 = vsel %vm4100, %v4189, %v4185
  %v4191 = vlaneseq
  %v4192 = vshrl.u32 %v4191, 7
  %v4193 = vsub.s32 %v4102, %v4192
  %v4194 = vrot.slane %v4013, %v4193
  %v4195 = vsel %vm4107, %v4194, %v4190
  %v4196 = vlaneseq
  %v4197 = vshrl.u32 %v4196, 7
  %v4198 = vsub.s32 %v4109, %v4197
  %v4199 = vrot.slane %v4016, %v4198
  %v4200 = vsel %vm4114, %v4199, %v4195
  %v4201 = vlaneseq
  %v4202 = vshrl.u32 %v4201, 7
  %v4203 = vsub.s32 %v4116, %v4202
  %v4204 = vrot.slane %v4019, %v4203
  %v4205 = vsel %vm4121, %v4204, %v4200
  %v4206 = vlaneseq
  %v4207 = vshrl.u32 %v4206, 7
  %v4208 = vsub.s32 %v4123, %v4207
  %v4209 = vrot.slane %v4022, %v4208
  %v4210 = vsel %vm4128, %v4209, %v4205
  %v4211 = vlaneseq
  %v4212 = vshrl.u32 %v4211, 7
  %v4213 = vsub.s32 %v4130, %v4212
  %v4214 = vrot.slane %v4025, %v4213
  %v4215 = vsel %vm4135, %v4214, %v4210
  %v4216 = vcombine.low %v4136, %v4215
  %v4218 = vunpack.c.l.s4 1966171168
  %v4219 = vunpack.c.0.s8 %v4218
  %v4220 = vlaneseq
  %v4221 = vshrl.u32 %v4220, 7
  %v4222 = vsub.s32 %v4219, %v4221
  %v4223 = vrot.slane %v4216, %v4222
  %v4225 = vunpack.c.l.s4 1966171168
  %v4226 = vunpack.c.0.s8 %v4225
  %v4227 = vlaneseq
  %v4228 = vshrl.u32 %v4227, 7
  %v4229 = vsub.s32 %v4226, %v4228
  %v4230 = vrot.slane %v4223, %v4229
  %v4232 = vlaneseq
  %vm4233 = vcmp.ge.s32.totalorder %v4232, 0
  %vm4234 = vcmp.lt.s32.totalorder %v4232, 256
  %vm4235 = vmand %vm4233, %vm4234
  %4236 = vst.msk [vmem:[%s8] sm:$0x3] %vm4235, %v4230
  // Predicated region
  $region34: #{_lambda_.1} parent=0 // pred_check
    _
  $region35: #{_lambda_.1} parent=0 // pred_check_branch
    %4238 = sbr.rel (0) target = $region37
  $region36: #{_lambda_.1} parent=0 // pred_region
    _
  $region37: #{_lambda_.1} parent=0 // pred_fallthru
    _
  // Predicated region
  $region38: #{_lambda_.1} parent=0 // pred_check
    _
  $region39: #{_lambda_.1} parent=0 // pred_check_branch
    %4240 = sbr.rel (0) target = $region41
  $region40: #{_lambda_.1} parent=0 // pred_region
    _
  $region41: #{_lambda_.1} parent=0 // pred_fallthru
    _

</llo_original>
